<compile_context>
chip_gen: v7x
topology: tpu7x:2x2x1
jax: 0.10.0
libtpu: 0.0.40
codegen_flags: <defaults>
</compile_context>

<pallas_src>
import functools

import jax
import jax.numpy as jnp
from jax.experimental import pallas as pl
from jax.experimental.pallas import tpu as pltpu


# ----------------------------------------------------------------------------
# Kernel
# ----------------------------------------------------------------------------
def _gru2_fused_kernel(x_ref, wih0_ref, whh0_ref, bih0_ref, bhh0_ref,
                       wih1_ref, whh1_ref, bih1_ref, bhh1_ref,
                       hn_ref,
                       gi0_scr, h0_scr, h1_scr,
                       *, tt, hp, mm_dtype):
    """Fused 2-layer GRU. Grid = (batch_blocks, time_chunks)."""
    tc = pl.program_id(1)

    @pl.when(tc == 0)
    def _():
        h0_scr[...] = jnp.zeros_like(h0_scr)
        h1_scr[...] = jnp.zeros_like(h1_scr)

    bb = x_ref.shape[1]
    dp = x_ref.shape[2]

    # ---- Hoisted layer-0 input projection for the whole time chunk ---------
    # One (tt*bb, dp) x (dp, 3*hp) MXU matmul instead of tt tiny per-step ones.
    x_chunk = x_ref[...].reshape(tt * bb, dp).astype(mm_dtype)
    gi0 = jnp.dot(x_chunk, wih0_ref[...], preferred_element_type=jnp.float32)
    gi0_scr[...] = gi0 + bih0_ref[...]

    bhh0 = bhh0_ref[...]
    bih1 = bih1_ref[...]
    bhh1 = bhh1_ref[...]

    h0 = h0_scr[...]
    h1 = h1_scr[...]

    # Fully unrolled recurrence over the chunk (tt is a small compile-time
    # constant), so all slices below are static and lane/sublane aligned.
    for i in range(tt):
        gi_0 = gi0_scr[i * bb:(i + 1) * bb, :]              # (bb, 3*hp), f32

        # ---- layer 0 ----  (PyTorch gate order [r, z, n])
        gh_0 = jnp.dot(h0.astype(mm_dtype), whh0_ref[...],
                       preferred_element_type=jnp.float32) + bhh0
        r0 = jax.nn.sigmoid(gi_0[:, 0 * hp:1 * hp] + gh_0[:, 0 * hp:1 * hp])
        z0 = jax.nn.sigmoid(gi_0[:, 1 * hp:2 * hp] + gh_0[:, 1 * hp:2 * hp])
        n0 = jnp.tanh(gi_0[:, 2 * hp:3 * hp] + r0 * gh_0[:, 2 * hp:3 * hp])
        h0 = (1.0 - z0) * n0 + z0 * h0

        # ---- layer 1 (input = layer-0 hidden of this step) ----
        gi_1 = jnp.dot(h0.astype(mm_dtype), wih1_ref[...],
                       preferred_element_type=jnp.float32) + bih1
        gh_1 = jnp.dot(h1.astype(mm_dtype), whh1_ref[...],
                       preferred_element_type=jnp.float32) + bhh1
        r1 = jax.nn.sigmoid(gi_1[:, 0 * hp:1 * hp] + gh_1[:, 0 * hp:1 * hp])
        z1 = jax.nn.sigmoid(gi_1[:, 1 * hp:2 * hp] + gh_1[:, 1 * hp:2 * hp])
        n1 = jnp.tanh(gi_1[:, 2 * hp:3 * hp] + r1 * gh_1[:, 2 * hp:3 * hp])
        h1 = (1.0 - z1) * n1 + z1 * h1

    h0_scr[...] = h0
    h1_scr[...] = h1

    # Only the final hidden states leave the chip. The output block index is
    # constant along the time axis, so HBM writeback happens once per b-block.
    hn_ref[0] = h0.astype(hn_ref.dtype)
    hn_ref[1] = h1.astype(hn_ref.dtype)


# ----------------------------------------------------------------------------
# Parameter packing (hoisted out of the per-call path)
# ----------------------------------------------------------------------------
def _round_up(x, m):
    return (x + m - 1) // m * m


def _pack_gate_weight(w, rows_pad, h_pad):
    """PyTorch GRU weight (3H, in) -> padded lane-dense (rows_pad, 3*h_pad).

    Columns are [ r-gate | z-gate | n-gate ], each slab h_pad (128-aligned)."""
    three_h, in_dim = w.shape
    h = three_h // 3
    w = w.reshape(3, h, in_dim).astype(jnp.float32)
    w = jnp.transpose(w, (2, 0, 1))                      # (in, 3, H)
    w = jnp.pad(w, ((0, rows_pad - in_dim), (0, 0), (0, h_pad - h)))
    return w.reshape(rows_pad, 3 * h_pad)


def _pack_gate_bias(b, h_pad):
    h = b.shape[0] // 3
    b = b.reshape(3, h).astype(jnp.float32)
    b = jnp.pad(b, ((0, 0), (0, h_pad - h)))
    return b.reshape(1, 3 * h_pad)


def prepare_rnn_emb_params(params, in_dim, hi_dim, mm_dtype=jnp.bfloat16):
    """Pack/pad/transpose/cast the GRU weights once."""
    hp = _round_up(hi_dim, 128)   # lane-dense, 128-aligned gate slabs
    dp = _round_up(in_dim, 8)     # sublane-aligned input feature dim
    return {
        "in_dim": in_dim, "hi_dim": hi_dim, "dp": dp, "hp": hp,
        "mm_dtype": mm_dtype,
        "wih0": _pack_gate_weight(params["w_ih_l0"], dp, hp).astype(mm_dtype),
        "whh0": _pack_gate_weight(params["w_hh_l0"], hp, hp).astype(mm_dtype),
        "wih1": _pack_gate_weight(params["w_ih_l1"], hp, hp).astype(mm_dtype),
        "whh1": _pack_gate_weight(params["w_hh_l1"], hp, hp).astype(mm_dtype),
        "bih0": _pack_gate_bias(params["b_ih_l0"], hp),
        "bhh0": _pack_gate_bias(params["b_hh_l0"], hp),
        "bih1": _pack_gate_bias(params["b_ih_l1"], hp),
        "bhh1": _pack_gate_bias(params["b_hh_l1"], hp),
    }


# ----------------------------------------------------------------------------
# Forward wrapper
# ----------------------------------------------------------------------------
def rnn_emb_forward(batch_feature, packed, *, b_blk=8, tt_max=16):
    """Equivalent to RNNEmb.forward: returns h_n of shape (2, B, hi_dim)."""
    B, T, D = batch_feature.shape
    assert D == packed["in_dim"]
    H, hp, dp = packed["hi_dim"], packed["hp"], packed["dp"]
    mm_dtype = packed["mm_dtype"]

    bp = _round_up(B, b_blk)
    num_bb = bp // b_blk

    # Largest time-chunk that divides T (amortizes Pallas per-step overhead;
    # T itself is never zero-padded: extra GRU steps would change h_n).
    tt = 1
    for cand in range(1, min(T, tt_max) + 1):
        if T % cand == 0:
            tt = cand
    num_tc = T // tt

    # Time-major, batch/feature zero-padded input. Zero padding is exact: the
    # padded hidden lanes stay exactly 0 through the recurrence.
    x = jnp.transpose(batch_feature, (1, 0, 2)).astype(jnp.float32)
    x = jnp.pad(x, ((0, 0), (0, bp - B), (0, dp - D)))

    kernel = functools.partial(_gru2_fused_kernel, tt=tt, hp=hp,
                               mm_dtype=mm_dtype)
    const = lambda b, t: (0, 0)

    h_n = pl.pallas_call(
        kernel,
        out_shape=jax.ShapeDtypeStruct((2, bp, hp), jnp.float32),
        grid_spec=pltpu.PrefetchScalarGridSpec(
            num_scalar_prefetch=0,
            grid=(num_bb, num_tc),
            in_specs=[
                pl.BlockSpec((tt, b_blk, dp), lambda b, t: (t, b, 0)),  # x
                pl.BlockSpec((dp, 3 * hp), const),                      # W_ih l0
                pl.BlockSpec((hp, 3 * hp), const),                      # W_hh l0
                pl.BlockSpec((1, 3 * hp), const),                       # b_ih l0
                pl.BlockSpec((1, 3 * hp), const),                       # b_hh l0
                pl.BlockSpec((hp, 3 * hp), const),                      # W_ih l1
                pl.BlockSpec((hp, 3 * hp), const),                      # W_hh l1
                pl.BlockSpec((1, 3 * hp), const),                       # b_ih l1
                pl.BlockSpec((1, 3 * hp), const),                       # b_hh l1
            ],
            out_specs=pl.BlockSpec((2, b_blk, hp), lambda b, t: (0, b, 0)),
            scratch_shapes=[
                pltpu.VMEM((tt * b_blk, 3 * hp), jnp.float32),  # chunk gi0
                pltpu.VMEM((b_blk, hp), jnp.float32),           # h layer 0
                pltpu.VMEM((b_blk, hp), jnp.float32),           # h layer 1
            ],
        ),
        compiler_params=pltpu.CompilerParams(
            # time axis is a true recurrence -> "arbitrary"; batch blocks are
            # independent -> "parallel" (lets v7x use both TensorCores).
            dimension_semantics=("parallel", "arbitrary")),
    )(x, packed["wih0"], packed["whh0"], packed["bih0"], packed["bhh0"],
      packed["wih1"], packed["whh1"], packed["bih1"], packed["bhh1"])

    return h_n[:, :B, :H]


# ----------------------------------------------------------------------------
# Init + pure-JAX reference
# ----------------------------------------------------------------------------
def init_params(key, in_dim, hi_dim):
    """PyTorch-GRU-style init: U(-1/sqrt(H), 1/sqrt(H))."""
    k = 1.0 / jnp.sqrt(jnp.float32(hi_dim))
    keys = jax.random.split(key, 8)
    u = lambda kk, shape: jax.random.uniform(kk, shape, jnp.float32, -k, k)
    return {
        "w_ih_l0": u(keys[0], (3 * hi_dim, in_dim)),
        "w_hh_l0": u(keys[1], (3 * hi_dim, hi_dim)),
        "b_ih_l0": u(keys[2], (3 * hi_dim,)),
        "b_hh_l0": u(keys[3], (3 * hi_dim,)),
        "w_ih_l1": u(keys[4], (3 * hi_dim, hi_dim)),
        "w_hh_l1": u(keys[5], (3 * hi_dim, hi_dim)),
        "b_ih_l1": u(keys[6], (3 * hi_dim,)),
        "b_hh_l1": u(keys[7], (3 * hi_dim,)),
    }


def _gru_layer_ref(x_tm, w_ih, w_hh, b_ih, b_hh):
    T, B, _ = x_tm.shape
    H = w_hh.shape[1]

    def step(h, x_t):
        gi = x_t @ w_ih.T + b_ih
        gh = h @ w_hh.T + b_hh
        r = jax.nn.sigmoid(gi[:, :H] + gh[:, :H])
        z = jax.nn.sigmoid(gi[:, H:2 * H] + gh[:, H:2 * H])
        n = jnp.tanh(gi[:, 2 * H:] + r * gh[:, 2 * H:])
        h_new = (1.0 - z) * n + z * h
        return h_new, h_new

    h0 = jnp.zeros((B, H), jnp.float32)
    _, ys = jax.lax.scan(step, h0, x_tm)
    return ys


def rnn_emb_ref(batch_feature, params):
    x_tm = jnp.transpose(batch_feature, (1, 0, 2)).astype(jnp.float32)
    y0 = _gru_layer_ref(x_tm, params["w_ih_l0"], params["w_hh_l0"],
                        params["b_ih_l0"], params["b_hh_l0"])
    y1 = _gru_layer_ref(y0, params["w_ih_l1"], params["w_hh_l1"],
                        params["b_ih_l1"], params["b_hh_l1"])
    return jnp.stack([y0[-1], y1[-1]], axis=0)


if __name__ == "__main__":
    B, T, IN_DIM, HI_DIM = 2, 8, 4, 32

    key = jax.random.PRNGKey(0)
    k_params, k_x = jax.random.split(key)
    params = init_params(k_params, IN_DIM, HI_DIM)
    x = jax.random.normal(k_x, (B, T, IN_DIM), jnp.float32)  # batch_first

    h_ref = jax.block_until_ready(rnn_emb_ref(x, params))

    # f32-matmul path: tight agreement with the reference.
    packed_f32 = prepare_rnn_emb_params(params, IN_DIM, HI_DIM,
                                        mm_dtype=jnp.float32)
    h_f32 = jax.block_until_ready(rnn_emb_forward(x, packed_f32))
    assert h_f32.shape == (2, B, HI_DIM), h_f32.shape
    assert jnp.allclose(h_f32, h_ref, atol=1e-5, rtol=1e-5), \
        "f32 mismatch vs reference"

    # bf16-matmul fast path (v6e/v7x MXU); gate math / carry stay f32.
    packed_bf16 = prepare_rnn_emb_params(params, IN_DIM, HI_DIM,
                                         mm_dtype=jnp.bfloat16)
    h_bf16 = jax.block_until_ready(rnn_emb_forward(x, packed_bf16))
    assert h_bf16.shape == (2, B, HI_DIM), h_bf16.shape
    assert jnp.allclose(h_bf16, h_ref, atol=2e-2, rtol=2e-2), \
        "bf16 mismatch vs reference"

    print("KERNEL_OK")
</pallas_src>

<mosaic_0001>
module attributes {stable_mosaic.version = 11 : i64} {
  func.func @_gru2_fused_kernel(%arg0: i32, %arg1: i32, %arg2: memref<8x8x8xf32, #tpu.memory_space<vmem>>, %arg3: memref<8x384xf32, #tpu.memory_space<vmem>>, %arg4: memref<128x384xf32, #tpu.memory_space<vmem>>, %arg5: memref<1x384xf32, #tpu.memory_space<vmem>>, %arg6: memref<1x384xf32, #tpu.memory_space<vmem>>, %arg7: memref<128x384xf32, #tpu.memory_space<vmem>>, %arg8: memref<128x384xf32, #tpu.memory_space<vmem>>, %arg9: memref<1x384xf32, #tpu.memory_space<vmem>>, %arg10: memref<1x384xf32, #tpu.memory_space<vmem>>, %arg11: memref<2x8x128xf32, #tpu.memory_space<vmem>>, %arg12: memref<64x384xf32, #tpu.memory_space<vmem>>, %arg13: memref<8x128xf32, #tpu.memory_space<vmem>>, %arg14: memref<8x128xf32, #tpu.memory_space<vmem>>) attributes {dimension_semantics = [#tpu.dimension_semantics<parallel>, #tpu.dimension_semantics<arbitrary>], iteration_bounds = array<i64: 1, 1>, scalar_prefetch = 0 : i64, scratch_operands = 3 : i64, tpu.core_type = #tpu.core_type<tc>, window_params = [{transform_indices = @transform_0, window_bounds = array<i64: 8, 8, 8>}, {pipeline_mode = #tpu.pipeline_mode<synchronous>, transform_indices = @transform_1, window_bounds = array<i64: 8, 384>}, {pipeline_mode = #tpu.pipeline_mode<synchronous>, transform_indices = @transform_2, window_bounds = array<i64: 128, 384>}, {pipeline_mode = #tpu.pipeline_mode<synchronous>, transform_indices = @transform_3, window_bounds = array<i64: 1, 384>}, {pipeline_mode = #tpu.pipeline_mode<synchronous>, transform_indices = @transform_4, window_bounds = array<i64: 1, 384>}, {pipeline_mode = #tpu.pipeline_mode<synchronous>, transform_indices = @transform_5, window_bounds = array<i64: 128, 384>}, {pipeline_mode = #tpu.pipeline_mode<synchronous>, transform_indices = @transform_6, window_bounds = array<i64: 128, 384>}, {pipeline_mode = #tpu.pipeline_mode<synchronous>, transform_indices = @transform_7, window_bounds = array<i64: 1, 384>}, {pipeline_mode = #tpu.pipeline_mode<synchronous>, transform_indices = @transform_8, window_bounds = array<i64: 1, 384>}, {transform_indices = @transform_9, window_bounds = array<i64: 2, 8, 128>}]} {
    %c0_i32 = arith.constant 0 : i32
    %0 = arith.cmpi eq, %arg1, %c0_i32 : i32
    %1 = arith.extui %0 : i1 to i32
    %c0_i32_0 = arith.constant 0 : i32
    %2 = arith.cmpi ne, %1, %c0_i32_0 : i32
    scf.if %2 {
      %cst_157 = arith.constant 0.000000e+00 : f32
      %544 = vector.broadcast %cst_157 : f32 to vector<8x128xf32>
      %c0_158 = arith.constant 0 : index
      %c0_159 = arith.constant 0 : index
      %545 = vector.load %arg13[%c0_158, %c0_159] : memref<8x128xf32, #tpu.memory_space<vmem>>, vector<8x128xf32>
      tpu.vector_store %arg13[%c0_158, %c0_159], %544 {strides = array<i32>} : memref<8x128xf32, #tpu.memory_space<vmem>>, vector<8x128xf32>,
      %cst_160 = arith.constant 0.000000e+00 : f32
      %546 = vector.broadcast %cst_160 : f32 to vector<8x128xf32>
      %c0_161 = arith.constant 0 : index
      %c0_162 = arith.constant 0 : index
      %547 = vector.load %arg14[%c0_161, %c0_162] : memref<8x128xf32, #tpu.memory_space<vmem>>, vector<8x128xf32>
      tpu.vector_store %arg14[%c0_161, %c0_162], %546 {strides = array<i32>} : memref<8x128xf32, #tpu.memory_space<vmem>>, vector<8x128xf32>,
    } else {
    }
    %c0 = arith.constant 0 : index
    %c0_1 = arith.constant 0 : index
    %c0_2 = arith.constant 0 : index
    %3 = vector.load %arg2[%c0, %c0_1, %c0_2] : memref<8x8x8xf32, #tpu.memory_space<vmem>>, vector<8x8x8xf32>
    %4 = vector.shape_cast %3 : vector<8x8x8xf32> to vector<64x8xf32>
    %c0_3 = arith.constant 0 : index
    %c0_4 = arith.constant 0 : index
    %5 = vector.load %arg3[%c0_3, %c0_4] : memref<8x384xf32, #tpu.memory_space<vmem>>, vector<8x384xf32>
    %cst = arith.constant dense<0.000000e+00> : vector<64x384xf32>
    %6 = tpu.matmul %4, %5, %cst {dimension_numbers = #tpu.dot_dimension_numbers<[1], [0], [0], [1], [0, 0, 1, 1], [], []>} : vector<64x8xf32>, vector<8x384xf32>, vector<64x384xf32> -> vector<64x384xf32>
    %c0_5 = arith.constant 0 : index
    %c0_6 = arith.constant 0 : index
    %7 = vector.load %arg5[%c0_5, %c0_6] : memref<1x384xf32, #tpu.memory_space<vmem>>, vector<1x384xf32>
    %8 = vector.broadcast %7 : vector<1x384xf32> to vector<64x384xf32>
    %9 = arith.addf %6, %8 : vector<64x384xf32>
    %c0_7 = arith.constant 0 : index
    %c0_8 = arith.constant 0 : index
    %10 = vector.load %arg12[%c0_7, %c0_8] : memref<64x384xf32, #tpu.memory_space<vmem>>, vector<64x384xf32>
    tpu.vector_store %arg12[%c0_7, %c0_8], %9 {strides = array<i32>} : memref<64x384xf32, #tpu.memory_space<vmem>>, vector<64x384xf32>,
    %c0_9 = arith.constant 0 : index
    %c0_10 = arith.constant 0 : index
    %11 = vector.load %arg6[%c0_9, %c0_10] : memref<1x384xf32, #tpu.memory_space<vmem>>, vector<1x384xf32>
    %c0_11 = arith.constant 0 : index
    %c0_12 = arith.constant 0 : index
    %12 = vector.load %arg9[%c0_11, %c0_12] : memref<1x384xf32, #tpu.memory_space<vmem>>, vector<1x384xf32>
    %c0_13 = arith.constant 0 : index
    %c0_14 = arith.constant 0 : index
    %13 = vector.load %arg10[%c0_13, %c0_14] : memref<1x384xf32, #tpu.memory_space<vmem>>, vector<1x384xf32>
    %c0_15 = arith.constant 0 : index
    %c0_16 = arith.constant 0 : index
    %14 = vector.load %arg13[%c0_15, %c0_16] : memref<8x128xf32, #tpu.memory_space<vmem>>, vector<8x128xf32>
    %c0_17 = arith.constant 0 : index
    %c0_18 = arith.constant 0 : index
    %15 = vector.load %arg14[%c0_17, %c0_18] : memref<8x128xf32, #tpu.memory_space<vmem>>, vector<8x128xf32>
    %c0_19 = arith.constant 0 : index
    %c0_20 = arith.constant 0 : index
    %16 = vector.load %arg12[%c0_19, %c0_20] : memref<64x384xf32, #tpu.memory_space<vmem>>, vector<8x384xf32>
    %c0_21 = arith.constant 0 : index
    %c0_22 = arith.constant 0 : index
    %17 = vector.load %arg4[%c0_21, %c0_22] : memref<128x384xf32, #tpu.memory_space<vmem>>, vector<128x384xf32>
    %cst_23 = arith.constant dense<0.000000e+00> : vector<8x384xf32>
    %18 = tpu.matmul %14, %17, %cst_23 {dimension_numbers = #tpu.dot_dimension_numbers<[1], [0], [0], [1], [0, 0, 1, 1], [], []>} : vector<8x128xf32>, vector<128x384xf32>, vector<8x384xf32> -> vector<8x384xf32>
    %19 = vector.broadcast %11 : vector<1x384xf32> to vector<8x384xf32>
    %20 = arith.addf %18, %19 : vector<8x384xf32>
    %21 = vector.extract_strided_slice %16 {offsets = [0, 0], sizes = [8, 128], strides = [1, 1]} : vector<8x384xf32> to vector<8x128xf32>
    %22 = vector.extract_strided_slice %20 {offsets = [0, 0], sizes = [8, 128], strides = [1, 1]} : vector<8x384xf32> to vector<8x128xf32>
    %23 = arith.addf %21, %22 : vector<8x128xf32>
    %24 = arith.negf %23 : vector<8x128xf32>
    %25 = math.exp %24 : vector<8x128xf32>
    %cst_24 = arith.constant 1.000000e+00 : f32
    %26 = vector.broadcast %cst_24 : f32 to vector<8x128xf32>
    %27 = arith.addf %26, %25 : vector<8x128xf32>
    %28 = arith.divf %26, %27 : vector<8x128xf32>
    %29 = vector.extract_strided_slice %16 {offsets = [0, 128], sizes = [8, 128], strides = [1, 1]} : vector<8x384xf32> to vector<8x128xf32>
    %30 = vector.extract_strided_slice %20 {offsets = [0, 128], sizes = [8, 128], strides = [1, 1]} : vector<8x384xf32> to vector<8x128xf32>
    %31 = arith.addf %29, %30 : vector<8x128xf32>
    %32 = arith.negf %31 : vector<8x128xf32>
    %33 = math.exp %32 : vector<8x128xf32>
    %cst_25 = arith.constant 1.000000e+00 : f32
    %34 = vector.broadcast %cst_25 : f32 to vector<8x128xf32>
    %35 = arith.addf %34, %33 : vector<8x128xf32>
    %36 = arith.divf %34, %35 : vector<8x128xf32>
    %37 = vector.extract_strided_slice %16 {offsets = [0, 256], sizes = [8, 128], strides = [1, 1]} : vector<8x384xf32> to vector<8x128xf32>
    %38 = vector.extract_strided_slice %20 {offsets = [0, 256], sizes = [8, 128], strides = [1, 1]} : vector<8x384xf32> to vector<8x128xf32>
    %39 = arith.mulf %28, %38 : vector<8x128xf32>
    %40 = arith.addf %37, %39 : vector<8x128xf32>
    %41 = math.tanh %40 : vector<8x128xf32>
    %cst_26 = arith.constant 1.000000e+00 : f32
    %42 = vector.broadcast %cst_26 : f32 to vector<8x128xf32>
    %43 = arith.subf %42, %36 : vector<8x128xf32>
    %44 = arith.mulf %43, %41 : vector<8x128xf32>
    %45 = arith.mulf %36, %14 : vector<8x128xf32>
    %46 = arith.addf %44, %45 : vector<8x128xf32>
    %c0_27 = arith.constant 0 : index
    %c0_28 = arith.constant 0 : index
    %47 = vector.load %arg7[%c0_27, %c0_28] : memref<128x384xf32, #tpu.memory_space<vmem>>, vector<128x384xf32>
    %cst_29 = arith.constant dense<0.000000e+00> : vector<8x384xf32>
    %48 = tpu.matmul %46, %47, %cst_29 {dimension_numbers = #tpu.dot_dimension_numbers<[1], [0], [0], [1], [0, 0, 1, 1], [], []>} : vector<8x128xf32>, vector<128x384xf32>, vector<8x384xf32> -> vector<8x384xf32>
    %49 = vector.broadcast %12 : vector<1x384xf32> to vector<8x384xf32>
    %50 = arith.addf %48, %49 : vector<8x384xf32>
    %c0_30 = arith.constant 0 : index
    %c0_31 = arith.constant 0 : index
    %51 = vector.load %arg8[%c0_30, %c0_31] : memref<128x384xf32, #tpu.memory_space<vmem>>, vector<128x384xf32>
    %cst_32 = arith.constant dense<0.000000e+00> : vector<8x384xf32>
    %52 = tpu.matmul %15, %51, %cst_32 {dimension_numbers = #tpu.dot_dimension_numbers<[1], [0], [0], [1], [0, 0, 1, 1], [], []>} : vector<8x128xf32>, vector<128x384xf32>, vector<8x384xf32> -> vector<8x384xf32>
    %53 = vector.broadcast %13 : vector<1x384xf32> to vector<8x384xf32>
    %54 = arith.addf %52, %53 : vector<8x384xf32>
    %55 = vector.extract_strided_slice %50 {offsets = [0, 0], sizes = [8, 128], strides = [1, 1]} : vector<8x384xf32> to vector<8x128xf32>
    %56 = vector.extract_strided_slice %54 {offsets = [0, 0], sizes = [8, 128], strides = [1, 1]} : vector<8x384xf32> to vector<8x128xf32>
    %57 = arith.addf %55, %56 : vector<8x128xf32>
    %58 = arith.negf %57 : vector<8x128xf32>
    %59 = math.exp %58 : vector<8x128xf32>
    %cst_33 = arith.constant 1.000000e+00 : f32
    %60 = vector.broadcast %cst_33 : f32 to vector<8x128xf32>
    %61 = arith.addf %60, %59 : vector<8x128xf32>
    %62 = arith.divf %60, %61 : vector<8x128xf32>
    %63 = vector.extract_strided_slice %50 {offsets = [0, 128], sizes = [8, 128], strides = [1, 1]} : vector<8x384xf32> to vector<8x128xf32>
    %64 = vector.extract_strided_slice %54 {offsets = [0, 128], sizes = [8, 128], strides = [1, 1]} : vector<8x384xf32> to vector<8x128xf32>
    %65 = arith.addf %63, %64 : vector<8x128xf32>
    %66 = arith.negf %65 : vector<8x128xf32>
    %67 = math.exp %66 : vector<8x128xf32>
    %cst_34 = arith.constant 1.000000e+00 : f32
    %68 = vector.broadcast %cst_34 : f32 to vector<8x128xf32>
    %69 = arith.addf %68, %67 : vector<8x128xf32>
    %70 = arith.divf %68, %69 : vector<8x128xf32>
    %71 = vector.extract_strided_slice %50 {offsets = [0, 256], sizes = [8, 128], strides = [1, 1]} : vector<8x384xf32> to vector<8x128xf32>
    %72 = vector.extract_strided_slice %54 {offsets = [0, 256], sizes = [8, 128], strides = [1, 1]} : vector<8x384xf32> to vector<8x128xf32>
    %73 = arith.mulf %62, %72 : vector<8x128xf32>
    %74 = arith.addf %71, %73 : vector<8x128xf32>
    %75 = math.tanh %74 : vector<8x128xf32>
    %cst_35 = arith.constant 1.000000e+00 : f32
    %76 = vector.broadcast %cst_35 : f32 to vector<8x128xf32>
    %77 = arith.subf %76, %70 : vector<8x128xf32>
    %78 = arith.mulf %77, %75 : vector<8x128xf32>
    %79 = arith.mulf %70, %15 : vector<8x128xf32>
    %80 = arith.addf %78, %79 : vector<8x128xf32>
    %c8 = arith.constant 8 : index
    %c0_36 = arith.constant 0 : index
    %81 = vector.load %arg12[%c8, %c0_36] : memref<64x384xf32, #tpu.memory_space<vmem>>, vector<8x384xf32>
    %c0_37 = arith.constant 0 : index
    %c0_38 = arith.constant 0 : index
    %82 = vector.load %arg4[%c0_37, %c0_38] : memref<128x384xf32, #tpu.memory_space<vmem>>, vector<128x384xf32>
    %cst_39 = arith.constant dense<0.000000e+00> : vector<8x384xf32>
    %83 = tpu.matmul %46, %82, %cst_39 {dimension_numbers = #tpu.dot_dimension_numbers<[1], [0], [0], [1], [0, 0, 1, 1], [], []>} : vector<8x128xf32>, vector<128x384xf32>, vector<8x384xf32> -> vector<8x384xf32>
    %84 = vector.broadcast %11 : vector<1x384xf32> to vector<8x384xf32>
    %85 = arith.addf %83, %84 : vector<8x384xf32>
    %86 = vector.extract_strided_slice %81 {offsets = [0, 0], sizes = [8, 128], strides = [1, 1]} : vector<8x384xf32> to vector<8x128xf32>
    %87 = vector.extract_strided_slice %85 {offsets = [0, 0], sizes = [8, 128], strides = [1, 1]} : vector<8x384xf32> to vector<8x128xf32>
    %88 = arith.addf %86, %87 : vector<8x128xf32>
    %89 = arith.negf %88 : vector<8x128xf32>
    %90 = math.exp %89 : vector<8x128xf32>
    %cst_40 = arith.constant 1.000000e+00 : f32
    %91 = vector.broadcast %cst_40 : f32 to vector<8x128xf32>
    %92 = arith.addf %91, %90 : vector<8x128xf32>
    %93 = arith.divf %91, %92 : vector<8x128xf32>
    %94 = vector.extract_strided_slice %81 {offsets = [0, 128], sizes = [8, 128], strides = [1, 1]} : vector<8x384xf32> to vector<8x128xf32>
    %95 = vector.extract_strided_slice %85 {offsets = [0, 128], sizes = [8, 128], strides = [1, 1]} : vector<8x384xf32> to vector<8x128xf32>
    %96 = arith.addf %94, %95 : vector<8x128xf32>
    %97 = arith.negf %96 : vector<8x128xf32>
    %98 = math.exp %97 : vector<8x128xf32>
    %cst_41 = arith.constant 1.000000e+00 : f32
    %99 = vector.broadcast %cst_41 : f32 to vector<8x128xf32>
    %100 = arith.addf %99, %98 : vector<8x128xf32>
    %101 = arith.divf %99, %100 : vector<8x128xf32>
    %102 = vector.extract_strided_slice %81 {offsets = [0, 256], sizes = [8, 128], strides = [1, 1]} : vector<8x384xf32> to vector<8x128xf32>
    %103 = vector.extract_strided_slice %85 {offsets = [0, 256], sizes = [8, 128], strides = [1, 1]} : vector<8x384xf32> to vector<8x128xf32>
    %104 = arith.mulf %93, %103 : vector<8x128xf32>
    %105 = arith.addf %102, %104 : vector<8x128xf32>
    %106 = math.tanh %105 : vector<8x128xf32>
    %cst_42 = arith.constant 1.000000e+00 : f32
    %107 = vector.broadcast %cst_42 : f32 to vector<8x128xf32>
    %108 = arith.subf %107, %101 : vector<8x128xf32>
    %109 = arith.mulf %108, %106 : vector<8x128xf32>
    %110 = arith.mulf %101, %46 : vector<8x128xf32>
    %111 = arith.addf %109, %110 : vector<8x128xf32>
    %c0_43 = arith.constant 0 : index
    %c0_44 = arith.constant 0 : index
    %112 = vector.load %arg7[%c0_43, %c0_44] : memref<128x384xf32, #tpu.memory_space<vmem>>, vector<128x384xf32>
    %cst_45 = arith.constant dense<0.000000e+00> : vector<8x384xf32>
    %113 = tpu.matmul %111, %112, %cst_45 {dimension_numbers = #tpu.dot_dimension_numbers<[1], [0], [0], [1], [0, 0, 1, 1], [], []>} : vector<8x128xf32>, vector<128x384xf32>, vector<8x384xf32> -> vector<8x384xf32>
    %114 = vector.broadcast %12 : vector<1x384xf32> to vector<8x384xf32>
    %115 = arith.addf %113, %114 : vector<8x384xf32>
    %c0_46 = arith.constant 0 : index
    %c0_47 = arith.constant 0 : index
    %116 = vector.load %arg8[%c0_46, %c0_47] : memref<128x384xf32, #tpu.memory_space<vmem>>, vector<128x384xf32>
    %cst_48 = arith.constant dense<0.000000e+00> : vector<8x384xf32>
    %117 = tpu.matmul %80, %116, %cst_48 {dimension_numbers = #tpu.dot_dimension_numbers<[1], [0], [0], [1], [0, 0, 1, 1], [], []>} : vector<8x128xf32>, vector<128x384xf32>, vector<8x384xf32> -> vector<8x384xf32>
    %118 = vector.broadcast %13 : vector<1x384xf32> to vector<8x384xf32>
    %119 = arith.addf %117, %118 : vector<8x384xf32>
    %120 = vector.extract_strided_slice %115 {offsets = [0, 0], sizes = [8, 128], strides = [1, 1]} : vector<8x384xf32> to vector<8x128xf32>
    %121 = vector.extract_strided_slice %119 {offsets = [0, 0], sizes = [8, 128], strides = [1, 1]} : vector<8x384xf32> to vector<8x128xf32>
    %122 = arith.addf %120, %121 : vector<8x128xf32>
    %123 = arith.negf %122 : vector<8x128xf32>
    %124 = math.exp %123 : vector<8x128xf32>
    %cst_49 = arith.constant 1.000000e+00 : f32
    %125 = vector.broadcast %cst_49 : f32 to vector<8x128xf32>
    %126 = arith.addf %125, %124 : vector<8x128xf32>
    %127 = arith.divf %125, %126 : vector<8x128xf32>
    %128 = vector.extract_strided_slice %115 {offsets = [0, 128], sizes = [8, 128], strides = [1, 1]} : vector<8x384xf32> to vector<8x128xf32>
    %129 = vector.extract_strided_slice %119 {offsets = [0, 128], sizes = [8, 128], strides = [1, 1]} : vector<8x384xf32> to vector<8x128xf32>
    %130 = arith.addf %128, %129 : vector<8x128xf32>
    %131 = arith.negf %130 : vector<8x128xf32>
    %132 = math.exp %131 : vector<8x128xf32>
    %cst_50 = arith.constant 1.000000e+00 : f32
    %133 = vector.broadcast %cst_50 : f32 to vector<8x128xf32>
    %134 = arith.addf %133, %132 : vector<8x128xf32>
    %135 = arith.divf %133, %134 : vector<8x128xf32>
    %136 = vector.extract_strided_slice %115 {offsets = [0, 256], sizes = [8, 128], strides = [1, 1]} : vector<8x384xf32> to vector<8x128xf32>
    %137 = vector.extract_strided_slice %119 {offsets = [0, 256], sizes = [8, 128], strides = [1, 1]} : vector<8x384xf32> to vector<8x128xf32>
    %138 = arith.mulf %127, %137 : vector<8x128xf32>
    %139 = arith.addf %136, %138 : vector<8x128xf32>
    %140 = math.tanh %139 : vector<8x128xf32>
    %cst_51 = arith.constant 1.000000e+00 : f32
    %141 = vector.broadcast %cst_51 : f32 to vector<8x128xf32>
    %142 = arith.subf %141, %135 : vector<8x128xf32>
    %143 = arith.mulf %142, %140 : vector<8x128xf32>
    %144 = arith.mulf %135, %80 : vector<8x128xf32>
    %145 = arith.addf %143, %144 : vector<8x128xf32>
    %c16 = arith.constant 16 : index
    %c0_52 = arith.constant 0 : index
    %146 = vector.load %arg12[%c16, %c0_52] : memref<64x384xf32, #tpu.memory_space<vmem>>, vector<8x384xf32>
    %c0_53 = arith.constant 0 : index
    %c0_54 = arith.constant 0 : index
    %147 = vector.load %arg4[%c0_53, %c0_54] : memref<128x384xf32, #tpu.memory_space<vmem>>, vector<128x384xf32>
    %cst_55 = arith.constant dense<0.000000e+00> : vector<8x384xf32>
    %148 = tpu.matmul %111, %147, %cst_55 {dimension_numbers = #tpu.dot_dimension_numbers<[1], [0], [0], [1], [0, 0, 1, 1], [], []>} : vector<8x128xf32>, vector<128x384xf32>, vector<8x384xf32> -> vector<8x384xf32>
    %149 = vector.broadcast %11 : vector<1x384xf32> to vector<8x384xf32>
    %150 = arith.addf %148, %149 : vector<8x384xf32>
    %151 = vector.extract_strided_slice %146 {offsets = [0, 0], sizes = [8, 128], strides = [1, 1]} : vector<8x384xf32> to vector<8x128xf32>
    %152 = vector.extract_strided_slice %150 {offsets = [0, 0], sizes = [8, 128], strides = [1, 1]} : vector<8x384xf32> to vector<8x128xf32>
    %153 = arith.addf %151, %152 : vector<8x128xf32>
    %154 = arith.negf %153 : vector<8x128xf32>
    %155 = math.exp %154 : vector<8x128xf32>
    %cst_56 = arith.constant 1.000000e+00 : f32
    %156 = vector.broadcast %cst_56 : f32 to vector<8x128xf32>
    %157 = arith.addf %156, %155 : vector<8x128xf32>
    %158 = arith.divf %156, %157 : vector<8x128xf32>
    %159 = vector.extract_strided_slice %146 {offsets = [0, 128], sizes = [8, 128], strides = [1, 1]} : vector<8x384xf32> to vector<8x128xf32>
    %160 = vector.extract_strided_slice %150 {offsets = [0, 128], sizes = [8, 128], strides = [1, 1]} : vector<8x384xf32> to vector<8x128xf32>
    %161 = arith.addf %159, %160 : vector<8x128xf32>
    %162 = arith.negf %161 : vector<8x128xf32>
    %163 = math.exp %162 : vector<8x128xf32>
    %cst_57 = arith.constant 1.000000e+00 : f32
    %164 = vector.broadcast %cst_57 : f32 to vector<8x128xf32>
    %165 = arith.addf %164, %163 : vector<8x128xf32>
    %166 = arith.divf %164, %165 : vector<8x128xf32>
    %167 = vector.extract_strided_slice %146 {offsets = [0, 256], sizes = [8, 128], strides = [1, 1]} : vector<8x384xf32> to vector<8x128xf32>
    %168 = vector.extract_strided_slice %150 {offsets = [0, 256], sizes = [8, 128], strides = [1, 1]} : vector<8x384xf32> to vector<8x128xf32>
    %169 = arith.mulf %158, %168 : vector<8x128xf32>
    %170 = arith.addf %167, %169 : vector<8x128xf32>
    %171 = math.tanh %170 : vector<8x128xf32>
    %cst_58 = arith.constant 1.000000e+00 : f32
    %172 = vector.broadcast %cst_58 : f32 to vector<8x128xf32>
    %173 = arith.subf %172, %166 : vector<8x128xf32>
    %174 = arith.mulf %173, %171 : vector<8x128xf32>
    %175 = arith.mulf %166, %111 : vector<8x128xf32>
    %176 = arith.addf %174, %175 : vector<8x128xf32>
    %c0_59 = arith.constant 0 : index
    %c0_60 = arith.constant 0 : index
    %177 = vector.load %arg7[%c0_59, %c0_60] : memref<128x384xf32, #tpu.memory_space<vmem>>, vector<128x384xf32>
    %cst_61 = arith.constant dense<0.000000e+00> : vector<8x384xf32>
    %178 = tpu.matmul %176, %177, %cst_61 {dimension_numbers = #tpu.dot_dimension_numbers<[1], [0], [0], [1], [0, 0, 1, 1], [], []>} : vector<8x128xf32>, vector<128x384xf32>, vector<8x384xf32> -> vector<8x384xf32>
    %179 = vector.broadcast %12 : vector<1x384xf32> to vector<8x384xf32>
    %180 = arith.addf %178, %179 : vector<8x384xf32>
    %c0_62 = arith.constant 0 : index
    %c0_63 = arith.constant 0 : index
    %181 = vector.load %arg8[%c0_62, %c0_63] : memref<128x384xf32, #tpu.memory_space<vmem>>, vector<128x384xf32>
    %cst_64 = arith.constant dense<0.000000e+00> : vector<8x384xf32>
    %182 = tpu.matmul %145, %181, %cst_64 {dimension_numbers = #tpu.dot_dimension_numbers<[1], [0], [0], [1], [0, 0, 1, 1], [], []>} : vector<8x128xf32>, vector<128x384xf32>, vector<8x384xf32> -> vector<8x384xf32>
    %183 = vector.broadcast %13 : vector<1x384xf32> to vector<8x384xf32>
    %184 = arith.addf %182, %183 : vector<8x384xf32>
    %185 = vector.extract_strided_slice %180 {offsets = [0, 0], sizes = [8, 128], strides = [1, 1]} : vector<8x384xf32> to vector<8x128xf32>
    %186 = vector.extract_strided_slice %184 {offsets = [0, 0], sizes = [8, 128], strides = [1, 1]} : vector<8x384xf32> to vector<8x128xf32>
    %187 = arith.addf %185, %186 : vector<8x128xf32>
    %188 = arith.negf %187 : vector<8x128xf32>
    %189 = math.exp %188 : vector<8x128xf32>
    %cst_65 = arith.constant 1.000000e+00 : f32
    %190 = vector.broadcast %cst_65 : f32 to vector<8x128xf32>
    %191 = arith.addf %190, %189 : vector<8x128xf32>
    %192 = arith.divf %190, %191 : vector<8x128xf32>
    %193 = vector.extract_strided_slice %180 {offsets = [0, 128], sizes = [8, 128], strides = [1, 1]} : vector<8x384xf32> to vector<8x128xf32>
    %194 = vector.extract_strided_slice %184 {offsets = [0, 128], sizes = [8, 128], strides = [1, 1]} : vector<8x384xf32> to vector<8x128xf32>
    %195 = arith.addf %193, %194 : vector<8x128xf32>
    %196 = arith.negf %195 : vector<8x128xf32>
    %197 = math.exp %196 : vector<8x128xf32>
    %cst_66 = arith.constant 1.000000e+00 : f32
    %198 = vector.broadcast %cst_66 : f32 to vector<8x128xf32>
    %199 = arith.addf %198, %197 : vector<8x128xf32>
    %200 = arith.divf %198, %199 : vector<8x128xf32>
    %201 = vector.extract_strided_slice %180 {offsets = [0, 256], sizes = [8, 128], strides = [1, 1]} : vector<8x384xf32> to vector<8x128xf32>
    %202 = vector.extract_strided_slice %184 {offsets = [0, 256], sizes = [8, 128], strides = [1, 1]} : vector<8x384xf32> to vector<8x128xf32>
    %203 = arith.mulf %192, %202 : vector<8x128xf32>
    %204 = arith.addf %201, %203 : vector<8x128xf32>
    %205 = math.tanh %204 : vector<8x128xf32>
    %cst_67 = arith.constant 1.000000e+00 : f32
    %206 = vector.broadcast %cst_67 : f32 to vector<8x128xf32>
    %207 = arith.subf %206, %200 : vector<8x128xf32>
    %208 = arith.mulf %207, %205 : vector<8x128xf32>
    %209 = arith.mulf %200, %145 : vector<8x128xf32>
    %210 = arith.addf %208, %209 : vector<8x128xf32>
    %c24 = arith.constant 24 : index
    %c0_68 = arith.constant 0 : index
    %211 = vector.load %arg12[%c24, %c0_68] : memref<64x384xf32, #tpu.memory_space<vmem>>, vector<8x384xf32>
    %c0_69 = arith.constant 0 : index
    %c0_70 = arith.constant 0 : index
    %212 = vector.load %arg4[%c0_69, %c0_70] : memref<128x384xf32, #tpu.memory_space<vmem>>, vector<128x384xf32>
    %cst_71 = arith.constant dense<0.000000e+00> : vector<8x384xf32>
    %213 = tpu.matmul %176, %212, %cst_71 {dimension_numbers = #tpu.dot_dimension_numbers<[1], [0], [0], [1], [0, 0, 1, 1], [], []>} : vector<8x128xf32>, vector<128x384xf32>, vector<8x384xf32> -> vector<8x384xf32>
    %214 = vector.broadcast %11 : vector<1x384xf32> to vector<8x384xf32>
    %215 = arith.addf %213, %214 : vector<8x384xf32>
    %216 = vector.extract_strided_slice %211 {offsets = [0, 0], sizes = [8, 128], strides = [1, 1]} : vector<8x384xf32> to vector<8x128xf32>
    %217 = vector.extract_strided_slice %215 {offsets = [0, 0], sizes = [8, 128], strides = [1, 1]} : vector<8x384xf32> to vector<8x128xf32>
    %218 = arith.addf %216, %217 : vector<8x128xf32>
    %219 = arith.negf %218 : vector<8x128xf32>
    %220 = math.exp %219 : vector<8x128xf32>
    %cst_72 = arith.constant 1.000000e+00 : f32
    %221 = vector.broadcast %cst_72 : f32 to vector<8x128xf32>
    %222 = arith.addf %221, %220 : vector<8x128xf32>
    %223 = arith.divf %221, %222 : vector<8x128xf32>
    %224 = vector.extract_strided_slice %211 {offsets = [0, 128], sizes = [8, 128], strides = [1, 1]} : vector<8x384xf32> to vector<8x128xf32>
    %225 = vector.extract_strided_slice %215 {offsets = [0, 128], sizes = [8, 128], strides = [1, 1]} : vector<8x384xf32> to vector<8x128xf32>
    %226 = arith.addf %224, %225 : vector<8x128xf32>
    %227 = arith.negf %226 : vector<8x128xf32>
    %228 = math.exp %227 : vector<8x128xf32>
    %cst_73 = arith.constant 1.000000e+00 : f32
    %229 = vector.broadcast %cst_73 : f32 to vector<8x128xf32>
    %230 = arith.addf %229, %228 : vector<8x128xf32>
    %231 = arith.divf %229, %230 : vector<8x128xf32>
    %232 = vector.extract_strided_slice %211 {offsets = [0, 256], sizes = [8, 128], strides = [1, 1]} : vector<8x384xf32> to vector<8x128xf32>
    %233 = vector.extract_strided_slice %215 {offsets = [0, 256], sizes = [8, 128], strides = [1, 1]} : vector<8x384xf32> to vector<8x128xf32>
    %234 = arith.mulf %223, %233 : vector<8x128xf32>
    %235 = arith.addf %232, %234 : vector<8x128xf32>
    %236 = math.tanh %235 : vector<8x128xf32>
    %cst_74 = arith.constant 1.000000e+00 : f32
    %237 = vector.broadcast %cst_74 : f32 to vector<8x128xf32>
    %238 = arith.subf %237, %231 : vector<8x128xf32>
    %239 = arith.mulf %238, %236 : vector<8x128xf32>
    %240 = arith.mulf %231, %176 : vector<8x128xf32>
    %241 = arith.addf %239, %240 : vector<8x128xf32>
    %c0_75 = arith.constant 0 : index
    %c0_76 = arith.constant 0 : index
    %242 = vector.load %arg7[%c0_75, %c0_76] : memref<128x384xf32, #tpu.memory_space<vmem>>, vector<128x384xf32>
    %cst_77 = arith.constant dense<0.000000e+00> : vector<8x384xf32>
    %243 = tpu.matmul %241, %242, %cst_77 {dimension_numbers = #tpu.dot_dimension_numbers<[1], [0], [0], [1], [0, 0, 1, 1], [], []>} : vector<8x128xf32>, vector<128x384xf32>, vector<8x384xf32> -> vector<8x384xf32>
    %244 = vector.broadcast %12 : vector<1x384xf32> to vector<8x384xf32>
    %245 = arith.addf %243, %244 : vector<8x384xf32>
    %c0_78 = arith.constant 0 : index
    %c0_79 = arith.constant 0 : index
    %246 = vector.load %arg8[%c0_78, %c0_79] : memref<128x384xf32, #tpu.memory_space<vmem>>, vector<128x384xf32>
    %cst_80 = arith.constant dense<0.000000e+00> : vector<8x384xf32>
    %247 = tpu.matmul %210, %246, %cst_80 {dimension_numbers = #tpu.dot_dimension_numbers<[1], [0], [0], [1], [0, 0, 1, 1], [], []>} : vector<8x128xf32>, vector<128x384xf32>, vector<8x384xf32> -> vector<8x384xf32>
    %248 = vector.broadcast %13 : vector<1x384xf32> to vector<8x384xf32>
    %249 = arith.addf %247, %248 : vector<8x384xf32>
    %250 = vector.extract_strided_slice %245 {offsets = [0, 0], sizes = [8, 128], strides = [1, 1]} : vector<8x384xf32> to vector<8x128xf32>
    %251 = vector.extract_strided_slice %249 {offsets = [0, 0], sizes = [8, 128], strides = [1, 1]} : vector<8x384xf32> to vector<8x128xf32>
    %252 = arith.addf %250, %251 : vector<8x128xf32>
    %253 = arith.negf %252 : vector<8x128xf32>
    %254 = math.exp %253 : vector<8x128xf32>
    %cst_81 = arith.constant 1.000000e+00 : f32
    %255 = vector.broadcast %cst_81 : f32 to vector<8x128xf32>
    %256 = arith.addf %255, %254 : vector<8x128xf32>
    %257 = arith.divf %255, %256 : vector<8x128xf32>
    %258 = vector.extract_strided_slice %245 {offsets = [0, 128], sizes = [8, 128], strides = [1, 1]} : vector<8x384xf32> to vector<8x128xf32>
    %259 = vector.extract_strided_slice %249 {offsets = [0, 128], sizes = [8, 128], strides = [1, 1]} : vector<8x384xf32> to vector<8x128xf32>
    %260 = arith.addf %258, %259 : vector<8x128xf32>
    %261 = arith.negf %260 : vector<8x128xf32>
    %262 = math.exp %261 : vector<8x128xf32>
    %cst_82 = arith.constant 1.000000e+00 : f32
    %263 = vector.broadcast %cst_82 : f32 to vector<8x128xf32>
    %264 = arith.addf %263, %262 : vector<8x128xf32>
    %265 = arith.divf %263, %264 : vector<8x128xf32>
    %266 = vector.extract_strided_slice %245 {offsets = [0, 256], sizes = [8, 128], strides = [1, 1]} : vector<8x384xf32> to vector<8x128xf32>
    %267 = vector.extract_strided_slice %249 {offsets = [0, 256], sizes = [8, 128], strides = [1, 1]} : vector<8x384xf32> to vector<8x128xf32>
    %268 = arith.mulf %257, %267 : vector<8x128xf32>
    %269 = arith.addf %266, %268 : vector<8x128xf32>
    %270 = math.tanh %269 : vector<8x128xf32>
    %cst_83 = arith.constant 1.000000e+00 : f32
    %271 = vector.broadcast %cst_83 : f32 to vector<8x128xf32>
    %272 = arith.subf %271, %265 : vector<8x128xf32>
    %273 = arith.mulf %272, %270 : vector<8x128xf32>
    %274 = arith.mulf %265, %210 : vector<8x128xf32>
    %275 = arith.addf %273, %274 : vector<8x128xf32>
    %c32 = arith.constant 32 : index
    %c0_84 = arith.constant 0 : index
    %276 = vector.load %arg12[%c32, %c0_84] : memref<64x384xf32, #tpu.memory_space<vmem>>, vector<8x384xf32>
    %c0_85 = arith.constant 0 : index
    %c0_86 = arith.constant 0 : index
    %277 = vector.load %arg4[%c0_85, %c0_86] : memref<128x384xf32, #tpu.memory_space<vmem>>, vector<128x384xf32>
    %cst_87 = arith.constant dense<0.000000e+00> : vector<8x384xf32>
    %278 = tpu.matmul %241, %277, %cst_87 {dimension_numbers = #tpu.dot_dimension_numbers<[1], [0], [0], [1], [0, 0, 1, 1], [], []>} : vector<8x128xf32>, vector<128x384xf32>, vector<8x384xf32> -> vector<8x384xf32>
    %279 = vector.broadcast %11 : vector<1x384xf32> to vector<8x384xf32>
    %280 = arith.addf %278, %279 : vector<8x384xf32>
    %281 = vector.extract_strided_slice %276 {offsets = [0, 0], sizes = [8, 128], strides = [1, 1]} : vector<8x384xf32> to vector<8x128xf32>
    %282 = vector.extract_strided_slice %280 {offsets = [0, 0], sizes = [8, 128], strides = [1, 1]} : vector<8x384xf32> to vector<8x128xf32>
    %283 = arith.addf %281, %282 : vector<8x128xf32>
    %284 = arith.negf %283 : vector<8x128xf32>
    %285 = math.exp %284 : vector<8x128xf32>
    %cst_88 = arith.constant 1.000000e+00 : f32
    %286 = vector.broadcast %cst_88 : f32 to vector<8x128xf32>
    %287 = arith.addf %286, %285 : vector<8x128xf32>
    %288 = arith.divf %286, %287 : vector<8x128xf32>
    %289 = vector.extract_strided_slice %276 {offsets = [0, 128], sizes = [8, 128], strides = [1, 1]} : vector<8x384xf32> to vector<8x128xf32>
    %290 = vector.extract_strided_slice %280 {offsets = [0, 128], sizes = [8, 128], strides = [1, 1]} : vector<8x384xf32> to vector<8x128xf32>
    %291 = arith.addf %289, %290 : vector<8x128xf32>
    %292 = arith.negf %291 : vector<8x128xf32>
    %293 = math.exp %292 : vector<8x128xf32>
    %cst_89 = arith.constant 1.000000e+00 : f32
    %294 = vector.broadcast %cst_89 : f32 to vector<8x128xf32>
    %295 = arith.addf %294, %293 : vector<8x128xf32>
    %296 = arith.divf %294, %295 : vector<8x128xf32>
    %297 = vector.extract_strided_slice %276 {offsets = [0, 256], sizes = [8, 128], strides = [1, 1]} : vector<8x384xf32> to vector<8x128xf32>
    %298 = vector.extract_strided_slice %280 {offsets = [0, 256], sizes = [8, 128], strides = [1, 1]} : vector<8x384xf32> to vector<8x128xf32>
    %299 = arith.mulf %288, %298 : vector<8x128xf32>
    %300 = arith.addf %297, %299 : vector<8x128xf32>
    %301 = math.tanh %300 : vector<8x128xf32>
    %cst_90 = arith.constant 1.000000e+00 : f32
    %302 = vector.broadcast %cst_90 : f32 to vector<8x128xf32>
    %303 = arith.subf %302, %296 : vector<8x128xf32>
    %304 = arith.mulf %303, %301 : vector<8x128xf32>
    %305 = arith.mulf %296, %241 : vector<8x128xf32>
    %306 = arith.addf %304, %305 : vector<8x128xf32>
    %c0_91 = arith.constant 0 : index
    %c0_92 = arith.constant 0 : index
    %307 = vector.load %arg7[%c0_91, %c0_92] : memref<128x384xf32, #tpu.memory_space<vmem>>, vector<128x384xf32>
    %cst_93 = arith.constant dense<0.000000e+00> : vector<8x384xf32>
    %308 = tpu.matmul %306, %307, %cst_93 {dimension_numbers = #tpu.dot_dimension_numbers<[1], [0], [0], [1], [0, 0, 1, 1], [], []>} : vector<8x128xf32>, vector<128x384xf32>, vector<8x384xf32> -> vector<8x384xf32>
    %309 = vector.broadcast %12 : vector<1x384xf32> to vector<8x384xf32>
    %310 = arith.addf %308, %309 : vector<8x384xf32>
    %c0_94 = arith.constant 0 : index
    %c0_95 = arith.constant 0 : index
    %311 = vector.load %arg8[%c0_94, %c0_95] : memref<128x384xf32, #tpu.memory_space<vmem>>, vector<128x384xf32>
    %cst_96 = arith.constant dense<0.000000e+00> : vector<8x384xf32>
    %312 = tpu.matmul %275, %311, %cst_96 {dimension_numbers = #tpu.dot_dimension_numbers<[1], [0], [0], [1], [0, 0, 1, 1], [], []>} : vector<8x128xf32>, vector<128x384xf32>, vector<8x384xf32> -> vector<8x384xf32>
    %313 = vector.broadcast %13 : vector<1x384xf32> to vector<8x384xf32>
    %314 = arith.addf %312, %313 : vector<8x384xf32>
    %315 = vector.extract_strided_slice %310 {offsets = [0, 0], sizes = [8, 128], strides = [1, 1]} : vector<8x384xf32> to vector<8x128xf32>
    %316 = vector.extract_strided_slice %314 {offsets = [0, 0], sizes = [8, 128], strides = [1, 1]} : vector<8x384xf32> to vector<8x128xf32>
    %317 = arith.addf %315, %316 : vector<8x128xf32>
    %318 = arith.negf %317 : vector<8x128xf32>
    %319 = math.exp %318 : vector<8x128xf32>
    %cst_97 = arith.constant 1.000000e+00 : f32
    %320 = vector.broadcast %cst_97 : f32 to vector<8x128xf32>
    %321 = arith.addf %320, %319 : vector<8x128xf32>
    %322 = arith.divf %320, %321 : vector<8x128xf32>
    %323 = vector.extract_strided_slice %310 {offsets = [0, 128], sizes = [8, 128], strides = [1, 1]} : vector<8x384xf32> to vector<8x128xf32>
    %324 = vector.extract_strided_slice %314 {offsets = [0, 128], sizes = [8, 128], strides = [1, 1]} : vector<8x384xf32> to vector<8x128xf32>
    %325 = arith.addf %323, %324 : vector<8x128xf32>
    %326 = arith.negf %325 : vector<8x128xf32>
    %327 = math.exp %326 : vector<8x128xf32>
    %cst_98 = arith.constant 1.000000e+00 : f32
    %328 = vector.broadcast %cst_98 : f32 to vector<8x128xf32>
    %329 = arith.addf %328, %327 : vector<8x128xf32>
    %330 = arith.divf %328, %329 : vector<8x128xf32>
    %331 = vector.extract_strided_slice %310 {offsets = [0, 256], sizes = [8, 128], strides = [1, 1]} : vector<8x384xf32> to vector<8x128xf32>
    %332 = vector.extract_strided_slice %314 {offsets = [0, 256], sizes = [8, 128], strides = [1, 1]} : vector<8x384xf32> to vector<8x128xf32>
    %333 = arith.mulf %322, %332 : vector<8x128xf32>
    %334 = arith.addf %331, %333 : vector<8x128xf32>
    %335 = math.tanh %334 : vector<8x128xf32>
    %cst_99 = arith.constant 1.000000e+00 : f32
    %336 = vector.broadcast %cst_99 : f32 to vector<8x128xf32>
    %337 = arith.subf %336, %330 : vector<8x128xf32>
    %338 = arith.mulf %337, %335 : vector<8x128xf32>
    %339 = arith.mulf %330, %275 : vector<8x128xf32>
    %340 = arith.addf %338, %339 : vector<8x128xf32>
    %c40 = arith.constant 40 : index
    %c0_100 = arith.constant 0 : index
    %341 = vector.load %arg12[%c40, %c0_100] : memref<64x384xf32, #tpu.memory_space<vmem>>, vector<8x384xf32>
    %c0_101 = arith.constant 0 : index
    %c0_102 = arith.constant 0 : index
    %342 = vector.load %arg4[%c0_101, %c0_102] : memref<128x384xf32, #tpu.memory_space<vmem>>, vector<128x384xf32>
    %cst_103 = arith.constant dense<0.000000e+00> : vector<8x384xf32>
    %343 = tpu.matmul %306, %342, %cst_103 {dimension_numbers = #tpu.dot_dimension_numbers<[1], [0], [0], [1], [0, 0, 1, 1], [], []>} : vector<8x128xf32>, vector<128x384xf32>, vector<8x384xf32> -> vector<8x384xf32>
    %344 = vector.broadcast %11 : vector<1x384xf32> to vector<8x384xf32>
    %345 = arith.addf %343, %344 : vector<8x384xf32>
    %346 = vector.extract_strided_slice %341 {offsets = [0, 0], sizes = [8, 128], strides = [1, 1]} : vector<8x384xf32> to vector<8x128xf32>
    %347 = vector.extract_strided_slice %345 {offsets = [0, 0], sizes = [8, 128], strides = [1, 1]} : vector<8x384xf32> to vector<8x128xf32>
    %348 = arith.addf %346, %347 : vector<8x128xf32>
    %349 = arith.negf %348 : vector<8x128xf32>
    %350 = math.exp %349 : vector<8x128xf32>
    %cst_104 = arith.constant 1.000000e+00 : f32
    %351 = vector.broadcast %cst_104 : f32 to vector<8x128xf32>
    %352 = arith.addf %351, %350 : vector<8x128xf32>
    %353 = arith.divf %351, %352 : vector<8x128xf32>
    %354 = vector.extract_strided_slice %341 {offsets = [0, 128], sizes = [8, 128], strides = [1, 1]} : vector<8x384xf32> to vector<8x128xf32>
    %355 = vector.extract_strided_slice %345 {offsets = [0, 128], sizes = [8, 128], strides = [1, 1]} : vector<8x384xf32> to vector<8x128xf32>
    %356 = arith.addf %354, %355 : vector<8x128xf32>
    %357 = arith.negf %356 : vector<8x128xf32>
    %358 = math.exp %357 : vector<8x128xf32>
    %cst_105 = arith.constant 1.000000e+00 : f32
    %359 = vector.broadcast %cst_105 : f32 to vector<8x128xf32>
    %360 = arith.addf %359, %358 : vector<8x128xf32>
    %361 = arith.divf %359, %360 : vector<8x128xf32>
    %362 = vector.extract_strided_slice %341 {offsets = [0, 256], sizes = [8, 128], strides = [1, 1]} : vector<8x384xf32> to vector<8x128xf32>
    %363 = vector.extract_strided_slice %345 {offsets = [0, 256], sizes = [8, 128], strides = [1, 1]} : vector<8x384xf32> to vector<8x128xf32>
    %364 = arith.mulf %353, %363 : vector<8x128xf32>
    %365 = arith.addf %362, %364 : vector<8x128xf32>
    %366 = math.tanh %365 : vector<8x128xf32>
    %cst_106 = arith.constant 1.000000e+00 : f32
    %367 = vector.broadcast %cst_106 : f32 to vector<8x128xf32>
    %368 = arith.subf %367, %361 : vector<8x128xf32>
    %369 = arith.mulf %368, %366 : vector<8x128xf32>
    %370 = arith.mulf %361, %306 : vector<8x128xf32>
    %371 = arith.addf %369, %370 : vector<8x128xf32>
    %c0_107 = arith.constant 0 : index
    %c0_108 = arith.constant 0 : index
    %372 = vector.load %arg7[%c0_107, %c0_108] : memref<128x384xf32, #tpu.memory_space<vmem>>, vector<128x384xf32>
    %cst_109 = arith.constant dense<0.000000e+00> : vector<8x384xf32>
    %373 = tpu.matmul %371, %372, %cst_109 {dimension_numbers = #tpu.dot_dimension_numbers<[1], [0], [0], [1], [0, 0, 1, 1], [], []>} : vector<8x128xf32>, vector<128x384xf32>, vector<8x384xf32> -> vector<8x384xf32>
    %374 = vector.broadcast %12 : vector<1x384xf32> to vector<8x384xf32>
    %375 = arith.addf %373, %374 : vector<8x384xf32>
    %c0_110 = arith.constant 0 : index
    %c0_111 = arith.constant 0 : index
    %376 = vector.load %arg8[%c0_110, %c0_111] : memref<128x384xf32, #tpu.memory_space<vmem>>, vector<128x384xf32>
    %cst_112 = arith.constant dense<0.000000e+00> : vector<8x384xf32>
    %377 = tpu.matmul %340, %376, %cst_112 {dimension_numbers = #tpu.dot_dimension_numbers<[1], [0], [0], [1], [0, 0, 1, 1], [], []>} : vector<8x128xf32>, vector<128x384xf32>, vector<8x384xf32> -> vector<8x384xf32>
    %378 = vector.broadcast %13 : vector<1x384xf32> to vector<8x384xf32>
    %379 = arith.addf %377, %378 : vector<8x384xf32>
    %380 = vector.extract_strided_slice %375 {offsets = [0, 0], sizes = [8, 128], strides = [1, 1]} : vector<8x384xf32> to vector<8x128xf32>
    %381 = vector.extract_strided_slice %379 {offsets = [0, 0], sizes = [8, 128], strides = [1, 1]} : vector<8x384xf32> to vector<8x128xf32>
    %382 = arith.addf %380, %381 : vector<8x128xf32>
    %383 = arith.negf %382 : vector<8x128xf32>
    %384 = math.exp %383 : vector<8x128xf32>
    %cst_113 = arith.constant 1.000000e+00 : f32
    %385 = vector.broadcast %cst_113 : f32 to vector<8x128xf32>
    %386 = arith.addf %385, %384 : vector<8x128xf32>
    %387 = arith.divf %385, %386 : vector<8x128xf32>
    %388 = vector.extract_strided_slice %375 {offsets = [0, 128], sizes = [8, 128], strides = [1, 1]} : vector<8x384xf32> to vector<8x128xf32>
    %389 = vector.extract_strided_slice %379 {offsets = [0, 128], sizes = [8, 128], strides = [1, 1]} : vector<8x384xf32> to vector<8x128xf32>
    %390 = arith.addf %388, %389 : vector<8x128xf32>
    %391 = arith.negf %390 : vector<8x128xf32>
    %392 = math.exp %391 : vector<8x128xf32>
    %cst_114 = arith.constant 1.000000e+00 : f32
    %393 = vector.broadcast %cst_114 : f32 to vector<8x128xf32>
    %394 = arith.addf %393, %392 : vector<8x128xf32>
    %395 = arith.divf %393, %394 : vector<8x128xf32>
    %396 = vector.extract_strided_slice %375 {offsets = [0, 256], sizes = [8, 128], strides = [1, 1]} : vector<8x384xf32> to vector<8x128xf32>
    %397 = vector.extract_strided_slice %379 {offsets = [0, 256], sizes = [8, 128], strides = [1, 1]} : vector<8x384xf32> to vector<8x128xf32>
    %398 = arith.mulf %387, %397 : vector<8x128xf32>
    %399 = arith.addf %396, %398 : vector<8x128xf32>
    %400 = math.tanh %399 : vector<8x128xf32>
    %cst_115 = arith.constant 1.000000e+00 : f32
    %401 = vector.broadcast %cst_115 : f32 to vector<8x128xf32>
    %402 = arith.subf %401, %395 : vector<8x128xf32>
    %403 = arith.mulf %402, %400 : vector<8x128xf32>
    %404 = arith.mulf %395, %340 : vector<8x128xf32>
    %405 = arith.addf %403, %404 : vector<8x128xf32>
    %c48 = arith.constant 48 : index
    %c0_116 = arith.constant 0 : index
    %406 = vector.load %arg12[%c48, %c0_116] : memref<64x384xf32, #tpu.memory_space<vmem>>, vector<8x384xf32>
    %c0_117 = arith.constant 0 : index
    %c0_118 = arith.constant 0 : index
    %407 = vector.load %arg4[%c0_117, %c0_118] : memref<128x384xf32, #tpu.memory_space<vmem>>, vector<128x384xf32>
    %cst_119 = arith.constant dense<0.000000e+00> : vector<8x384xf32>
    %408 = tpu.matmul %371, %407, %cst_119 {dimension_numbers = #tpu.dot_dimension_numbers<[1], [0], [0], [1], [0, 0, 1, 1], [], []>} : vector<8x128xf32>, vector<128x384xf32>, vector<8x384xf32> -> vector<8x384xf32>
    %409 = vector.broadcast %11 : vector<1x384xf32> to vector<8x384xf32>
    %410 = arith.addf %408, %409 : vector<8x384xf32>
    %411 = vector.extract_strided_slice %406 {offsets = [0, 0], sizes = [8, 128], strides = [1, 1]} : vector<8x384xf32> to vector<8x128xf32>
    %412 = vector.extract_strided_slice %410 {offsets = [0, 0], sizes = [8, 128], strides = [1, 1]} : vector<8x384xf32> to vector<8x128xf32>
    %413 = arith.addf %411, %412 : vector<8x128xf32>
    %414 = arith.negf %413 : vector<8x128xf32>
    %415 = math.exp %414 : vector<8x128xf32>
    %cst_120 = arith.constant 1.000000e+00 : f32
    %416 = vector.broadcast %cst_120 : f32 to vector<8x128xf32>
    %417 = arith.addf %416, %415 : vector<8x128xf32>
    %418 = arith.divf %416, %417 : vector<8x128xf32>
    %419 = vector.extract_strided_slice %406 {offsets = [0, 128], sizes = [8, 128], strides = [1, 1]} : vector<8x384xf32> to vector<8x128xf32>
    %420 = vector.extract_strided_slice %410 {offsets = [0, 128], sizes = [8, 128], strides = [1, 1]} : vector<8x384xf32> to vector<8x128xf32>
    %421 = arith.addf %419, %420 : vector<8x128xf32>
    %422 = arith.negf %421 : vector<8x128xf32>
    %423 = math.exp %422 : vector<8x128xf32>
    %cst_121 = arith.constant 1.000000e+00 : f32
    %424 = vector.broadcast %cst_121 : f32 to vector<8x128xf32>
    %425 = arith.addf %424, %423 : vector<8x128xf32>
    %426 = arith.divf %424, %425 : vector<8x128xf32>
    %427 = vector.extract_strided_slice %406 {offsets = [0, 256], sizes = [8, 128], strides = [1, 1]} : vector<8x384xf32> to vector<8x128xf32>
    %428 = vector.extract_strided_slice %410 {offsets = [0, 256], sizes = [8, 128], strides = [1, 1]} : vector<8x384xf32> to vector<8x128xf32>
    %429 = arith.mulf %418, %428 : vector<8x128xf32>
    %430 = arith.addf %427, %429 : vector<8x128xf32>
    %431 = math.tanh %430 : vector<8x128xf32>
    %cst_122 = arith.constant 1.000000e+00 : f32
    %432 = vector.broadcast %cst_122 : f32 to vector<8x128xf32>
    %433 = arith.subf %432, %426 : vector<8x128xf32>
    %434 = arith.mulf %433, %431 : vector<8x128xf32>
    %435 = arith.mulf %426, %371 : vector<8x128xf32>
    %436 = arith.addf %434, %435 : vector<8x128xf32>
    %c0_123 = arith.constant 0 : index
    %c0_124 = arith.constant 0 : index
    %437 = vector.load %arg7[%c0_123, %c0_124] : memref<128x384xf32, #tpu.memory_space<vmem>>, vector<128x384xf32>
    %cst_125 = arith.constant dense<0.000000e+00> : vector<8x384xf32>
    %438 = tpu.matmul %436, %437, %cst_125 {dimension_numbers = #tpu.dot_dimension_numbers<[1], [0], [0], [1], [0, 0, 1, 1], [], []>} : vector<8x128xf32>, vector<128x384xf32>, vector<8x384xf32> -> vector<8x384xf32>
    %439 = vector.broadcast %12 : vector<1x384xf32> to vector<8x384xf32>
    %440 = arith.addf %438, %439 : vector<8x384xf32>
    %c0_126 = arith.constant 0 : index
    %c0_127 = arith.constant 0 : index
    %441 = vector.load %arg8[%c0_126, %c0_127] : memref<128x384xf32, #tpu.memory_space<vmem>>, vector<128x384xf32>
    %cst_128 = arith.constant dense<0.000000e+00> : vector<8x384xf32>
    %442 = tpu.matmul %405, %441, %cst_128 {dimension_numbers = #tpu.dot_dimension_numbers<[1], [0], [0], [1], [0, 0, 1, 1], [], []>} : vector<8x128xf32>, vector<128x384xf32>, vector<8x384xf32> -> vector<8x384xf32>
    %443 = vector.broadcast %13 : vector<1x384xf32> to vector<8x384xf32>
    %444 = arith.addf %442, %443 : vector<8x384xf32>
    %445 = vector.extract_strided_slice %440 {offsets = [0, 0], sizes = [8, 128], strides = [1, 1]} : vector<8x384xf32> to vector<8x128xf32>
    %446 = vector.extract_strided_slice %444 {offsets = [0, 0], sizes = [8, 128], strides = [1, 1]} : vector<8x384xf32> to vector<8x128xf32>
    %447 = arith.addf %445, %446 : vector<8x128xf32>
    %448 = arith.negf %447 : vector<8x128xf32>
    %449 = math.exp %448 : vector<8x128xf32>
    %cst_129 = arith.constant 1.000000e+00 : f32
    %450 = vector.broadcast %cst_129 : f32 to vector<8x128xf32>
    %451 = arith.addf %450, %449 : vector<8x128xf32>
    %452 = arith.divf %450, %451 : vector<8x128xf32>
    %453 = vector.extract_strided_slice %440 {offsets = [0, 128], sizes = [8, 128], strides = [1, 1]} : vector<8x384xf32> to vector<8x128xf32>
    %454 = vector.extract_strided_slice %444 {offsets = [0, 128], sizes = [8, 128], strides = [1, 1]} : vector<8x384xf32> to vector<8x128xf32>
    %455 = arith.addf %453, %454 : vector<8x128xf32>
    %456 = arith.negf %455 : vector<8x128xf32>
    %457 = math.exp %456 : vector<8x128xf32>
    %cst_130 = arith.constant 1.000000e+00 : f32
    %458 = vector.broadcast %cst_130 : f32 to vector<8x128xf32>
    %459 = arith.addf %458, %457 : vector<8x128xf32>
    %460 = arith.divf %458, %459 : vector<8x128xf32>
    %461 = vector.extract_strided_slice %440 {offsets = [0, 256], sizes = [8, 128], strides = [1, 1]} : vector<8x384xf32> to vector<8x128xf32>
    %462 = vector.extract_strided_slice %444 {offsets = [0, 256], sizes = [8, 128], strides = [1, 1]} : vector<8x384xf32> to vector<8x128xf32>
    %463 = arith.mulf %452, %462 : vector<8x128xf32>
    %464 = arith.addf %461, %463 : vector<8x128xf32>
    %465 = math.tanh %464 : vector<8x128xf32>
    %cst_131 = arith.constant 1.000000e+00 : f32
    %466 = vector.broadcast %cst_131 : f32 to vector<8x128xf32>
    %467 = arith.subf %466, %460 : vector<8x128xf32>
    %468 = arith.mulf %467, %465 : vector<8x128xf32>
    %469 = arith.mulf %460, %405 : vector<8x128xf32>
    %470 = arith.addf %468, %469 : vector<8x128xf32>
    %c56 = arith.constant 56 : index
    %c0_132 = arith.constant 0 : index
    %471 = vector.load %arg12[%c56, %c0_132] : memref<64x384xf32, #tpu.memory_space<vmem>>, vector<8x384xf32>
    %c0_133 = arith.constant 0 : index
    %c0_134 = arith.constant 0 : index
    %472 = vector.load %arg4[%c0_133, %c0_134] : memref<128x384xf32, #tpu.memory_space<vmem>>, vector<128x384xf32>
    %cst_135 = arith.constant dense<0.000000e+00> : vector<8x384xf32>
    %473 = tpu.matmul %436, %472, %cst_135 {dimension_numbers = #tpu.dot_dimension_numbers<[1], [0], [0], [1], [0, 0, 1, 1], [], []>} : vector<8x128xf32>, vector<128x384xf32>, vector<8x384xf32> -> vector<8x384xf32>
    %474 = vector.broadcast %11 : vector<1x384xf32> to vector<8x384xf32>
    %475 = arith.addf %473, %474 : vector<8x384xf32>
    %476 = vector.extract_strided_slice %471 {offsets = [0, 0], sizes = [8, 128], strides = [1, 1]} : vector<8x384xf32> to vector<8x128xf32>
    %477 = vector.extract_strided_slice %475 {offsets = [0, 0], sizes = [8, 128], strides = [1, 1]} : vector<8x384xf32> to vector<8x128xf32>
    %478 = arith.addf %476, %477 : vector<8x128xf32>
    %479 = arith.negf %478 : vector<8x128xf32>
    %480 = math.exp %479 : vector<8x128xf32>
    %cst_136 = arith.constant 1.000000e+00 : f32
    %481 = vector.broadcast %cst_136 : f32 to vector<8x128xf32>
    %482 = arith.addf %481, %480 : vector<8x128xf32>
    %483 = arith.divf %481, %482 : vector<8x128xf32>
    %484 = vector.extract_strided_slice %471 {offsets = [0, 128], sizes = [8, 128], strides = [1, 1]} : vector<8x384xf32> to vector<8x128xf32>
    %485 = vector.extract_strided_slice %475 {offsets = [0, 128], sizes = [8, 128], strides = [1, 1]} : vector<8x384xf32> to vector<8x128xf32>
    %486 = arith.addf %484, %485 : vector<8x128xf32>
    %487 = arith.negf %486 : vector<8x128xf32>
    %488 = math.exp %487 : vector<8x128xf32>
    %cst_137 = arith.constant 1.000000e+00 : f32
    %489 = vector.broadcast %cst_137 : f32 to vector<8x128xf32>
    %490 = arith.addf %489, %488 : vector<8x128xf32>
    %491 = arith.divf %489, %490 : vector<8x128xf32>
    %492 = vector.extract_strided_slice %471 {offsets = [0, 256], sizes = [8, 128], strides = [1, 1]} : vector<8x384xf32> to vector<8x128xf32>
    %493 = vector.extract_strided_slice %475 {offsets = [0, 256], sizes = [8, 128], strides = [1, 1]} : vector<8x384xf32> to vector<8x128xf32>
    %494 = arith.mulf %483, %493 : vector<8x128xf32>
    %495 = arith.addf %492, %494 : vector<8x128xf32>
    %496 = math.tanh %495 : vector<8x128xf32>
    %cst_138 = arith.constant 1.000000e+00 : f32
    %497 = vector.broadcast %cst_138 : f32 to vector<8x128xf32>
    %498 = arith.subf %497, %491 : vector<8x128xf32>
    %499 = arith.mulf %498, %496 : vector<8x128xf32>
    %500 = arith.mulf %491, %436 : vector<8x128xf32>
    %501 = arith.addf %499, %500 : vector<8x128xf32>
    %c0_139 = arith.constant 0 : index
    %c0_140 = arith.constant 0 : index
    %502 = vector.load %arg7[%c0_139, %c0_140] : memref<128x384xf32, #tpu.memory_space<vmem>>, vector<128x384xf32>
    %cst_141 = arith.constant dense<0.000000e+00> : vector<8x384xf32>
    %503 = tpu.matmul %501, %502, %cst_141 {dimension_numbers = #tpu.dot_dimension_numbers<[1], [0], [0], [1], [0, 0, 1, 1], [], []>} : vector<8x128xf32>, vector<128x384xf32>, vector<8x384xf32> -> vector<8x384xf32>
    %504 = vector.broadcast %12 : vector<1x384xf32> to vector<8x384xf32>
    %505 = arith.addf %503, %504 : vector<8x384xf32>
    %c0_142 = arith.constant 0 : index
    %c0_143 = arith.constant 0 : index
    %506 = vector.load %arg8[%c0_142, %c0_143] : memref<128x384xf32, #tpu.memory_space<vmem>>, vector<128x384xf32>
    %cst_144 = arith.constant dense<0.000000e+00> : vector<8x384xf32>
    %507 = tpu.matmul %470, %506, %cst_144 {dimension_numbers = #tpu.dot_dimension_numbers<[1], [0], [0], [1], [0, 0, 1, 1], [], []>} : vector<8x128xf32>, vector<128x384xf32>, vector<8x384xf32> -> vector<8x384xf32>
    %508 = vector.broadcast %13 : vector<1x384xf32> to vector<8x384xf32>
    %509 = arith.addf %507, %508 : vector<8x384xf32>
    %510 = vector.extract_strided_slice %505 {offsets = [0, 0], sizes = [8, 128], strides = [1, 1]} : vector<8x384xf32> to vector<8x128xf32>
    %511 = vector.extract_strided_slice %509 {offsets = [0, 0], sizes = [8, 128], strides = [1, 1]} : vector<8x384xf32> to vector<8x128xf32>
    %512 = arith.addf %510, %511 : vector<8x128xf32>
    %513 = arith.negf %512 : vector<8x128xf32>
    %514 = math.exp %513 : vector<8x128xf32>
    %cst_145 = arith.constant 1.000000e+00 : f32
    %515 = vector.broadcast %cst_145 : f32 to vector<8x128xf32>
    %516 = arith.addf %515, %514 : vector<8x128xf32>
    %517 = arith.divf %515, %516 : vector<8x128xf32>
    %518 = vector.extract_strided_slice %505 {offsets = [0, 128], sizes = [8, 128], strides = [1, 1]} : vector<8x384xf32> to vector<8x128xf32>
    %519 = vector.extract_strided_slice %509 {offsets = [0, 128], sizes = [8, 128], strides = [1, 1]} : vector<8x384xf32> to vector<8x128xf32>
    %520 = arith.addf %518, %519 : vector<8x128xf32>
    %521 = arith.negf %520 : vector<8x128xf32>
    %522 = math.exp %521 : vector<8x128xf32>
    %cst_146 = arith.constant 1.000000e+00 : f32
    %523 = vector.broadcast %cst_146 : f32 to vector<8x128xf32>
    %524 = arith.addf %523, %522 : vector<8x128xf32>
    %525 = arith.divf %523, %524 : vector<8x128xf32>
    %526 = vector.extract_strided_slice %505 {offsets = [0, 256], sizes = [8, 128], strides = [1, 1]} : vector<8x384xf32> to vector<8x128xf32>
    %527 = vector.extract_strided_slice %509 {offsets = [0, 256], sizes = [8, 128], strides = [1, 1]} : vector<8x384xf32> to vector<8x128xf32>
    %528 = arith.mulf %517, %527 : vector<8x128xf32>
    %529 = arith.addf %526, %528 : vector<8x128xf32>
    %530 = math.tanh %529 : vector<8x128xf32>
    %cst_147 = arith.constant 1.000000e+00 : f32
    %531 = vector.broadcast %cst_147 : f32 to vector<8x128xf32>
    %532 = arith.subf %531, %525 : vector<8x128xf32>
    %533 = arith.mulf %532, %530 : vector<8x128xf32>
    %534 = arith.mulf %525, %470 : vector<8x128xf32>
    %535 = arith.addf %533, %534 : vector<8x128xf32>
    %c0_148 = arith.constant 0 : index
    %c0_149 = arith.constant 0 : index
    %536 = vector.load %arg13[%c0_148, %c0_149] : memref<8x128xf32, #tpu.memory_space<vmem>>, vector<8x128xf32>
    tpu.vector_store %arg13[%c0_148, %c0_149], %501 {strides = array<i32>} : memref<8x128xf32, #tpu.memory_space<vmem>>, vector<8x128xf32>,
    %c0_150 = arith.constant 0 : index
    %c0_151 = arith.constant 0 : index
    %537 = vector.load %arg14[%c0_150, %c0_151] : memref<8x128xf32, #tpu.memory_space<vmem>>, vector<8x128xf32>
    tpu.vector_store %arg14[%c0_150, %c0_151], %535 {strides = array<i32>} : memref<8x128xf32, #tpu.memory_space<vmem>>, vector<8x128xf32>,
    %c0_152 = arith.constant 0 : index
    %c0_153 = arith.constant 0 : index
    %c0_154 = arith.constant 0 : index
    %538 = vector.load %arg11[%c0_152, %c0_153, %c0_154] : memref<2x8x128xf32, #tpu.memory_space<vmem>>, vector<1x8x128xf32>
    %539 = vector.shape_cast %538 : vector<1x8x128xf32> to vector<8x128xf32>
    %540 = vector.shape_cast %501 : vector<8x128xf32> to vector<1x8x128xf32>
    tpu.vector_store %arg11[%c0_152, %c0_153, %c0_154], %540 {strides = array<i32>} : memref<2x8x128xf32, #tpu.memory_space<vmem>>, vector<1x8x128xf32>,
    %c1 = arith.constant 1 : index
    %c0_155 = arith.constant 0 : index
    %c0_156 = arith.constant 0 : index
    %541 = vector.load %arg11[%c1, %c0_155, %c0_156] : memref<2x8x128xf32, #tpu.memory_space<vmem>>, vector<1x8x128xf32>
    %542 = vector.shape_cast %541 : vector<1x8x128xf32> to vector<8x128xf32>
    %543 = vector.shape_cast %535 : vector<8x128xf32> to vector<1x8x128xf32>
    tpu.vector_store %arg11[%c1, %c0_155, %c0_156], %543 {strides = array<i32>} : memref<2x8x128xf32, #tpu.memory_space<vmem>>, vector<1x8x128xf32>,
    return
  }
  func.func @transform_0(%arg0: i32, %arg1: i32) -> (i32, i32, i32) {
    %c0_i32 = arith.constant 0 : i32
    %c0_i32_0 = arith.constant 0 : i32
    return %arg1, %arg0, %c0_i32 : i32, i32, i32
  }
  func.func @transform_1(%arg0: i32, %arg1: i32) -> (i32, i32) {
    %c0_i32 = arith.constant 0 : i32
    %c0_i32_0 = arith.constant 0 : i32
    %c0_i32_1 = arith.constant 0 : i32
    return %c0_i32, %c0_i32_0 : i32, i32
  }
  func.func @transform_2(%arg0: i32, %arg1: i32) -> (i32, i32) {
    %c0_i32 = arith.constant 0 : i32
    %c0_i32_0 = arith.constant 0 : i32
    %c0_i32_1 = arith.constant 0 : i32
    return %c0_i32, %c0_i32_0 : i32, i32
  }
  func.func @transform_3(%arg0: i32, %arg1: i32) -> (i32, i32) {
    %c0_i32 = arith.constant 0 : i32
    %c0_i32_0 = arith.constant 0 : i32
    %c0_i32_1 = arith.constant 0 : i32
    return %c0_i32, %c0_i32_0 : i32, i32
  }
  func.func @transform_4(%arg0: i32, %arg1: i32) -> (i32, i32) {
    %c0_i32 = arith.constant 0 : i32
    %c0_i32_0 = arith.constant 0 : i32
    %c0_i32_1 = arith.constant 0 : i32
    return %c0_i32, %c0_i32_0 : i32, i32
  }
  func.func @transform_5(%arg0: i32, %arg1: i32) -> (i32, i32) {
    %c0_i32 = arith.constant 0 : i32
    %c0_i32_0 = arith.constant 0 : i32
    %c0_i32_1 = arith.constant 0 : i32
    return %c0_i32, %c0_i32_0 : i32, i32
  }
  func.func @transform_6(%arg0: i32, %arg1: i32) -> (i32, i32) {
    %c0_i32 = arith.constant 0 : i32
    %c0_i32_0 = arith.constant 0 : i32
    %c0_i32_1 = arith.constant 0 : i32
    return %c0_i32, %c0_i32_0 : i32, i32
  }
  func.func @transform_7(%arg0: i32, %arg1: i32) -> (i32, i32) {
    %c0_i32 = arith.constant 0 : i32
    %c0_i32_0 = arith.constant 0 : i32
    %c0_i32_1 = arith.constant 0 : i32
    return %c0_i32, %c0_i32_0 : i32, i32
  }
  func.func @transform_8(%arg0: i32, %arg1: i32) -> (i32, i32) {
    %c0_i32 = arith.constant 0 : i32
    %c0_i32_0 = arith.constant 0 : i32
    %c0_i32_1 = arith.constant 0 : i32
    return %c0_i32, %c0_i32_0 : i32, i32
  }
  func.func @transform_9(%arg0: i32, %arg1: i32) -> (i32, i32, i32) {
    %c0_i32 = arith.constant 0 : i32
    %c0_i32_0 = arith.constant 0 : i32
    %c0_i32_1 = arith.constant 0 : i32
    return %c0_i32, %arg0, %c0_i32_0 : i32, i32, i32
  }
}

</mosaic_0001>

<llo_original>
// kernel: tpu_custom_call.1
$region0: #{tpu_custom_call.1}
  #allocation0 [shape = 'u32[]', space=smem, size = 0x4, offset = 0x4, fixed_abs, tag = 'smem constant byte address 0x4 - core index']
  #allocation1 [shape = 'u32[144,128]{1,0:T(1,128)}', space=vmem, size = 0x12000, scoped, tag = 'internal scratch']
  #allocation2 [shape = 'f32[64,384]{1,0:T(8,128)}', space=vmem, size = 0x18000, scoped, tag = 'scratch operand']
  #allocation3 [shape = 'f32[8,128]{1,0:T(8,128)}', space=vmem, size = 0x1000, scoped, tag = 'scratch operand']
  #allocation4 [shape = 'f32[8,128]{1,0:T(8,128)}', space=vmem, size = 0x1000, scoped, tag = 'scratch operand']
  %s0 = inlined_call_operand.hbm [shape: f32[8,8,8], index: 0, kind: input, shape index: {}]
  %s1 = inlined_call_operand.hbm [shape: f32[8,384], index: 1, kind: input, shape index: {}]
  %s2 = inlined_call_operand.hbm [shape: f32[128,384], index: 2, kind: input, shape index: {}]
  %s3 = inlined_call_operand.vmem [shape: f32[1,384], index: 3, kind: input, shape index: {}]
  %s4 = inlined_call_operand.vmem [shape: f32[1,384], index: 4, kind: input, shape index: {}]
  %s5 = inlined_call_operand.hbm [shape: f32[128,384], index: 5, kind: input, shape index: {}]
  %s6 = inlined_call_operand.hbm [shape: f32[128,384], index: 6, kind: input, shape index: {}]
  %s7 = inlined_call_operand.vmem [shape: f32[1,384], index: 7, kind: input, shape index: {}]
  %s8 = inlined_call_operand.vmem [shape: f32[1,384], index: 8, kind: input, shape index: {}]
  %s9 = inlined_call_operand.hbm [shape: f32[2,8,128], index: 9, kind: output, shape index: {}]
  %s10 = sld [smem:[#allocation0]]
  $region70: #{tpu_custom_call.1} parent=0
    _
  %s12 = ssub.s32 1, %s10
  %s13 = scalar_select 0, %s12, %s10
  $region1: #{tpu_custom_call.1} parent=0
    #allocation5 [shape = 'u8[32768]{0}', space=vmem, size = 0x8000, scoped, tag = 'input window, operand 0, single buffered']
    #allocation6 [shape = 's32[1]{0}', space=sflag, size = 0x4, scoped, tag = 'scoped memory for tpu_custom_call.1']
    #allocation7 [shape = 's32[1]{0}', space=sflag, size = 0x4, scoped, tag = 'scoped memory for tpu_custom_call.1']
    #allocation8 [shape = 'u8[12288]{0}', space=vmem, size = 0x3000, scoped, tag = 'input window, operand 1, single buffered']
    #allocation9 [shape = 's32[1]{0}', space=sflag, size = 0x4, scoped, tag = 'scoped memory for tpu_custom_call.1']
    #allocation10 [shape = 'u8[196608]{0}', space=vmem, size = 0x30000, scoped, tag = 'input window, operand 2, single buffered']
    #allocation11 [shape = 'u8[196608]{0}', space=vmem, size = 0x30000, scoped, tag = 'input window, operand 5, single buffered']
    #allocation12 [shape = 's32[1]{0}', space=sflag, size = 0x4, scoped, tag = 'scoped memory for tpu_custom_call.1']
    #allocation13 [shape = 'u8[196608]{0}', space=vmem, size = 0x30000, scoped, tag = 'input window, operand 6, single buffered']
    #allocation14 [shape = 'u8[8192]{0}', space=vmem, size = 0x2000, scoped, tag = 'output window, operand 0, single buffered']
    %14 = vsyncpa [#allocation6], 0
    %15 = vsyncpa [#allocation9], 0
    %16 = vsyncpa [#allocation12], 0
    %17 = vsyncpa [#allocation7], 0
    // Predicated region
    $region2: #{tpu_custom_call.1} parent=1 // pred_check
      _
    $region3: #{tpu_custom_call.1} parent=1 // pred_check_branch
      %19 = sbr.rel (0) target = $region5
    $region4: #{tpu_custom_call.1} parent=1 // pred_region
      %s21 = ssub.s32 1024, 1024
      %22 = vsyncadd [#allocation6], %s21
      %s23 = sshll.u32 [#allocation5], 4
      %s24 = int_to_ptr.vmem [resolvable:$true] %s23
      %29 = dma.hbm_to_vmem [thread:$0]  %s0, 1024, %s24, [#allocation6], 128, 128, 8
    $region5: #{tpu_custom_call.1} parent=1 // pred_fallthru
      _
    // Predicated region
    $region6: #{tpu_custom_call.1} parent=1 // pred_check
      _
    $region7: #{tpu_custom_call.1} parent=1 // pred_check_branch
      %31 = sbr.rel (0) target = $region9
    $region8: #{tpu_custom_call.1} parent=1 // pred_region
      %s33 = ssub.s32 384, 384
      %34 = vsyncadd [#allocation9], %s33
      %s36 = sshll.u32 [#allocation8], 4
      %s37 = int_to_ptr.vmem [resolvable:$true] %s36
      %39 = dma.hbm_to_vmem [thread:$0]  %s1, 384, %s37, [#allocation9]
    $region9: #{tpu_custom_call.1} parent=1 // pred_fallthru
      _
    // Predicated region
    $region10: #{tpu_custom_call.1} parent=1 // pred_check
      _
    $region11: #{tpu_custom_call.1} parent=1 // pred_check_branch
      %41 = sbr.rel (0) target = $region13
    $region12: #{tpu_custom_call.1} parent=1 // pred_region
      %s43 = ssub.s32 6144, 6144
      %44 = vsyncadd [#allocation9], %s43
      %s45 = sshll.u32 [#allocation10], 4
      %s46 = int_to_ptr.vmem [resolvable:$true] %s45
      %51 = dma.hbm_to_vmem [thread:$0]  %s2, 6144, %s46, [#allocation9], 384, 384, 24
    $region13: #{tpu_custom_call.1} parent=1 // pred_fallthru
      _
    // Predicated region
    $region14: #{tpu_custom_call.1} parent=1 // pred_check
      _
    $region15: #{tpu_custom_call.1} parent=1 // pred_check_branch
      %53 = sbr.rel (0) target = $region17
    $region16: #{tpu_custom_call.1} parent=1 // pred_region
      _
    $region17: #{tpu_custom_call.1} parent=1 // pred_fallthru
      _
    // Predicated region
    $region18: #{tpu_custom_call.1} parent=1 // pred_check
      _
    $region19: #{tpu_custom_call.1} parent=1 // pred_check_branch
      %55 = sbr.rel (0) target = $region21
    $region20: #{tpu_custom_call.1} parent=1 // pred_region
      _
    $region21: #{tpu_custom_call.1} parent=1 // pred_fallthru
      _
    // Predicated region
    $region22: #{tpu_custom_call.1} parent=1 // pred_check
      _
    $region23: #{tpu_custom_call.1} parent=1 // pred_check_branch
      %57 = sbr.rel (0) target = $region25
    $region24: #{tpu_custom_call.1} parent=1 // pred_region
      %s59 = ssub.s32 6144, 6144
      %60 = vsyncadd [#allocation12], %s59
      %s61 = sshll.u32 [#allocation11], 4
      %s62 = int_to_ptr.vmem [resolvable:$true] %s61
      %67 = dma.hbm_to_vmem [thread:$0]  %s5, 6144, %s62, [#allocation12], 384, 384, 24
    $region25: #{tpu_custom_call.1} parent=1 // pred_fallthru
      _
    // Predicated region
    $region26: #{tpu_custom_call.1} parent=1 // pred_check
      _
    $region27: #{tpu_custom_call.1} parent=1 // pred_check_branch
      %69 = sbr.rel (0) target = $region29
    $region28: #{tpu_custom_call.1} parent=1 // pred_region
      %s71 = ssub.s32 6144, 6144
      %72 = vsyncadd [#allocation12], %s71
      %s73 = sshll.u32 [#allocation13], 4
      %s74 = int_to_ptr.vmem [resolvable:$true] %s73
      %79 = dma.hbm_to_vmem [thread:$0]  %s6, 6144, %s74, [#allocation12], 384, 384, 24
    $region29: #{tpu_custom_call.1} parent=1 // pred_fallthru
      _
    // Predicated region
    $region30: #{tpu_custom_call.1} parent=1 // pred_check
      _
    $region31: #{tpu_custom_call.1} parent=1 // pred_check_branch
      %81 = sbr.rel (0) target = $region33
    $region32: #{tpu_custom_call.1} parent=1 // pred_region
      _
    $region33: #{tpu_custom_call.1} parent=1 // pred_fallthru
      _
    // Predicated region
    $region34: #{tpu_custom_call.1} parent=1 // pred_check
      _
    $region35: #{tpu_custom_call.1} parent=1 // pred_check_branch
      %83 = sbr.rel (0) target = $region37
    $region36: #{tpu_custom_call.1} parent=1 // pred_region
      _
    $region37: #{tpu_custom_call.1} parent=1 // pred_fallthru
      _
    // Predicated region
    $region38: #{tpu_custom_call.1} parent=1 // pred_check
      _
    $region39: #{tpu_custom_call.1} parent=1 // pred_check_branch
      %85 = sbr.rel (0) target = $region41
    $region40: #{tpu_custom_call.1} parent=1 // pred_region
      %86 = dma.done [#allocation6], 1024
    $region41: #{tpu_custom_call.1} parent=1 // pred_fallthru
      _
    // Predicated region
    $region42: #{tpu_custom_call.1} parent=1 // pred_check
      _
    $region43: #{tpu_custom_call.1} parent=1 // pred_check_branch
      %88 = sbr.rel (0) target = $region45
    $region44: #{tpu_custom_call.1} parent=1 // pred_region
      %89 = dma.done [#allocation9], 384
    $region45: #{tpu_custom_call.1} parent=1 // pred_fallthru
      _
    // Predicated region
    $region46: #{tpu_custom_call.1} parent=1 // pred_check
      _
    $region47: #{tpu_custom_call.1} parent=1 // pred_check_branch
      %91 = sbr.rel (0) target = $region49
    $region48: #{tpu_custom_call.1} parent=1 // pred_region
      %92 = dma.done [#allocation9], 6144
    $region49: #{tpu_custom_call.1} parent=1 // pred_fallthru
      _
    // Predicated region
    $region50: #{tpu_custom_call.1} parent=1 // pred_check
      _
    $region51: #{tpu_custom_call.1} parent=1 // pred_check_branch
      %94 = sbr.rel (0) target = $region53
    $region52: #{tpu_custom_call.1} parent=1 // pred_region
      %95 = dma.done [#allocation12], 6144
    $region53: #{tpu_custom_call.1} parent=1 // pred_fallthru
      _
    // Predicated region
    $region54: #{tpu_custom_call.1} parent=1 // pred_check
      _
    $region55: #{tpu_custom_call.1} parent=1 // pred_check_branch
      %97 = sbr.rel (0) target = $region57
    $region56: #{tpu_custom_call.1} parent=1 // pred_region
      %98 = dma.done [#allocation12], 6144
    $region57: #{tpu_custom_call.1} parent=1 // pred_fallthru
      _
    %p99 = scmp.eq.s32.totalorder 0, 0
    // Predicated region
    $region58: #{tpu_custom_call.1} parent=1 // pred_check
      %p100 = pneg %p99
    $region59: #{tpu_custom_call.1} parent=1 // pred_check_branch
      %102 = sbr.rel (%p100) target = $region61
    $region60: #{tpu_custom_call.1} parent=1 // pred_region
      %103 = vst [vmem:[#allocation3] sm:$0xff] 0.0
      %104 = vst [vmem:[#allocation4] sm:$0xff] 0.0
    $region61: #{tpu_custom_call.1} parent=1 // pred_fallthru
      _
    %v105 = vld [vmem:[#allocation5] sm:$0xff]
    %v106 = vld [vmem:[#allocation5 + $0x8] sm:$0xff]
    %v107 = vld [vmem:[#allocation5 + $0x10] sm:$0xff]
    %v108 = vld [vmem:[#allocation5 + $0x18] sm:$0xff]
    %v109 = vld [vmem:[#allocation5 + $0x20] sm:$0xff]
    %v110 = vld [vmem:[#allocation5 + $0x28] sm:$0xff]
    %v111 = vld [vmem:[#allocation5 + $0x30] sm:$0xff]
    %v112 = vld [vmem:[#allocation5 + $0x38] sm:$0xff]
    %v113 = vld [vmem:[#allocation8] sm:$0xff]
    %v114 = vld [vmem:[#allocation8 + $0x8] sm:$0xff]
    %v115 = vld [vmem:[#allocation8 + $0x10] sm:$0xff]
    %v116 = vld [vmem:[%s3] sm:$0x7]
    %v118 = vlaneseq
    %v119 = vshrl.u32 %v118, 7
    %v120 = vsub.s32 0, %v119
    %v121 = vrot.slane %v116, %v120
    %v122 = vlaneseq
    %v123 = vshrl.u32 %v122, 7
    %v124 = vsub.s32 1, %v123
    %v125 = vrot.slane %v116, %v124
    %v126 = vlaneseq
    %v127 = vshrl.u32 %v126, 7
    %v128 = vsub.s32 2, %v127
    %v129 = vrot.slane %v116, %v128
    %vm133 = vcmask 64512
    %v135 = vsel %vm133, %v105, 0
    %v138 = vsel %vm133, %v106, 0
    %v141 = vsel %vm133, %v107, 0
    %v144 = vsel %vm133, %v108, 0
    %v147 = vsel %vm133, %v109, 0
    %v150 = vsel %vm133, %v110, 0
    %v153 = vsel %vm133, %v111, 0
    %v156 = vsel %vm133, %v112, 0
    %158 = vmatprep.subr.mxu0 %v114
    %159 = vmatpush1.msra.mxu0 %v113
    %160 = vmatprep.subr.mxu0 0.0
    %161 = vmatpush1.msra.mxu0 0.0
    %162 = vmatprep.subr.mxu0 0.0
    %163 = vmatpush1.msra.mxu0 0.0
    %164 = vmatprep.subr.mxu0 0.0
    %165 = vmatpush1.msra.mxu0 0.0
    %166 = vmatprep.subr.mxu0 0.0
    %167 = vmatpush1.msra.mxu0 0.0
    %168 = vmatprep.subr.mxu0 0.0
    %169 = vmatpush1.msra.mxu0 0.0
    %170 = vmatprep.subr.mxu0 0.0
    %171 = vmatpush1.msra.mxu0 0.0
    %172 = vmatprep.subr.mxu0 0.0
    %173 = vmatpush1.msra.mxu0 0.0
    %174 = vmatprep.subr.mxu0 0.0
    %175 = vmatpush1.msra.mxu0 0.0
    %176 = vmatprep.subr.mxu0 0.0
    %177 = vmatpush1.msra.mxu0 0.0
    %178 = vmatprep.subr.mxu0 0.0
    %179 = vmatpush1.msra.mxu0 0.0
    %180 = vmatprep.subr.mxu0 0.0
    %181 = vmatpush1.msra.mxu0 0.0
    %182 = vmatprep.subr.mxu0 0.0
    %183 = vmatpush1.msra.mxu0 0.0
    %184 = vmatprep.subr.mxu0 0.0
    %185 = vmatpush1.msra.mxu0 0.0
    %186 = vmatprep.subr.mxu0 0.0
    %187 = vmatpush1.msra.mxu0 0.0
    %188 = vmatprep.subr.mxu0 0.0
    %189 = vmatpush1.msra.mxu0 0.0
    %190 = vmatprep.subr.mxu0 0.0
    %191 = vmatpush1.msra.mxu0 0.0
    %192 = vmatprep.subr.mxu0 0.0
    %193 = vmatpush1.msra.mxu0 0.0
    %194 = vmatprep.subr.mxu0 0.0
    %195 = vmatpush1.msra.mxu0 0.0
    %196 = vmatprep.subr.mxu0 0.0
    %197 = vmatpush1.msra.mxu0 0.0
    %198 = vmatprep.subr.mxu0 0.0
    %199 = vmatpush1.msra.mxu0 0.0
    %200 = vmatprep.subr.mxu0 0.0
    %201 = vmatpush1.msra.mxu0 0.0
    %202 = vmatprep.subr.mxu0 0.0
    %203 = vmatpush1.msra.mxu0 0.0
    %204 = vmatprep.subr.mxu0 0.0
    %205 = vmatpush1.msra.mxu0 0.0
    %206 = vmatprep.subr.mxu0 0.0
    %207 = vmatpush1.msra.mxu0 0.0
    %208 = vmatprep.subr.mxu0 0.0
    %209 = vmatpush1.msra.mxu0 0.0
    %210 = vmatprep.subr.mxu0 0.0
    %211 = vmatpush1.msra.mxu0 0.0
    %212 = vmatprep.subr.mxu0 0.0
    %213 = vmatpush1.msra.mxu0 0.0
    %214 = vmatprep.subr.mxu0 0.0
    %215 = vmatpush1.msra.mxu0 0.0
    %216 = vmatprep.subr.mxu0 0.0
    %217 = vmatpush1.msra.mxu0 0.0
    %218 = vmatprep.subr.mxu0 0.0
    %219 = vmatpush1.msra.mxu0 0.0
    %220 = vmatprep.subr.mxu0 0.0
    %221 = vmatpush1.msra.mxu0 0.0
    %222 = vmatprep.mubr.f32.mxu0 0.0
    %223 = vmatmul.mubr.f32.gmra.mrb[0].mxu0 %v135
    %v224 = vpop.f32.mrb[0].mxu0
    %v225 = vadd.f32 %v121, %v224
    %v226 = vpop.f32.mrb[0].mxu0
    %v227 = vadd.f32 %v125, %v226
    %228 = vmatprep.mubr.f32.mxu0 0.0
    %229 = vmatmul.mubr.f32.gmra.mrb[0].mxu0 %v138
    %v230 = vpop.f32.mrb[0].mxu0
    %v231 = vadd.f32 %v121, %v230
    %v232 = vpop.f32.mrb[0].mxu0
    %v233 = vadd.f32 %v125, %v232
    %234 = vmatprep.mubr.f32.mxu0 0.0
    %235 = vmatmul.mubr.f32.gmra.mrb[0].mxu0 %v141
    %v236 = vpop.f32.mrb[0].mxu0
    %v237 = vadd.f32 %v121, %v236
    %v238 = vpop.f32.mrb[0].mxu0
    %v239 = vadd.f32 %v125, %v238
    %240 = vmatprep.mubr.f32.mxu0 0.0
    %241 = vmatmul.mubr.f32.gmra.mrb[0].mxu0 %v144
    %v242 = vpop.f32.mrb[0].mxu0
    %v243 = vadd.f32 %v121, %v242
    %v244 = vpop.f32.mrb[0].mxu0
    %v245 = vadd.f32 %v125, %v244
    %246 = vmatprep.mubr.f32.mxu0 0.0
    %247 = vmatmul.mubr.f32.gmra.mrb[0].mxu0 %v147
    %v248 = vpop.f32.mrb[0].mxu0
    %v249 = vadd.f32 %v121, %v248
    %v250 = vpop.f32.mrb[0].mxu0
    %v251 = vadd.f32 %v125, %v250
    %252 = vmatprep.mubr.f32.mxu0 0.0
    %253 = vmatmul.mubr.f32.gmra.mrb[0].mxu0 %v150
    %v254 = vpop.f32.mrb[0].mxu0
    %v255 = vadd.f32 %v121, %v254
    %v256 = vpop.f32.mrb[0].mxu0
    %v257 = vadd.f32 %v125, %v256
    %258 = vmatprep.mubr.f32.mxu0 0.0
    %259 = vmatmul.mubr.f32.gmra.mrb[0].mxu0 %v153
    %v260 = vpop.f32.mrb[0].mxu0
    %v261 = vadd.f32 %v121, %v260
    %v262 = vpop.f32.mrb[0].mxu0
    %v263 = vadd.f32 %v125, %v262
    %264 = vmatprep.mubr.f32.mxu0 0.0
    %265 = vmatmul.mubr.f32.gmra.mrb[0].mxu0 %v156
    %v266 = vpop.f32.mrb[0].mxu0
    %v267 = vadd.f32 %v121, %v266
    %v268 = vpop.f32.mrb[0].mxu0
    %v269 = vadd.f32 %v125, %v268
    %270 = vdwg.mxu0
    %271 = vmatprep.subr.mxu0 0.0
    %272 = vmatpush1.msra.mxu0 %v115
    %273 = vmatprep.subr.mxu0 0.0
    %274 = vmatpush1.msra.mxu0 0.0
    %275 = vmatprep.subr.mxu0 0.0
    %276 = vmatpush1.msra.mxu0 0.0
    %277 = vmatprep.subr.mxu0 0.0
    %278 = vmatpush1.msra.mxu0 0.0
    %279 = vmatprep.subr.mxu0 0.0
    %280 = vmatpush1.msra.mxu0 0.0
    %281 = vmatprep.subr.mxu0 0.0
    %282 = vmatpush1.msra.mxu0 0.0
    %283 = vmatprep.subr.mxu0 0.0
    %284 = vmatpush1.msra.mxu0 0.0
    %285 = vmatprep.subr.mxu0 0.0
    %286 = vmatpush1.msra.mxu0 0.0
    %287 = vmatprep.subr.mxu0 0.0
    %288 = vmatpush1.msra.mxu0 0.0
    %289 = vmatprep.subr.mxu0 0.0
    %290 = vmatpush1.msra.mxu0 0.0
    %291 = vmatprep.subr.mxu0 0.0
    %292 = vmatpush1.msra.mxu0 0.0
    %293 = vmatprep.subr.mxu0 0.0
    %294 = vmatpush1.msra.mxu0 0.0
    %295 = vmatprep.subr.mxu0 0.0
    %296 = vmatpush1.msra.mxu0 0.0
    %297 = vmatprep.subr.mxu0 0.0
    %298 = vmatpush1.msra.mxu0 0.0
    %299 = vmatprep.subr.mxu0 0.0
    %300 = vmatpush1.msra.mxu0 0.0
    %301 = vmatprep.subr.mxu0 0.0
    %302 = vmatpush1.msra.mxu0 0.0
    %303 = vmatprep.subr.mxu0 0.0
    %304 = vmatpush1.msra.mxu0 0.0
    %305 = vmatprep.subr.mxu0 0.0
    %306 = vmatpush1.msra.mxu0 0.0
    %307 = vmatprep.subr.mxu0 0.0
    %308 = vmatpush1.msra.mxu0 0.0
    %309 = vmatprep.subr.mxu0 0.0
    %310 = vmatpush1.msra.mxu0 0.0
    %311 = vmatprep.subr.mxu0 0.0
    %312 = vmatpush1.msra.mxu0 0.0
    %313 = vmatprep.subr.mxu0 0.0
    %314 = vmatpush1.msra.mxu0 0.0
    %315 = vmatprep.subr.mxu0 0.0
    %316 = vmatpush1.msra.mxu0 0.0
    %317 = vmatprep.subr.mxu0 0.0
    %318 = vmatpush1.msra.mxu0 0.0
    %319 = vmatprep.subr.mxu0 0.0
    %320 = vmatpush1.msra.mxu0 0.0
    %321 = vmatprep.subr.mxu0 0.0
    %322 = vmatpush1.msra.mxu0 0.0
    %323 = vmatprep.subr.mxu0 0.0
    %324 = vmatpush1.msra.mxu0 0.0
    %325 = vmatprep.subr.mxu0 0.0
    %326 = vmatpush1.msra.mxu0 0.0
    %327 = vmatprep.subr.mxu0 0.0
    %328 = vmatpush1.msra.mxu0 0.0
    %329 = vmatprep.subr.mxu0 0.0
    %330 = vmatpush1.msra.mxu0 0.0
    %331 = vmatprep.subr.mxu0 0.0
    %332 = vmatpush1.msra.mxu0 0.0
    %333 = vmatprep.subr.mxu0 0.0
    %334 = vmatpush1.msra.mxu0 0.0
    %335 = vmatprep.mubr.f32.mxu0 0.0
    %336 = vmatmul.mubr.f32.gmra.mrb[0].mxu0 %v135
    %v337 = vpop.f32.mrb[0].mxu0
    %v338 = vadd.f32 %v129, %v337
    %v339 = vpop.f32.mrb[0].mxu0
    %340 = vmatprep.mubr.f32.mxu0 0.0
    %341 = vmatmul.mubr.f32.gmra.mrb[0].mxu0 %v138
    %v342 = vpop.f32.mrb[0].mxu0
    %v343 = vadd.f32 %v129, %v342
    %v344 = vpop.f32.mrb[0].mxu0
    %345 = vmatprep.mubr.f32.mxu0 0.0
    %346 = vmatmul.mubr.f32.gmra.mrb[0].mxu0 %v141
    %v347 = vpop.f32.mrb[0].mxu0
    %v348 = vadd.f32 %v129, %v347
    %v349 = vpop.f32.mrb[0].mxu0
    %350 = vmatprep.mubr.f32.mxu0 0.0
    %351 = vmatmul.mubr.f32.gmra.mrb[0].mxu0 %v144
    %v352 = vpop.f32.mrb[0].mxu0
    %v353 = vadd.f32 %v129, %v352
    %v354 = vpop.f32.mrb[0].mxu0
    %355 = vmatprep.mubr.f32.mxu0 0.0
    %356 = vmatmul.mubr.f32.gmra.mrb[0].mxu0 %v147
    %v357 = vpop.f32.mrb[0].mxu0
    %v358 = vadd.f32 %v129, %v357
    %v359 = vpop.f32.mrb[0].mxu0
    %360 = vmatprep.mubr.f32.mxu0 0.0
    %361 = vmatmul.mubr.f32.gmra.mrb[0].mxu0 %v150
    %v362 = vpop.f32.mrb[0].mxu0
    %v363 = vadd.f32 %v129, %v362
    %v364 = vpop.f32.mrb[0].mxu0
    %365 = vmatprep.mubr.f32.mxu0 0.0
    %366 = vmatmul.mubr.f32.gmra.mrb[0].mxu0 %v153
    %v367 = vpop.f32.mrb[0].mxu0
    %v368 = vadd.f32 %v129, %v367
    %v369 = vpop.f32.mrb[0].mxu0
    %370 = vmatprep.mubr.f32.mxu0 0.0
    %371 = vmatmul.mubr.f32.gmra.mrb[0].mxu0 %v156
    %v372 = vpop.f32.mrb[0].mxu0
    %v373 = vadd.f32 %v129, %v372
    %v374 = vpop.f32.mrb[0].mxu0
    %375 = vdwg.mxu0
    %376 = vst [vmem:[#allocation2] sm:$0xff] %v225
    %377 = vst [vmem:[#allocation2 + $0x8] sm:$0xff] %v227
    %378 = vst [vmem:[#allocation2 + $0x10] sm:$0xff] %v338
    %379 = vst [vmem:[#allocation2 + $0x18] sm:$0xff] %v231
    %380 = vst [vmem:[#allocation2 + $0x20] sm:$0xff] %v233
    %381 = vst [vmem:[#allocation2 + $0x28] sm:$0xff] %v343
    %382 = vst [vmem:[#allocation2 + $0x30] sm:$0xff] %v237
    %383 = vst [vmem:[#allocation2 + $0x38] sm:$0xff] %v239
    %384 = vst [vmem:[#allocation2 + $0x40] sm:$0xff] %v348
    %385 = vst [vmem:[#allocation2 + $0x48] sm:$0xff] %v243
    %386 = vst [vmem:[#allocation2 + $0x50] sm:$0xff] %v245
    %387 = vst [vmem:[#allocation2 + $0x58] sm:$0xff] %v353
    %388 = vst [vmem:[#allocation2 + $0x60] sm:$0xff] %v249
    %389 = vst [vmem:[#allocation2 + $0x68] sm:$0xff] %v251
    %390 = vst [vmem:[#allocation2 + $0x70] sm:$0xff] %v358
    %391 = vst [vmem:[#allocation2 + $0x78] sm:$0xff] %v255
    %392 = vst [vmem:[#allocation2 + $0x80] sm:$0xff] %v257
    %393 = vst [vmem:[#allocation2 + $0x88] sm:$0xff] %v363
    %394 = vst [vmem:[#allocation2 + $0x90] sm:$0xff] %v261
    %395 = vst [vmem:[#allocation2 + $0x98] sm:$0xff] %v263
    %396 = vst [vmem:[#allocation2 + $0xa0] sm:$0xff] %v368
    %397 = vst [vmem:[#allocation2 + $0xa8] sm:$0xff] %v267
    %398 = vst [vmem:[#allocation2 + $0xb0] sm:$0xff] %v269
    %399 = vst [vmem:[#allocation2 + $0xb8] sm:$0xff] %v373
    %v400 = vld [vmem:[%s4] sm:$0x7]
    %v401 = vld [vmem:[%s7] sm:$0x7]
    %v402 = vld [vmem:[%s8] sm:$0x7]
    %v403 = vld [vmem:[#allocation3] sm:$0xff]
    %v404 = vld [vmem:[#allocation4] sm:$0xff]
    %v405 = vld [vmem:[#allocation2] sm:$0xff]
    %v406 = vld [vmem:[#allocation2 + $0x8] sm:$0xff]
    %v407 = vld [vmem:[#allocation2 + $0x10] sm:$0xff]
    %v408 = vld [vmem:[#allocation10] sm:$0xff]
    %v409 = vld [vmem:[#allocation10 + $0x8] sm:$0xff]
    %v410 = vld [vmem:[#allocation10 + $0x10] sm:$0xff]
    %v411 = vld [vmem:[#allocation10 + $0x18] sm:$0xff]
    %v412 = vld [vmem:[#allocation10 + $0x20] sm:$0xff]
    %v413 = vld [vmem:[#allocation10 + $0x28] sm:$0xff]
    %v414 = vld [vmem:[#allocation10 + $0x30] sm:$0xff]
    %v415 = vld [vmem:[#allocation10 + $0x38] sm:$0xff]
    %v416 = vld [vmem:[#allocation10 + $0x40] sm:$0xff]
    %v417 = vld [vmem:[#allocation10 + $0x48] sm:$0xff]
    %v418 = vld [vmem:[#allocation10 + $0x50] sm:$0xff]
    %v419 = vld [vmem:[#allocation10 + $0x58] sm:$0xff]
    %v420 = vld [vmem:[#allocation10 + $0x60] sm:$0xff]
    %v421 = vld [vmem:[#allocation10 + $0x68] sm:$0xff]
    %v422 = vld [vmem:[#allocation10 + $0x70] sm:$0xff]
    %v423 = vld [vmem:[#allocation10 + $0x78] sm:$0xff]
    %v424 = vld [vmem:[#allocation10 + $0x80] sm:$0xff]
    %v425 = vld [vmem:[#allocation10 + $0x88] sm:$0xff]
    %v426 = vld [vmem:[#allocation10 + $0x90] sm:$0xff]
    %v427 = vld [vmem:[#allocation10 + $0x98] sm:$0xff]
    %v428 = vld [vmem:[#allocation10 + $0xa0] sm:$0xff]
    %v429 = vld [vmem:[#allocation10 + $0xa8] sm:$0xff]
    %v430 = vld [vmem:[#allocation10 + $0xb0] sm:$0xff]
    %v431 = vld [vmem:[#allocation10 + $0xb8] sm:$0xff]
    %v432 = vld [vmem:[#allocation10 + $0xc0] sm:$0xff]
    %v433 = vld [vmem:[#allocation10 + $0xc8] sm:$0xff]
    %v434 = vld [vmem:[#allocation10 + $0xd0] sm:$0xff]
    %v435 = vld [vmem:[#allocation10 + $0xd8] sm:$0xff]
    %v436 = vld [vmem:[#allocation10 + $0xe0] sm:$0xff]
    %v437 = vld [vmem:[#allocation10 + $0xe8] sm:$0xff]
    %v438 = vld [vmem:[#allocation10 + $0xf0] sm:$0xff]
    %v439 = vld [vmem:[#allocation10 + $0xf8] sm:$0xff]
    %v440 = vld [vmem:[#allocation10 + $0x100] sm:$0xff]
    %v441 = vld [vmem:[#allocation10 + $0x108] sm:$0xff]
    %v442 = vld [vmem:[#allocation10 + $0x110] sm:$0xff]
    %v443 = vld [vmem:[#allocation10 + $0x118] sm:$0xff]
    %v444 = vld [vmem:[#allocation10 + $0x120] sm:$0xff]
    %v445 = vld [vmem:[#allocation10 + $0x128] sm:$0xff]
    %v446 = vld [vmem:[#allocation10 + $0x130] sm:$0xff]
    %v447 = vld [vmem:[#allocation10 + $0x138] sm:$0xff]
    %v448 = vld [vmem:[#allocation10 + $0x140] sm:$0xff]
    %v449 = vld [vmem:[#allocation10 + $0x148] sm:$0xff]
    %v450 = vld [vmem:[#allocation10 + $0x150] sm:$0xff]
    %v451 = vld [vmem:[#allocation10 + $0x158] sm:$0xff]
    %v452 = vld [vmem:[#allocation10 + $0x160] sm:$0xff]
    %v453 = vld [vmem:[#allocation10 + $0x168] sm:$0xff]
    %v454 = vld [vmem:[#allocation10 + $0x170] sm:$0xff]
    %v455 = vld [vmem:[#allocation10 + $0x178] sm:$0xff]
    %v457 = vlaneseq
    %v458 = vshrl.u32 %v457, 7
    %v459 = vsub.s32 0, %v458
    %v460 = vrot.slane %v400, %v459
    %v461 = vlaneseq
    %v462 = vshrl.u32 %v461, 7
    %v463 = vsub.s32 1, %v462
    %v464 = vrot.slane %v400, %v463
    %v465 = vlaneseq
    %v466 = vshrl.u32 %v465, 7
    %v467 = vsub.s32 2, %v466
    %v468 = vrot.slane %v400, %v467
    %472 = vmatprep.subr.mxu0 %v409
    %473 = vmatpush1.msra.mxu0 %v408
    %474 = vmatprep.subr.mxu0 %v412
    %475 = vmatpush1.msra.mxu0 %v411
    %476 = vmatprep.subr.mxu0 %v415
    %477 = vmatpush1.msra.mxu0 %v414
    %478 = vmatprep.subr.mxu0 %v418
    %479 = vmatpush1.msra.mxu0 %v417
    %480 = vmatprep.subr.mxu0 %v421
    %481 = vmatpush1.msra.mxu0 %v420
    %482 = vmatprep.subr.mxu0 %v424
    %483 = vmatpush1.msra.mxu0 %v423
    %484 = vmatprep.subr.mxu0 %v427
    %485 = vmatpush1.msra.mxu0 %v426
    %486 = vmatprep.subr.mxu0 %v430
    %487 = vmatpush1.msra.mxu0 %v429
    %488 = vmatprep.subr.mxu0 %v433
    %489 = vmatpush1.msra.mxu0 %v432
    %490 = vmatprep.subr.mxu0 %v436
    %491 = vmatpush1.msra.mxu0 %v435
    %492 = vmatprep.subr.mxu0 %v439
    %493 = vmatpush1.msra.mxu0 %v438
    %494 = vmatprep.subr.mxu0 %v442
    %495 = vmatpush1.msra.mxu0 %v441
    %496 = vmatprep.subr.mxu0 %v445
    %497 = vmatpush1.msra.mxu0 %v444
    %498 = vmatprep.subr.mxu0 %v448
    %499 = vmatpush1.msra.mxu0 %v447
    %500 = vmatprep.subr.mxu0 %v451
    %501 = vmatpush1.msra.mxu0 %v450
    %502 = vmatprep.subr.mxu0 %v454
    %503 = vmatpush1.msra.mxu0 %v453
    %504 = vmatprep.subr.mxu0 0.0
    %505 = vmatpush1.msra.mxu0 0.0
    %506 = vmatprep.subr.mxu0 0.0
    %507 = vmatpush1.msra.mxu0 0.0
    %508 = vmatprep.subr.mxu0 0.0
    %509 = vmatpush1.msra.mxu0 0.0
    %510 = vmatprep.subr.mxu0 0.0
    %511 = vmatpush1.msra.mxu0 0.0
    %512 = vmatprep.subr.mxu0 0.0
    %513 = vmatpush1.msra.mxu0 0.0
    %514 = vmatprep.subr.mxu0 0.0
    %515 = vmatpush1.msra.mxu0 0.0
    %516 = vmatprep.subr.mxu0 0.0
    %517 = vmatpush1.msra.mxu0 0.0
    %518 = vmatprep.subr.mxu0 0.0
    %519 = vmatpush1.msra.mxu0 0.0
    %520 = vmatprep.subr.mxu0 0.0
    %521 = vmatpush1.msra.mxu0 0.0
    %522 = vmatprep.subr.mxu0 0.0
    %523 = vmatpush1.msra.mxu0 0.0
    %524 = vmatprep.subr.mxu0 0.0
    %525 = vmatpush1.msra.mxu0 0.0
    %526 = vmatprep.subr.mxu0 0.0
    %527 = vmatpush1.msra.mxu0 0.0
    %528 = vmatprep.subr.mxu0 0.0
    %529 = vmatpush1.msra.mxu0 0.0
    %530 = vmatprep.subr.mxu0 0.0
    %531 = vmatpush1.msra.mxu0 0.0
    %532 = vmatprep.subr.mxu0 0.0
    %533 = vmatpush1.msra.mxu0 0.0
    %534 = vmatprep.subr.mxu0 0.0
    %535 = vmatpush1.msra.mxu0 0.0
    %536 = vmatprep.mubr.f32.mxu0 0.0
    %537 = vmatmul.mubr.f32.gmra.mrb[0].mxu0 %v403
    %v538 = vpop.f32.mrb[0].mxu0
    %v539 = vadd.f32 %v460, %v538
    %v540 = vpop.f32.mrb[0].mxu0
    %v541 = vadd.f32 %v464, %v540
    %542 = vdwg.mxu0
    %543 = vmatprep.subr.mxu0 0.0
    %544 = vmatpush1.msra.mxu0 %v410
    %545 = vmatprep.subr.mxu0 0.0
    %546 = vmatpush1.msra.mxu0 %v413
    %547 = vmatprep.subr.mxu0 0.0
    %548 = vmatpush1.msra.mxu0 %v416
    %549 = vmatprep.subr.mxu0 0.0
    %550 = vmatpush1.msra.mxu0 %v419
    %551 = vmatprep.subr.mxu0 0.0
    %552 = vmatpush1.msra.mxu0 %v422
    %553 = vmatprep.subr.mxu0 0.0
    %554 = vmatpush1.msra.mxu0 %v425
    %555 = vmatprep.subr.mxu0 0.0
    %556 = vmatpush1.msra.mxu0 %v428
    %557 = vmatprep.subr.mxu0 0.0
    %558 = vmatpush1.msra.mxu0 %v431
    %559 = vmatprep.subr.mxu0 0.0
    %560 = vmatpush1.msra.mxu0 %v434
    %561 = vmatprep.subr.mxu0 0.0
    %562 = vmatpush1.msra.mxu0 %v437
    %563 = vmatprep.subr.mxu0 0.0
    %564 = vmatpush1.msra.mxu0 %v440
    %565 = vmatprep.subr.mxu0 0.0
    %566 = vmatpush1.msra.mxu0 %v443
    %567 = vmatprep.subr.mxu0 0.0
    %568 = vmatpush1.msra.mxu0 %v446
    %569 = vmatprep.subr.mxu0 0.0
    %570 = vmatpush1.msra.mxu0 %v449
    %571 = vmatprep.subr.mxu0 0.0
    %572 = vmatpush1.msra.mxu0 %v452
    %573 = vmatprep.subr.mxu0 0.0
    %574 = vmatpush1.msra.mxu0 %v455
    %575 = vmatprep.subr.mxu0 0.0
    %576 = vmatpush1.msra.mxu0 0.0
    %577 = vmatprep.subr.mxu0 0.0
    %578 = vmatpush1.msra.mxu0 0.0
    %579 = vmatprep.subr.mxu0 0.0
    %580 = vmatpush1.msra.mxu0 0.0
    %581 = vmatprep.subr.mxu0 0.0
    %582 = vmatpush1.msra.mxu0 0.0
    %583 = vmatprep.subr.mxu0 0.0
    %584 = vmatpush1.msra.mxu0 0.0
    %585 = vmatprep.subr.mxu0 0.0
    %586 = vmatpush1.msra.mxu0 0.0
    %587 = vmatprep.subr.mxu0 0.0
    %588 = vmatpush1.msra.mxu0 0.0
    %589 = vmatprep.subr.mxu0 0.0
    %590 = vmatpush1.msra.mxu0 0.0
    %591 = vmatprep.subr.mxu0 0.0
    %592 = vmatpush1.msra.mxu0 0.0
    %593 = vmatprep.subr.mxu0 0.0
    %594 = vmatpush1.msra.mxu0 0.0
    %595 = vmatprep.subr.mxu0 0.0
    %596 = vmatpush1.msra.mxu0 0.0
    %597 = vmatprep.subr.mxu0 0.0
    %598 = vmatpush1.msra.mxu0 0.0
    %599 = vmatprep.subr.mxu0 0.0
    %600 = vmatpush1.msra.mxu0 0.0
    %601 = vmatprep.subr.mxu0 0.0
    %602 = vmatpush1.msra.mxu0 0.0
    %603 = vmatprep.subr.mxu0 0.0
    %604 = vmatpush1.msra.mxu0 0.0
    %605 = vmatprep.subr.mxu0 0.0
    %606 = vmatpush1.msra.mxu0 0.0
    %607 = vmatprep.mubr.f32.mxu0 0.0
    %608 = vmatmul.mubr.f32.gmra.mrb[0].mxu0 %v403
    %v609 = vpop.f32.mrb[0].mxu0
    %v610 = vadd.f32 %v468, %v609
    %v611 = vpop.f32.mrb[0].mxu0
    %612 = vdwg.mxu0
    %v613 = vadd.f32 %v405, %v539
    %v614 = vxor.u32 %v613, 2147483648
    %v615 = vmul.f32 %v614, 1.442695
    %v616 = vpow.pop %v615
    %v617 = vadd.f32 %v616, 1.0
    %v618 = vrcp.pop %v617
    %v619 = vmul.f32 1.0, %v618
    %v620 = vadd.f32 %v406, %v541
    %v621 = vxor.u32 %v620, 2147483648
    %v622 = vmul.f32 %v621, 1.442695
    %v623 = vpow.pop %v622
    %v624 = vadd.f32 %v623, 1.0
    %v625 = vrcp.pop %v624
    %v626 = vmul.f32 1.0, %v625
    %v627 = vmul.f32 %v619, %v610
    %v628 = vadd.f32 %v407, %v627
    %v629 = vtanh.pop %v628
    %v630 = vsub.f32 1.0, %v626
    %v631 = vmul.f32 %v630, %v629
    %v632 = vmul.f32 %v626, %v403
    %v633 = vadd.f32 %v631, %v632
    %v634 = vld [vmem:[#allocation11] sm:$0xff]
    %v635 = vld [vmem:[#allocation11 + $0x8] sm:$0xff]
    %v636 = vld [vmem:[#allocation11 + $0x10] sm:$0xff]
    %v637 = vld [vmem:[#allocation11 + $0x18] sm:$0xff]
    %v638 = vld [vmem:[#allocation11 + $0x20] sm:$0xff]
    %v639 = vld [vmem:[#allocation11 + $0x28] sm:$0xff]
    %v640 = vld [vmem:[#allocation11 + $0x30] sm:$0xff]
    %v641 = vld [vmem:[#allocation11 + $0x38] sm:$0xff]
    %v642 = vld [vmem:[#allocation11 + $0x40] sm:$0xff]
    %v643 = vld [vmem:[#allocation11 + $0x48] sm:$0xff]
    %v644 = vld [vmem:[#allocation11 + $0x50] sm:$0xff]
    %v645 = vld [vmem:[#allocation11 + $0x58] sm:$0xff]
    %v646 = vld [vmem:[#allocation11 + $0x60] sm:$0xff]
    %v647 = vld [vmem:[#allocation11 + $0x68] sm:$0xff]
    %v648 = vld [vmem:[#allocation11 + $0x70] sm:$0xff]
    %v649 = vld [vmem:[#allocation11 + $0x78] sm:$0xff]
    %v650 = vld [vmem:[#allocation11 + $0x80] sm:$0xff]
    %v651 = vld [vmem:[#allocation11 + $0x88] sm:$0xff]
    %v652 = vld [vmem:[#allocation11 + $0x90] sm:$0xff]
    %v653 = vld [vmem:[#allocation11 + $0x98] sm:$0xff]
    %v654 = vld [vmem:[#allocation11 + $0xa0] sm:$0xff]
    %v655 = vld [vmem:[#allocation11 + $0xa8] sm:$0xff]
    %v656 = vld [vmem:[#allocation11 + $0xb0] sm:$0xff]
    %v657 = vld [vmem:[#allocation11 + $0xb8] sm:$0xff]
    %v658 = vld [vmem:[#allocation11 + $0xc0] sm:$0xff]
    %v659 = vld [vmem:[#allocation11 + $0xc8] sm:$0xff]
    %v660 = vld [vmem:[#allocation11 + $0xd0] sm:$0xff]
    %v661 = vld [vmem:[#allocation11 + $0xd8] sm:$0xff]
    %v662 = vld [vmem:[#allocation11 + $0xe0] sm:$0xff]
    %v663 = vld [vmem:[#allocation11 + $0xe8] sm:$0xff]
    %v664 = vld [vmem:[#allocation11 + $0xf0] sm:$0xff]
    %v665 = vld [vmem:[#allocation11 + $0xf8] sm:$0xff]
    %v666 = vld [vmem:[#allocation11 + $0x100] sm:$0xff]
    %v667 = vld [vmem:[#allocation11 + $0x108] sm:$0xff]
    %v668 = vld [vmem:[#allocation11 + $0x110] sm:$0xff]
    %v669 = vld [vmem:[#allocation11 + $0x118] sm:$0xff]
    %v670 = vld [vmem:[#allocation11 + $0x120] sm:$0xff]
    %v671 = vld [vmem:[#allocation11 + $0x128] sm:$0xff]
    %v672 = vld [vmem:[#allocation11 + $0x130] sm:$0xff]
    %v673 = vld [vmem:[#allocation11 + $0x138] sm:$0xff]
    %v674 = vld [vmem:[#allocation11 + $0x140] sm:$0xff]
    %v675 = vld [vmem:[#allocation11 + $0x148] sm:$0xff]
    %v676 = vld [vmem:[#allocation11 + $0x150] sm:$0xff]
    %v677 = vld [vmem:[#allocation11 + $0x158] sm:$0xff]
    %v678 = vld [vmem:[#allocation11 + $0x160] sm:$0xff]
    %v679 = vld [vmem:[#allocation11 + $0x168] sm:$0xff]
    %v680 = vld [vmem:[#allocation11 + $0x170] sm:$0xff]
    %v681 = vld [vmem:[#allocation11 + $0x178] sm:$0xff]
    %v683 = vlaneseq
    %v684 = vshrl.u32 %v683, 7
    %v685 = vsub.s32 0, %v684
    %v686 = vrot.slane %v401, %v685
    %v687 = vlaneseq
    %v688 = vshrl.u32 %v687, 7
    %v689 = vsub.s32 1, %v688
    %v690 = vrot.slane %v401, %v689
    %v691 = vlaneseq
    %v692 = vshrl.u32 %v691, 7
    %v693 = vsub.s32 2, %v692
    %v694 = vrot.slane %v401, %v693
    %698 = vmatprep.subr.mxu0 %v635
    %699 = vmatpush1.msra.mxu0 %v634
    %700 = vmatprep.subr.mxu0 %v638
    %701 = vmatpush1.msra.mxu0 %v637
    %702 = vmatprep.subr.mxu0 %v641
    %703 = vmatpush1.msra.mxu0 %v640
    %704 = vmatprep.subr.mxu0 %v644
    %705 = vmatpush1.msra.mxu0 %v643
    %706 = vmatprep.subr.mxu0 %v647
    %707 = vmatpush1.msra.mxu0 %v646
    %708 = vmatprep.subr.mxu0 %v650
    %709 = vmatpush1.msra.mxu0 %v649
    %710 = vmatprep.subr.mxu0 %v653
    %711 = vmatpush1.msra.mxu0 %v652
    %712 = vmatprep.subr.mxu0 %v656
    %713 = vmatpush1.msra.mxu0 %v655
    %714 = vmatprep.subr.mxu0 %v659
    %715 = vmatpush1.msra.mxu0 %v658
    %716 = vmatprep.subr.mxu0 %v662
    %717 = vmatpush1.msra.mxu0 %v661
    %718 = vmatprep.subr.mxu0 %v665
    %719 = vmatpush1.msra.mxu0 %v664
    %720 = vmatprep.subr.mxu0 %v668
    %721 = vmatpush1.msra.mxu0 %v667
    %722 = vmatprep.subr.mxu0 %v671
    %723 = vmatpush1.msra.mxu0 %v670
    %724 = vmatprep.subr.mxu0 %v674
    %725 = vmatpush1.msra.mxu0 %v673
    %726 = vmatprep.subr.mxu0 %v677
    %727 = vmatpush1.msra.mxu0 %v676
    %728 = vmatprep.subr.mxu0 %v680
    %729 = vmatpush1.msra.mxu0 %v679
    %730 = vmatprep.subr.mxu0 0.0
    %731 = vmatpush1.msra.mxu0 0.0
    %732 = vmatprep.subr.mxu0 0.0
    %733 = vmatpush1.msra.mxu0 0.0
    %734 = vmatprep.subr.mxu0 0.0
    %735 = vmatpush1.msra.mxu0 0.0
    %736 = vmatprep.subr.mxu0 0.0
    %737 = vmatpush1.msra.mxu0 0.0
    %738 = vmatprep.subr.mxu0 0.0
    %739 = vmatpush1.msra.mxu0 0.0
    %740 = vmatprep.subr.mxu0 0.0
    %741 = vmatpush1.msra.mxu0 0.0
    %742 = vmatprep.subr.mxu0 0.0
    %743 = vmatpush1.msra.mxu0 0.0
    %744 = vmatprep.subr.mxu0 0.0
    %745 = vmatpush1.msra.mxu0 0.0
    %746 = vmatprep.subr.mxu0 0.0
    %747 = vmatpush1.msra.mxu0 0.0
    %748 = vmatprep.subr.mxu0 0.0
    %749 = vmatpush1.msra.mxu0 0.0
    %750 = vmatprep.subr.mxu0 0.0
    %751 = vmatpush1.msra.mxu0 0.0
    %752 = vmatprep.subr.mxu0 0.0
    %753 = vmatpush1.msra.mxu0 0.0
    %754 = vmatprep.subr.mxu0 0.0
    %755 = vmatpush1.msra.mxu0 0.0
    %756 = vmatprep.subr.mxu0 0.0
    %757 = vmatpush1.msra.mxu0 0.0
    %758 = vmatprep.subr.mxu0 0.0
    %759 = vmatpush1.msra.mxu0 0.0
    %760 = vmatprep.subr.mxu0 0.0
    %761 = vmatpush1.msra.mxu0 0.0
    %762 = vmatprep.mubr.f32.mxu0 0.0
    %763 = vmatmul.mubr.f32.gmra.mrb[0].mxu0 %v633
    %v764 = vpop.f32.mrb[0].mxu0
    %v765 = vadd.f32 %v686, %v764
    %v766 = vpop.f32.mrb[0].mxu0
    %v767 = vadd.f32 %v690, %v766
    %768 = vdwg.mxu0
    %769 = vmatprep.subr.mxu0 0.0
    %770 = vmatpush1.msra.mxu0 %v636
    %771 = vmatprep.subr.mxu0 0.0
    %772 = vmatpush1.msra.mxu0 %v639
    %773 = vmatprep.subr.mxu0 0.0
    %774 = vmatpush1.msra.mxu0 %v642
    %775 = vmatprep.subr.mxu0 0.0
    %776 = vmatpush1.msra.mxu0 %v645
    %777 = vmatprep.subr.mxu0 0.0
    %778 = vmatpush1.msra.mxu0 %v648
    %779 = vmatprep.subr.mxu0 0.0
    %780 = vmatpush1.msra.mxu0 %v651
    %781 = vmatprep.subr.mxu0 0.0
    %782 = vmatpush1.msra.mxu0 %v654
    %783 = vmatprep.subr.mxu0 0.0
    %784 = vmatpush1.msra.mxu0 %v657
    %785 = vmatprep.subr.mxu0 0.0
    %786 = vmatpush1.msra.mxu0 %v660
    %787 = vmatprep.subr.mxu0 0.0
    %788 = vmatpush1.msra.mxu0 %v663
    %789 = vmatprep.subr.mxu0 0.0
    %790 = vmatpush1.msra.mxu0 %v666
    %791 = vmatprep.subr.mxu0 0.0
    %792 = vmatpush1.msra.mxu0 %v669
    %793 = vmatprep.subr.mxu0 0.0
    %794 = vmatpush1.msra.mxu0 %v672
    %795 = vmatprep.subr.mxu0 0.0
    %796 = vmatpush1.msra.mxu0 %v675
    %797 = vmatprep.subr.mxu0 0.0
    %798 = vmatpush1.msra.mxu0 %v678
    %799 = vmatprep.subr.mxu0 0.0
    %800 = vmatpush1.msra.mxu0 %v681
    %801 = vmatprep.subr.mxu0 0.0
    %802 = vmatpush1.msra.mxu0 0.0
    %803 = vmatprep.subr.mxu0 0.0
    %804 = vmatpush1.msra.mxu0 0.0
    %805 = vmatprep.subr.mxu0 0.0
    %806 = vmatpush1.msra.mxu0 0.0
    %807 = vmatprep.subr.mxu0 0.0
    %808 = vmatpush1.msra.mxu0 0.0
    %809 = vmatprep.subr.mxu0 0.0
    %810 = vmatpush1.msra.mxu0 0.0
    %811 = vmatprep.subr.mxu0 0.0
    %812 = vmatpush1.msra.mxu0 0.0
    %813 = vmatprep.subr.mxu0 0.0
    %814 = vmatpush1.msra.mxu0 0.0
    %815 = vmatprep.subr.mxu0 0.0
    %816 = vmatpush1.msra.mxu0 0.0
    %817 = vmatprep.subr.mxu0 0.0
    %818 = vmatpush1.msra.mxu0 0.0
    %819 = vmatprep.subr.mxu0 0.0
    %820 = vmatpush1.msra.mxu0 0.0
    %821 = vmatprep.subr.mxu0 0.0
    %822 = vmatpush1.msra.mxu0 0.0
    %823 = vmatprep.subr.mxu0 0.0
    %824 = vmatpush1.msra.mxu0 0.0
    %825 = vmatprep.subr.mxu0 0.0
    %826 = vmatpush1.msra.mxu0 0.0
    %827 = vmatprep.subr.mxu0 0.0
    %828 = vmatpush1.msra.mxu0 0.0
    %829 = vmatprep.subr.mxu0 0.0
    %830 = vmatpush1.msra.mxu0 0.0
    %831 = vmatprep.subr.mxu0 0.0
    %832 = vmatpush1.msra.mxu0 0.0
    %833 = vmatprep.mubr.f32.mxu0 0.0
    %834 = vmatmul.mubr.f32.gmra.mrb[0].mxu0 %v633
    %v835 = vpop.f32.mrb[0].mxu0
    %v836 = vadd.f32 %v694, %v835
    %v837 = vpop.f32.mrb[0].mxu0
    %838 = vdwg.mxu0
    %v839 = vld [vmem:[#allocation13] sm:$0xff]
    %v840 = vld [vmem:[#allocation13 + $0x8] sm:$0xff]
    %v841 = vld [vmem:[#allocation13 + $0x10] sm:$0xff]
    %v842 = vld [vmem:[#allocation13 + $0x18] sm:$0xff]
    %v843 = vld [vmem:[#allocation13 + $0x20] sm:$0xff]
    %v844 = vld [vmem:[#allocation13 + $0x28] sm:$0xff]
    %v845 = vld [vmem:[#allocation13 + $0x30] sm:$0xff]
    %v846 = vld [vmem:[#allocation13 + $0x38] sm:$0xff]
    %v847 = vld [vmem:[#allocation13 + $0x40] sm:$0xff]
    %v848 = vld [vmem:[#allocation13 + $0x48] sm:$0xff]
    %v849 = vld [vmem:[#allocation13 + $0x50] sm:$0xff]
    %v850 = vld [vmem:[#allocation13 + $0x58] sm:$0xff]
    %v851 = vld [vmem:[#allocation13 + $0x60] sm:$0xff]
    %v852 = vld [vmem:[#allocation13 + $0x68] sm:$0xff]
    %v853 = vld [vmem:[#allocation13 + $0x70] sm:$0xff]
    %v854 = vld [vmem:[#allocation13 + $0x78] sm:$0xff]
    %v855 = vld [vmem:[#allocation13 + $0x80] sm:$0xff]
    %v856 = vld [vmem:[#allocation13 + $0x88] sm:$0xff]
    %v857 = vld [vmem:[#allocation13 + $0x90] sm:$0xff]
    %v858 = vld [vmem:[#allocation13 + $0x98] sm:$0xff]
    %v859 = vld [vmem:[#allocation13 + $0xa0] sm:$0xff]
    %v860 = vld [vmem:[#allocation13 + $0xa8] sm:$0xff]
    %v861 = vld [vmem:[#allocation13 + $0xb0] sm:$0xff]
    %v862 = vld [vmem:[#allocation13 + $0xb8] sm:$0xff]
    %v863 = vld [vmem:[#allocation13 + $0xc0] sm:$0xff]
    %v864 = vld [vmem:[#allocation13 + $0xc8] sm:$0xff]
    %v865 = vld [vmem:[#allocation13 + $0xd0] sm:$0xff]
    %v866 = vld [vmem:[#allocation13 + $0xd8] sm:$0xff]
    %v867 = vld [vmem:[#allocation13 + $0xe0] sm:$0xff]
    %v868 = vld [vmem:[#allocation13 + $0xe8] sm:$0xff]
    %v869 = vld [vmem:[#allocation13 + $0xf0] sm:$0xff]
    %v870 = vld [vmem:[#allocation13 + $0xf8] sm:$0xff]
    %v871 = vld [vmem:[#allocation13 + $0x100] sm:$0xff]
    %v872 = vld [vmem:[#allocation13 + $0x108] sm:$0xff]
    %v873 = vld [vmem:[#allocation13 + $0x110] sm:$0xff]
    %v874 = vld [vmem:[#allocation13 + $0x118] sm:$0xff]
    %v875 = vld [vmem:[#allocation13 + $0x120] sm:$0xff]
    %v876 = vld [vmem:[#allocation13 + $0x128] sm:$0xff]
    %v877 = vld [vmem:[#allocation13 + $0x130] sm:$0xff]
    %v878 = vld [vmem:[#allocation13 + $0x138] sm:$0xff]
    %v879 = vld [vmem:[#allocation13 + $0x140] sm:$0xff]
    %v880 = vld [vmem:[#allocation13 + $0x148] sm:$0xff]
    %v881 = vld [vmem:[#allocation13 + $0x150] sm:$0xff]
    %v882 = vld [vmem:[#allocation13 + $0x158] sm:$0xff]
    %v883 = vld [vmem:[#allocation13 + $0x160] sm:$0xff]
    %v884 = vld [vmem:[#allocation13 + $0x168] sm:$0xff]
    %v885 = vld [vmem:[#allocation13 + $0x170] sm:$0xff]
    %v886 = vld [vmem:[#allocation13 + $0x178] sm:$0xff]
    %v888 = vlaneseq
    %v889 = vshrl.u32 %v888, 7
    %v890 = vsub.s32 0, %v889
    %v891 = vrot.slane %v402, %v890
    %v892 = vlaneseq
    %v893 = vshrl.u32 %v892, 7
    %v894 = vsub.s32 1, %v893
    %v895 = vrot.slane %v402, %v894
    %v896 = vlaneseq
    %v897 = vshrl.u32 %v896, 7
    %v898 = vsub.s32 2, %v897
    %v899 = vrot.slane %v402, %v898
    %903 = vmatprep.subr.mxu0 %v840
    %904 = vmatpush1.msra.mxu0 %v839
    %905 = vmatprep.subr.mxu0 %v843
    %906 = vmatpush1.msra.mxu0 %v842
    %907 = vmatprep.subr.mxu0 %v846
    %908 = vmatpush1.msra.mxu0 %v845
    %909 = vmatprep.subr.mxu0 %v849
    %910 = vmatpush1.msra.mxu0 %v848
    %911 = vmatprep.subr.mxu0 %v852
    %912 = vmatpush1.msra.mxu0 %v851
    %913 = vmatprep.subr.mxu0 %v855
    %914 = vmatpush1.msra.mxu0 %v854
    %915 = vmatprep.subr.mxu0 %v858
    %916 = vmatpush1.msra.mxu0 %v857
    %917 = vmatprep.subr.mxu0 %v861
    %918 = vmatpush1.msra.mxu0 %v860
    %919 = vmatprep.subr.mxu0 %v864
    %920 = vmatpush1.msra.mxu0 %v863
    %921 = vmatprep.subr.mxu0 %v867
    %922 = vmatpush1.msra.mxu0 %v866
    %923 = vmatprep.subr.mxu0 %v870
    %924 = vmatpush1.msra.mxu0 %v869
    %925 = vmatprep.subr.mxu0 %v873
    %926 = vmatpush1.msra.mxu0 %v872
    %927 = vmatprep.subr.mxu0 %v876
    %928 = vmatpush1.msra.mxu0 %v875
    %929 = vmatprep.subr.mxu0 %v879
    %930 = vmatpush1.msra.mxu0 %v878
    %931 = vmatprep.subr.mxu0 %v882
    %932 = vmatpush1.msra.mxu0 %v881
    %933 = vmatprep.subr.mxu0 %v885
    %934 = vmatpush1.msra.mxu0 %v884
    %935 = vmatprep.subr.mxu0 0.0
    %936 = vmatpush1.msra.mxu0 0.0
    %937 = vmatprep.subr.mxu0 0.0
    %938 = vmatpush1.msra.mxu0 0.0
    %939 = vmatprep.subr.mxu0 0.0
    %940 = vmatpush1.msra.mxu0 0.0
    %941 = vmatprep.subr.mxu0 0.0
    %942 = vmatpush1.msra.mxu0 0.0
    %943 = vmatprep.subr.mxu0 0.0
    %944 = vmatpush1.msra.mxu0 0.0
    %945 = vmatprep.subr.mxu0 0.0
    %946 = vmatpush1.msra.mxu0 0.0
    %947 = vmatprep.subr.mxu0 0.0
    %948 = vmatpush1.msra.mxu0 0.0
    %949 = vmatprep.subr.mxu0 0.0
    %950 = vmatpush1.msra.mxu0 0.0
    %951 = vmatprep.subr.mxu0 0.0
    %952 = vmatpush1.msra.mxu0 0.0
    %953 = vmatprep.subr.mxu0 0.0
    %954 = vmatpush1.msra.mxu0 0.0
    %955 = vmatprep.subr.mxu0 0.0
    %956 = vmatpush1.msra.mxu0 0.0
    %957 = vmatprep.subr.mxu0 0.0
    %958 = vmatpush1.msra.mxu0 0.0
    %959 = vmatprep.subr.mxu0 0.0
    %960 = vmatpush1.msra.mxu0 0.0
    %961 = vmatprep.subr.mxu0 0.0
    %962 = vmatpush1.msra.mxu0 0.0
    %963 = vmatprep.subr.mxu0 0.0
    %964 = vmatpush1.msra.mxu0 0.0
    %965 = vmatprep.subr.mxu0 0.0
    %966 = vmatpush1.msra.mxu0 0.0
    %967 = vmatprep.mubr.f32.mxu0 0.0
    %968 = vmatmul.mubr.f32.gmra.mrb[0].mxu0 %v404
    %v969 = vpop.f32.mrb[0].mxu0
    %v970 = vadd.f32 %v891, %v969
    %v971 = vpop.f32.mrb[0].mxu0
    %v972 = vadd.f32 %v895, %v971
    %973 = vdwg.mxu0
    %974 = vmatprep.subr.mxu0 0.0
    %975 = vmatpush1.msra.mxu0 %v841
    %976 = vmatprep.subr.mxu0 0.0
    %977 = vmatpush1.msra.mxu0 %v844
    %978 = vmatprep.subr.mxu0 0.0
    %979 = vmatpush1.msra.mxu0 %v847
    %980 = vmatprep.subr.mxu0 0.0
    %981 = vmatpush1.msra.mxu0 %v850
    %982 = vmatprep.subr.mxu0 0.0
    %983 = vmatpush1.msra.mxu0 %v853
    %984 = vmatprep.subr.mxu0 0.0
    %985 = vmatpush1.msra.mxu0 %v856
    %986 = vmatprep.subr.mxu0 0.0
    %987 = vmatpush1.msra.mxu0 %v859
    %988 = vmatprep.subr.mxu0 0.0
    %989 = vmatpush1.msra.mxu0 %v862
    %990 = vmatprep.subr.mxu0 0.0
    %991 = vmatpush1.msra.mxu0 %v865
    %992 = vmatprep.subr.mxu0 0.0
    %993 = vmatpush1.msra.mxu0 %v868
    %994 = vmatprep.subr.mxu0 0.0
    %995 = vmatpush1.msra.mxu0 %v871
    %996 = vmatprep.subr.mxu0 0.0
    %997 = vmatpush1.msra.mxu0 %v874
    %998 = vmatprep.subr.mxu0 0.0
    %999 = vmatpush1.msra.mxu0 %v877
    %1000 = vmatprep.subr.mxu0 0.0
    %1001 = vmatpush1.msra.mxu0 %v880
    %1002 = vmatprep.subr.mxu0 0.0
    %1003 = vmatpush1.msra.mxu0 %v883
    %1004 = vmatprep.subr.mxu0 0.0
    %1005 = vmatpush1.msra.mxu0 %v886
    %1006 = vmatprep.subr.mxu0 0.0
    %1007 = vmatpush1.msra.mxu0 0.0
    %1008 = vmatprep.subr.mxu0 0.0
    %1009 = vmatpush1.msra.mxu0 0.0
    %1010 = vmatprep.subr.mxu0 0.0
    %1011 = vmatpush1.msra.mxu0 0.0
    %1012 = vmatprep.subr.mxu0 0.0
    %1013 = vmatpush1.msra.mxu0 0.0
    %1014 = vmatprep.subr.mxu0 0.0
    %1015 = vmatpush1.msra.mxu0 0.0
    %1016 = vmatprep.subr.mxu0 0.0
    %1017 = vmatpush1.msra.mxu0 0.0
    %1018 = vmatprep.subr.mxu0 0.0
    %1019 = vmatpush1.msra.mxu0 0.0
    %1020 = vmatprep.subr.mxu0 0.0
    %1021 = vmatpush1.msra.mxu0 0.0
    %1022 = vmatprep.subr.mxu0 0.0
    %1023 = vmatpush1.msra.mxu0 0.0
    %1024 = vmatprep.subr.mxu0 0.0
    %1025 = vmatpush1.msra.mxu0 0.0
    %1026 = vmatprep.subr.mxu0 0.0
    %1027 = vmatpush1.msra.mxu0 0.0
    %1028 = vmatprep.subr.mxu0 0.0
    %1029 = vmatpush1.msra.mxu0 0.0
    %1030 = vmatprep.subr.mxu0 0.0
    %1031 = vmatpush1.msra.mxu0 0.0
    %1032 = vmatprep.subr.mxu0 0.0
    %1033 = vmatpush1.msra.mxu0 0.0
    %1034 = vmatprep.subr.mxu0 0.0
    %1035 = vmatpush1.msra.mxu0 0.0
    %1036 = vmatprep.subr.mxu0 0.0
    %1037 = vmatpush1.msra.mxu0 0.0
    %1038 = vmatprep.mubr.f32.mxu0 0.0
    %1039 = vmatmul.mubr.f32.gmra.mrb[0].mxu0 %v404
    %v1040 = vpop.f32.mrb[0].mxu0
    %v1041 = vadd.f32 %v899, %v1040
    %v1042 = vpop.f32.mrb[0].mxu0
    %1043 = vdwg.mxu0
    %v1044 = vadd.f32 %v765, %v970
    %v1045 = vxor.u32 %v1044, 2147483648
    %v1046 = vmul.f32 %v1045, 1.442695
    %v1047 = vpow.pop %v1046
    %v1048 = vadd.f32 %v1047, 1.0
    %v1049 = vrcp.pop %v1048
    %v1050 = vmul.f32 1.0, %v1049
    %v1051 = vadd.f32 %v767, %v972
    %v1052 = vxor.u32 %v1051, 2147483648
    %v1053 = vmul.f32 %v1052, 1.442695
    %v1054 = vpow.pop %v1053
    %v1055 = vadd.f32 %v1054, 1.0
    %v1056 = vrcp.pop %v1055
    %v1057 = vmul.f32 1.0, %v1056
    %v1058 = vmul.f32 %v1050, %v1041
    %v1059 = vadd.f32 %v836, %v1058
    %v1060 = vtanh.pop %v1059
    %v1061 = vsub.f32 1.0, %v1057
    %v1062 = vmul.f32 %v1061, %v1060
    %v1063 = vmul.f32 %v1057, %v404
    %v1064 = vadd.f32 %v1062, %v1063
    %v1065 = vld [vmem:[#allocation2 + $0x18] sm:$0xff]
    %v1066 = vld [vmem:[#allocation2 + $0x20] sm:$0xff]
    %v1067 = vld [vmem:[#allocation2 + $0x28] sm:$0xff]
    %1068 = vmatprep.subr.mxu0 %v409
    %1069 = vmatpush1.msra.mxu0 %v408
    %1070 = vmatprep.subr.mxu0 %v412
    %1071 = vmatpush1.msra.mxu0 %v411
    %1072 = vmatprep.subr.mxu0 %v415
    %1073 = vmatpush1.msra.mxu0 %v414
    %1074 = vmatprep.subr.mxu0 %v418
    %1075 = vmatpush1.msra.mxu0 %v417
    %1076 = vmatprep.subr.mxu0 %v421
    %1077 = vmatpush1.msra.mxu0 %v420
    %1078 = vmatprep.subr.mxu0 %v424
    %1079 = vmatpush1.msra.mxu0 %v423
    %1080 = vmatprep.subr.mxu0 %v427
    %1081 = vmatpush1.msra.mxu0 %v426
    %1082 = vmatprep.subr.mxu0 %v430
    %1083 = vmatpush1.msra.mxu0 %v429
    %1084 = vmatprep.subr.mxu0 %v433
    %1085 = vmatpush1.msra.mxu0 %v432
    %1086 = vmatprep.subr.mxu0 %v436
    %1087 = vmatpush1.msra.mxu0 %v435
    %1088 = vmatprep.subr.mxu0 %v439
    %1089 = vmatpush1.msra.mxu0 %v438
    %1090 = vmatprep.subr.mxu0 %v442
    %1091 = vmatpush1.msra.mxu0 %v441
    %1092 = vmatprep.subr.mxu0 %v445
    %1093 = vmatpush1.msra.mxu0 %v444
    %1094 = vmatprep.subr.mxu0 %v448
    %1095 = vmatpush1.msra.mxu0 %v447
    %1096 = vmatprep.subr.mxu0 %v451
    %1097 = vmatpush1.msra.mxu0 %v450
    %1098 = vmatprep.subr.mxu0 %v454
    %1099 = vmatpush1.msra.mxu0 %v453
    %1100 = vmatprep.subr.mxu0 0.0
    %1101 = vmatpush1.msra.mxu0 0.0
    %1102 = vmatprep.subr.mxu0 0.0
    %1103 = vmatpush1.msra.mxu0 0.0
    %1104 = vmatprep.subr.mxu0 0.0
    %1105 = vmatpush1.msra.mxu0 0.0
    %1106 = vmatprep.subr.mxu0 0.0
    %1107 = vmatpush1.msra.mxu0 0.0
    %1108 = vmatprep.subr.mxu0 0.0
    %1109 = vmatpush1.msra.mxu0 0.0
    %1110 = vmatprep.subr.mxu0 0.0
    %1111 = vmatpush1.msra.mxu0 0.0
    %1112 = vmatprep.subr.mxu0 0.0
    %1113 = vmatpush1.msra.mxu0 0.0
    %1114 = vmatprep.subr.mxu0 0.0
    %1115 = vmatpush1.msra.mxu0 0.0
    %1116 = vmatprep.subr.mxu0 0.0
    %1117 = vmatpush1.msra.mxu0 0.0
    %1118 = vmatprep.subr.mxu0 0.0
    %1119 = vmatpush1.msra.mxu0 0.0
    %1120 = vmatprep.subr.mxu0 0.0
    %1121 = vmatpush1.msra.mxu0 0.0
    %1122 = vmatprep.subr.mxu0 0.0
    %1123 = vmatpush1.msra.mxu0 0.0
    %1124 = vmatprep.subr.mxu0 0.0
    %1125 = vmatpush1.msra.mxu0 0.0
    %1126 = vmatprep.subr.mxu0 0.0
    %1127 = vmatpush1.msra.mxu0 0.0
    %1128 = vmatprep.subr.mxu0 0.0
    %1129 = vmatpush1.msra.mxu0 0.0
    %1130 = vmatprep.subr.mxu0 0.0
    %1131 = vmatpush1.msra.mxu0 0.0
    %1132 = vmatprep.mubr.f32.mxu0 0.0
    %1133 = vmatmul.mubr.f32.gmra.mrb[0].mxu0 %v633
    %v1134 = vpop.f32.mrb[0].mxu0
    %v1135 = vadd.f32 %v460, %v1134
    %v1136 = vpop.f32.mrb[0].mxu0
    %v1137 = vadd.f32 %v464, %v1136
    %1138 = vdwg.mxu0
    %1139 = vmatprep.subr.mxu0 0.0
    %1140 = vmatpush1.msra.mxu0 %v410
    %1141 = vmatprep.subr.mxu0 0.0
    %1142 = vmatpush1.msra.mxu0 %v413
    %1143 = vmatprep.subr.mxu0 0.0
    %1144 = vmatpush1.msra.mxu0 %v416
    %1145 = vmatprep.subr.mxu0 0.0
    %1146 = vmatpush1.msra.mxu0 %v419
    %1147 = vmatprep.subr.mxu0 0.0
    %1148 = vmatpush1.msra.mxu0 %v422
    %1149 = vmatprep.subr.mxu0 0.0
    %1150 = vmatpush1.msra.mxu0 %v425
    %1151 = vmatprep.subr.mxu0 0.0
    %1152 = vmatpush1.msra.mxu0 %v428
    %1153 = vmatprep.subr.mxu0 0.0
    %1154 = vmatpush1.msra.mxu0 %v431
    %1155 = vmatprep.subr.mxu0 0.0
    %1156 = vmatpush1.msra.mxu0 %v434
    %1157 = vmatprep.subr.mxu0 0.0
    %1158 = vmatpush1.msra.mxu0 %v437
    %1159 = vmatprep.subr.mxu0 0.0
    %1160 = vmatpush1.msra.mxu0 %v440
    %1161 = vmatprep.subr.mxu0 0.0
    %1162 = vmatpush1.msra.mxu0 %v443
    %1163 = vmatprep.subr.mxu0 0.0
    %1164 = vmatpush1.msra.mxu0 %v446
    %1165 = vmatprep.subr.mxu0 0.0
    %1166 = vmatpush1.msra.mxu0 %v449
    %1167 = vmatprep.subr.mxu0 0.0
    %1168 = vmatpush1.msra.mxu0 %v452
    %1169 = vmatprep.subr.mxu0 0.0
    %1170 = vmatpush1.msra.mxu0 %v455
    %1171 = vmatprep.subr.mxu0 0.0
    %1172 = vmatpush1.msra.mxu0 0.0
    %1173 = vmatprep.subr.mxu0 0.0
    %1174 = vmatpush1.msra.mxu0 0.0
    %1175 = vmatprep.subr.mxu0 0.0
    %1176 = vmatpush1.msra.mxu0 0.0
    %1177 = vmatprep.subr.mxu0 0.0
    %1178 = vmatpush1.msra.mxu0 0.0
    %1179 = vmatprep.subr.mxu0 0.0
    %1180 = vmatpush1.msra.mxu0 0.0
    %1181 = vmatprep.subr.mxu0 0.0
    %1182 = vmatpush1.msra.mxu0 0.0
    %1183 = vmatprep.subr.mxu0 0.0
    %1184 = vmatpush1.msra.mxu0 0.0
    %1185 = vmatprep.subr.mxu0 0.0
    %1186 = vmatpush1.msra.mxu0 0.0
    %1187 = vmatprep.subr.mxu0 0.0
    %1188 = vmatpush1.msra.mxu0 0.0
    %1189 = vmatprep.subr.mxu0 0.0
    %1190 = vmatpush1.msra.mxu0 0.0
    %1191 = vmatprep.subr.mxu0 0.0
    %1192 = vmatpush1.msra.mxu0 0.0
    %1193 = vmatprep.subr.mxu0 0.0
    %1194 = vmatpush1.msra.mxu0 0.0
    %1195 = vmatprep.subr.mxu0 0.0
    %1196 = vmatpush1.msra.mxu0 0.0
    %1197 = vmatprep.subr.mxu0 0.0
    %1198 = vmatpush1.msra.mxu0 0.0
    %1199 = vmatprep.subr.mxu0 0.0
    %1200 = vmatpush1.msra.mxu0 0.0
    %1201 = vmatprep.subr.mxu0 0.0
    %1202 = vmatpush1.msra.mxu0 0.0
    %1203 = vmatprep.mubr.f32.mxu0 0.0
    %1204 = vmatmul.mubr.f32.gmra.mrb[0].mxu0 %v633
    %v1205 = vpop.f32.mrb[0].mxu0
    %v1206 = vadd.f32 %v468, %v1205
    %v1207 = vpop.f32.mrb[0].mxu0
    %1208 = vdwg.mxu0
    %v1209 = vadd.f32 %v1065, %v1135
    %v1210 = vxor.u32 %v1209, 2147483648
    %v1211 = vmul.f32 %v1210, 1.442695
    %v1212 = vpow.pop %v1211
    %v1213 = vadd.f32 %v1212, 1.0
    %v1214 = vrcp.pop %v1213
    %v1215 = vmul.f32 1.0, %v1214
    %v1216 = vadd.f32 %v1066, %v1137
    %v1217 = vxor.u32 %v1216, 2147483648
    %v1218 = vmul.f32 %v1217, 1.442695
    %v1219 = vpow.pop %v1218
    %v1220 = vadd.f32 %v1219, 1.0
    %v1221 = vrcp.pop %v1220
    %v1222 = vmul.f32 1.0, %v1221
    %v1223 = vmul.f32 %v1215, %v1206
    %v1224 = vadd.f32 %v1067, %v1223
    %v1225 = vtanh.pop %v1224
    %v1226 = vsub.f32 1.0, %v1222
    %v1227 = vmul.f32 %v1226, %v1225
    %v1228 = vmul.f32 %v1222, %v633
    %v1229 = vadd.f32 %v1227, %v1228
    %1230 = vmatprep.subr.mxu0 %v635
    %1231 = vmatpush1.msra.mxu0 %v634
    %1232 = vmatprep.subr.mxu0 %v638
    %1233 = vmatpush1.msra.mxu0 %v637
    %1234 = vmatprep.subr.mxu0 %v641
    %1235 = vmatpush1.msra.mxu0 %v640
    %1236 = vmatprep.subr.mxu0 %v644
    %1237 = vmatpush1.msra.mxu0 %v643
    %1238 = vmatprep.subr.mxu0 %v647
    %1239 = vmatpush1.msra.mxu0 %v646
    %1240 = vmatprep.subr.mxu0 %v650
    %1241 = vmatpush1.msra.mxu0 %v649
    %1242 = vmatprep.subr.mxu0 %v653
    %1243 = vmatpush1.msra.mxu0 %v652
    %1244 = vmatprep.subr.mxu0 %v656
    %1245 = vmatpush1.msra.mxu0 %v655
    %1246 = vmatprep.subr.mxu0 %v659
    %1247 = vmatpush1.msra.mxu0 %v658
    %1248 = vmatprep.subr.mxu0 %v662
    %1249 = vmatpush1.msra.mxu0 %v661
    %1250 = vmatprep.subr.mxu0 %v665
    %1251 = vmatpush1.msra.mxu0 %v664
    %1252 = vmatprep.subr.mxu0 %v668
    %1253 = vmatpush1.msra.mxu0 %v667
    %1254 = vmatprep.subr.mxu0 %v671
    %1255 = vmatpush1.msra.mxu0 %v670
    %1256 = vmatprep.subr.mxu0 %v674
    %1257 = vmatpush1.msra.mxu0 %v673
    %1258 = vmatprep.subr.mxu0 %v677
    %1259 = vmatpush1.msra.mxu0 %v676
    %1260 = vmatprep.subr.mxu0 %v680
    %1261 = vmatpush1.msra.mxu0 %v679
    %1262 = vmatprep.subr.mxu0 0.0
    %1263 = vmatpush1.msra.mxu0 0.0
    %1264 = vmatprep.subr.mxu0 0.0
    %1265 = vmatpush1.msra.mxu0 0.0
    %1266 = vmatprep.subr.mxu0 0.0
    %1267 = vmatpush1.msra.mxu0 0.0
    %1268 = vmatprep.subr.mxu0 0.0
    %1269 = vmatpush1.msra.mxu0 0.0
    %1270 = vmatprep.subr.mxu0 0.0
    %1271 = vmatpush1.msra.mxu0 0.0
    %1272 = vmatprep.subr.mxu0 0.0
    %1273 = vmatpush1.msra.mxu0 0.0
    %1274 = vmatprep.subr.mxu0 0.0
    %1275 = vmatpush1.msra.mxu0 0.0
    %1276 = vmatprep.subr.mxu0 0.0
    %1277 = vmatpush1.msra.mxu0 0.0
    %1278 = vmatprep.subr.mxu0 0.0
    %1279 = vmatpush1.msra.mxu0 0.0
    %1280 = vmatprep.subr.mxu0 0.0
    %1281 = vmatpush1.msra.mxu0 0.0
    %1282 = vmatprep.subr.mxu0 0.0
    %1283 = vmatpush1.msra.mxu0 0.0
    %1284 = vmatprep.subr.mxu0 0.0
    %1285 = vmatpush1.msra.mxu0 0.0
    %1286 = vmatprep.subr.mxu0 0.0
    %1287 = vmatpush1.msra.mxu0 0.0
    %1288 = vmatprep.subr.mxu0 0.0
    %1289 = vmatpush1.msra.mxu0 0.0
    %1290 = vmatprep.subr.mxu0 0.0
    %1291 = vmatpush1.msra.mxu0 0.0
    %1292 = vmatprep.subr.mxu0 0.0
    %1293 = vmatpush1.msra.mxu0 0.0
    %1294 = vmatprep.mubr.f32.mxu0 0.0
    %1295 = vmatmul.mubr.f32.gmra.mrb[0].mxu0 %v1229
    %v1296 = vpop.f32.mrb[0].mxu0
    %v1297 = vadd.f32 %v686, %v1296
    %v1298 = vpop.f32.mrb[0].mxu0
    %v1299 = vadd.f32 %v690, %v1298
    %1300 = vdwg.mxu0
    %1301 = vmatprep.subr.mxu0 0.0
    %1302 = vmatpush1.msra.mxu0 %v636
    %1303 = vmatprep.subr.mxu0 0.0
    %1304 = vmatpush1.msra.mxu0 %v639
    %1305 = vmatprep.subr.mxu0 0.0
    %1306 = vmatpush1.msra.mxu0 %v642
    %1307 = vmatprep.subr.mxu0 0.0
    %1308 = vmatpush1.msra.mxu0 %v645
    %1309 = vmatprep.subr.mxu0 0.0
    %1310 = vmatpush1.msra.mxu0 %v648
    %1311 = vmatprep.subr.mxu0 0.0
    %1312 = vmatpush1.msra.mxu0 %v651
    %1313 = vmatprep.subr.mxu0 0.0
    %1314 = vmatpush1.msra.mxu0 %v654
    %1315 = vmatprep.subr.mxu0 0.0
    %1316 = vmatpush1.msra.mxu0 %v657
    %1317 = vmatprep.subr.mxu0 0.0
    %1318 = vmatpush1.msra.mxu0 %v660
    %1319 = vmatprep.subr.mxu0 0.0
    %1320 = vmatpush1.msra.mxu0 %v663
    %1321 = vmatprep.subr.mxu0 0.0
    %1322 = vmatpush1.msra.mxu0 %v666
    %1323 = vmatprep.subr.mxu0 0.0
    %1324 = vmatpush1.msra.mxu0 %v669
    %1325 = vmatprep.subr.mxu0 0.0
    %1326 = vmatpush1.msra.mxu0 %v672
    %1327 = vmatprep.subr.mxu0 0.0
    %1328 = vmatpush1.msra.mxu0 %v675
    %1329 = vmatprep.subr.mxu0 0.0
    %1330 = vmatpush1.msra.mxu0 %v678
    %1331 = vmatprep.subr.mxu0 0.0
    %1332 = vmatpush1.msra.mxu0 %v681
    %1333 = vmatprep.subr.mxu0 0.0
    %1334 = vmatpush1.msra.mxu0 0.0
    %1335 = vmatprep.subr.mxu0 0.0
    %1336 = vmatpush1.msra.mxu0 0.0
    %1337 = vmatprep.subr.mxu0 0.0
    %1338 = vmatpush1.msra.mxu0 0.0
    %1339 = vmatprep.subr.mxu0 0.0
    %1340 = vmatpush1.msra.mxu0 0.0
    %1341 = vmatprep.subr.mxu0 0.0
    %1342 = vmatpush1.msra.mxu0 0.0
    %1343 = vmatprep.subr.mxu0 0.0
    %1344 = vmatpush1.msra.mxu0 0.0
    %1345 = vmatprep.subr.mxu0 0.0
    %1346 = vmatpush1.msra.mxu0 0.0
    %1347 = vmatprep.subr.mxu0 0.0
    %1348 = vmatpush1.msra.mxu0 0.0
    %1349 = vmatprep.subr.mxu0 0.0
    %1350 = vmatpush1.msra.mxu0 0.0
    %1351 = vmatprep.subr.mxu0 0.0
    %1352 = vmatpush1.msra.mxu0 0.0
    %1353 = vmatprep.subr.mxu0 0.0
    %1354 = vmatpush1.msra.mxu0 0.0
    %1355 = vmatprep.subr.mxu0 0.0
    %1356 = vmatpush1.msra.mxu0 0.0
    %1357 = vmatprep.subr.mxu0 0.0
    %1358 = vmatpush1.msra.mxu0 0.0
    %1359 = vmatprep.subr.mxu0 0.0
    %1360 = vmatpush1.msra.mxu0 0.0
    %1361 = vmatprep.subr.mxu0 0.0
    %1362 = vmatpush1.msra.mxu0 0.0
    %1363 = vmatprep.subr.mxu0 0.0
    %1364 = vmatpush1.msra.mxu0 0.0
    %1365 = vmatprep.mubr.f32.mxu0 0.0
    %1366 = vmatmul.mubr.f32.gmra.mrb[0].mxu0 %v1229
    %v1367 = vpop.f32.mrb[0].mxu0
    %v1368 = vadd.f32 %v694, %v1367
    %v1369 = vpop.f32.mrb[0].mxu0
    %1370 = vdwg.mxu0
    %1371 = vmatprep.subr.mxu0 %v840
    %1372 = vmatpush1.msra.mxu0 %v839
    %1373 = vmatprep.subr.mxu0 %v843
    %1374 = vmatpush1.msra.mxu0 %v842
    %1375 = vmatprep.subr.mxu0 %v846
    %1376 = vmatpush1.msra.mxu0 %v845
    %1377 = vmatprep.subr.mxu0 %v849
    %1378 = vmatpush1.msra.mxu0 %v848
    %1379 = vmatprep.subr.mxu0 %v852
    %1380 = vmatpush1.msra.mxu0 %v851
    %1381 = vmatprep.subr.mxu0 %v855
    %1382 = vmatpush1.msra.mxu0 %v854
    %1383 = vmatprep.subr.mxu0 %v858
    %1384 = vmatpush1.msra.mxu0 %v857
    %1385 = vmatprep.subr.mxu0 %v861
    %1386 = vmatpush1.msra.mxu0 %v860
    %1387 = vmatprep.subr.mxu0 %v864
    %1388 = vmatpush1.msra.mxu0 %v863
    %1389 = vmatprep.subr.mxu0 %v867
    %1390 = vmatpush1.msra.mxu0 %v866
    %1391 = vmatprep.subr.mxu0 %v870
    %1392 = vmatpush1.msra.mxu0 %v869
    %1393 = vmatprep.subr.mxu0 %v873
    %1394 = vmatpush1.msra.mxu0 %v872
    %1395 = vmatprep.subr.mxu0 %v876
    %1396 = vmatpush1.msra.mxu0 %v875
    %1397 = vmatprep.subr.mxu0 %v879
    %1398 = vmatpush1.msra.mxu0 %v878
    %1399 = vmatprep.subr.mxu0 %v882
    %1400 = vmatpush1.msra.mxu0 %v881
    %1401 = vmatprep.subr.mxu0 %v885
    %1402 = vmatpush1.msra.mxu0 %v884
    %1403 = vmatprep.subr.mxu0 0.0
    %1404 = vmatpush1.msra.mxu0 0.0
    %1405 = vmatprep.subr.mxu0 0.0
    %1406 = vmatpush1.msra.mxu0 0.0
    %1407 = vmatprep.subr.mxu0 0.0
    %1408 = vmatpush1.msra.mxu0 0.0
    %1409 = vmatprep.subr.mxu0 0.0
    %1410 = vmatpush1.msra.mxu0 0.0
    %1411 = vmatprep.subr.mxu0 0.0
    %1412 = vmatpush1.msra.mxu0 0.0
    %1413 = vmatprep.subr.mxu0 0.0
    %1414 = vmatpush1.msra.mxu0 0.0
    %1415 = vmatprep.subr.mxu0 0.0
    %1416 = vmatpush1.msra.mxu0 0.0
    %1417 = vmatprep.subr.mxu0 0.0
    %1418 = vmatpush1.msra.mxu0 0.0
    %1419 = vmatprep.subr.mxu0 0.0
    %1420 = vmatpush1.msra.mxu0 0.0
    %1421 = vmatprep.subr.mxu0 0.0
    %1422 = vmatpush1.msra.mxu0 0.0
    %1423 = vmatprep.subr.mxu0 0.0
    %1424 = vmatpush1.msra.mxu0 0.0
    %1425 = vmatprep.subr.mxu0 0.0
    %1426 = vmatpush1.msra.mxu0 0.0
    %1427 = vmatprep.subr.mxu0 0.0
    %1428 = vmatpush1.msra.mxu0 0.0
    %1429 = vmatprep.subr.mxu0 0.0
    %1430 = vmatpush1.msra.mxu0 0.0
    %1431 = vmatprep.subr.mxu0 0.0
    %1432 = vmatpush1.msra.mxu0 0.0
    %1433 = vmatprep.subr.mxu0 0.0
    %1434 = vmatpush1.msra.mxu0 0.0
    %1435 = vmatprep.mubr.f32.mxu0 0.0
    %1436 = vmatmul.mubr.f32.gmra.mrb[0].mxu0 %v1064
    %v1437 = vpop.f32.mrb[0].mxu0
    %v1438 = vadd.f32 %v891, %v1437
    %v1439 = vpop.f32.mrb[0].mxu0
    %v1440 = vadd.f32 %v895, %v1439
    %1441 = vdwg.mxu0
    %1442 = vmatprep.subr.mxu0 0.0
    %1443 = vmatpush1.msra.mxu0 %v841
    %1444 = vmatprep.subr.mxu0 0.0
    %1445 = vmatpush1.msra.mxu0 %v844
    %1446 = vmatprep.subr.mxu0 0.0
    %1447 = vmatpush1.msra.mxu0 %v847
    %1448 = vmatprep.subr.mxu0 0.0
    %1449 = vmatpush1.msra.mxu0 %v850
    %1450 = vmatprep.subr.mxu0 0.0
    %1451 = vmatpush1.msra.mxu0 %v853
    %1452 = vmatprep.subr.mxu0 0.0
    %1453 = vmatpush1.msra.mxu0 %v856
    %1454 = vmatprep.subr.mxu0 0.0
    %1455 = vmatpush1.msra.mxu0 %v859
    %1456 = vmatprep.subr.mxu0 0.0
    %1457 = vmatpush1.msra.mxu0 %v862
    %1458 = vmatprep.subr.mxu0 0.0
    %1459 = vmatpush1.msra.mxu0 %v865
    %1460 = vmatprep.subr.mxu0 0.0
    %1461 = vmatpush1.msra.mxu0 %v868
    %1462 = vmatprep.subr.mxu0 0.0
    %1463 = vmatpush1.msra.mxu0 %v871
    %1464 = vmatprep.subr.mxu0 0.0
    %1465 = vmatpush1.msra.mxu0 %v874
    %1466 = vmatprep.subr.mxu0 0.0
    %1467 = vmatpush1.msra.mxu0 %v877
    %1468 = vmatprep.subr.mxu0 0.0
    %1469 = vmatpush1.msra.mxu0 %v880
    %1470 = vmatprep.subr.mxu0 0.0
    %1471 = vmatpush1.msra.mxu0 %v883
    %1472 = vmatprep.subr.mxu0 0.0
    %1473 = vmatpush1.msra.mxu0 %v886
    %1474 = vmatprep.subr.mxu0 0.0
    %1475 = vmatpush1.msra.mxu0 0.0
    %1476 = vmatprep.subr.mxu0 0.0
    %1477 = vmatpush1.msra.mxu0 0.0
    %1478 = vmatprep.subr.mxu0 0.0
    %1479 = vmatpush1.msra.mxu0 0.0
    %1480 = vmatprep.subr.mxu0 0.0
    %1481 = vmatpush1.msra.mxu0 0.0
    %1482 = vmatprep.subr.mxu0 0.0
    %1483 = vmatpush1.msra.mxu0 0.0
    %1484 = vmatprep.subr.mxu0 0.0
    %1485 = vmatpush1.msra.mxu0 0.0
    %1486 = vmatprep.subr.mxu0 0.0
    %1487 = vmatpush1.msra.mxu0 0.0
    %1488 = vmatprep.subr.mxu0 0.0
    %1489 = vmatpush1.msra.mxu0 0.0
    %1490 = vmatprep.subr.mxu0 0.0
    %1491 = vmatpush1.msra.mxu0 0.0
    %1492 = vmatprep.subr.mxu0 0.0
    %1493 = vmatpush1.msra.mxu0 0.0
    %1494 = vmatprep.subr.mxu0 0.0
    %1495 = vmatpush1.msra.mxu0 0.0
    %1496 = vmatprep.subr.mxu0 0.0
    %1497 = vmatpush1.msra.mxu0 0.0
    %1498 = vmatprep.subr.mxu0 0.0
    %1499 = vmatpush1.msra.mxu0 0.0
    %1500 = vmatprep.subr.mxu0 0.0
    %1501 = vmatpush1.msra.mxu0 0.0
    %1502 = vmatprep.subr.mxu0 0.0
    %1503 = vmatpush1.msra.mxu0 0.0
    %1504 = vmatprep.subr.mxu0 0.0
    %1505 = vmatpush1.msra.mxu0 0.0
    %1506 = vmatprep.mubr.f32.mxu0 0.0
    %1507 = vmatmul.mubr.f32.gmra.mrb[0].mxu0 %v1064
    %v1508 = vpop.f32.mrb[0].mxu0
    %v1509 = vadd.f32 %v899, %v1508
    %v1510 = vpop.f32.mrb[0].mxu0
    %1511 = vdwg.mxu0
    %v1512 = vadd.f32 %v1297, %v1438
    %v1513 = vxor.u32 %v1512, 2147483648
    %v1514 = vmul.f32 %v1513, 1.442695
    %v1515 = vpow.pop %v1514
    %v1516 = vadd.f32 %v1515, 1.0
    %v1517 = vrcp.pop %v1516
    %v1518 = vmul.f32 1.0, %v1517
    %v1519 = vadd.f32 %v1299, %v1440
    %v1520 = vxor.u32 %v1519, 2147483648
    %v1521 = vmul.f32 %v1520, 1.442695
    %v1522 = vpow.pop %v1521
    %v1523 = vadd.f32 %v1522, 1.0
    %v1524 = vrcp.pop %v1523
    %v1525 = vmul.f32 1.0, %v1524
    %v1526 = vmul.f32 %v1518, %v1509
    %v1527 = vadd.f32 %v1368, %v1526
    %v1528 = vtanh.pop %v1527
    %v1529 = vsub.f32 1.0, %v1525
    %v1530 = vmul.f32 %v1529, %v1528
    %v1531 = vmul.f32 %v1525, %v1064
    %v1532 = vadd.f32 %v1530, %v1531
    %v1533 = vld [vmem:[#allocation2 + $0x30] sm:$0xff]
    %v1534 = vld [vmem:[#allocation2 + $0x38] sm:$0xff]
    %v1535 = vld [vmem:[#allocation2 + $0x40] sm:$0xff]
    %1536 = vmatprep.subr.mxu0 %v409
    %1537 = vmatpush1.msra.mxu0 %v408
    %1538 = vmatprep.subr.mxu0 %v412
    %1539 = vmatpush1.msra.mxu0 %v411
    %1540 = vmatprep.subr.mxu0 %v415
    %1541 = vmatpush1.msra.mxu0 %v414
    %1542 = vmatprep.subr.mxu0 %v418
    %1543 = vmatpush1.msra.mxu0 %v417
    %1544 = vmatprep.subr.mxu0 %v421
    %1545 = vmatpush1.msra.mxu0 %v420
    %1546 = vmatprep.subr.mxu0 %v424
    %1547 = vmatpush1.msra.mxu0 %v423
    %1548 = vmatprep.subr.mxu0 %v427
    %1549 = vmatpush1.msra.mxu0 %v426
    %1550 = vmatprep.subr.mxu0 %v430
    %1551 = vmatpush1.msra.mxu0 %v429
    %1552 = vmatprep.subr.mxu0 %v433
    %1553 = vmatpush1.msra.mxu0 %v432
    %1554 = vmatprep.subr.mxu0 %v436
    %1555 = vmatpush1.msra.mxu0 %v435
    %1556 = vmatprep.subr.mxu0 %v439
    %1557 = vmatpush1.msra.mxu0 %v438
    %1558 = vmatprep.subr.mxu0 %v442
    %1559 = vmatpush1.msra.mxu0 %v441
    %1560 = vmatprep.subr.mxu0 %v445
    %1561 = vmatpush1.msra.mxu0 %v444
    %1562 = vmatprep.subr.mxu0 %v448
    %1563 = vmatpush1.msra.mxu0 %v447
    %1564 = vmatprep.subr.mxu0 %v451
    %1565 = vmatpush1.msra.mxu0 %v450
    %1566 = vmatprep.subr.mxu0 %v454
    %1567 = vmatpush1.msra.mxu0 %v453
    %1568 = vmatprep.subr.mxu0 0.0
    %1569 = vmatpush1.msra.mxu0 0.0
    %1570 = vmatprep.subr.mxu0 0.0
    %1571 = vmatpush1.msra.mxu0 0.0
    %1572 = vmatprep.subr.mxu0 0.0
    %1573 = vmatpush1.msra.mxu0 0.0
    %1574 = vmatprep.subr.mxu0 0.0
    %1575 = vmatpush1.msra.mxu0 0.0
    %1576 = vmatprep.subr.mxu0 0.0
    %1577 = vmatpush1.msra.mxu0 0.0
    %1578 = vmatprep.subr.mxu0 0.0
    %1579 = vmatpush1.msra.mxu0 0.0
    %1580 = vmatprep.subr.mxu0 0.0
    %1581 = vmatpush1.msra.mxu0 0.0
    %1582 = vmatprep.subr.mxu0 0.0
    %1583 = vmatpush1.msra.mxu0 0.0
    %1584 = vmatprep.subr.mxu0 0.0
    %1585 = vmatpush1.msra.mxu0 0.0
    %1586 = vmatprep.subr.mxu0 0.0
    %1587 = vmatpush1.msra.mxu0 0.0
    %1588 = vmatprep.subr.mxu0 0.0
    %1589 = vmatpush1.msra.mxu0 0.0
    %1590 = vmatprep.subr.mxu0 0.0
    %1591 = vmatpush1.msra.mxu0 0.0
    %1592 = vmatprep.subr.mxu0 0.0
    %1593 = vmatpush1.msra.mxu0 0.0
    %1594 = vmatprep.subr.mxu0 0.0
    %1595 = vmatpush1.msra.mxu0 0.0
    %1596 = vmatprep.subr.mxu0 0.0
    %1597 = vmatpush1.msra.mxu0 0.0
    %1598 = vmatprep.subr.mxu0 0.0
    %1599 = vmatpush1.msra.mxu0 0.0
    %1600 = vmatprep.mubr.f32.mxu0 0.0
    %1601 = vmatmul.mubr.f32.gmra.mrb[0].mxu0 %v1229
    %v1602 = vpop.f32.mrb[0].mxu0
    %v1603 = vadd.f32 %v460, %v1602
    %v1604 = vpop.f32.mrb[0].mxu0
    %v1605 = vadd.f32 %v464, %v1604
    %1606 = vdwg.mxu0
    %1607 = vmatprep.subr.mxu0 0.0
    %1608 = vmatpush1.msra.mxu0 %v410
    %1609 = vmatprep.subr.mxu0 0.0
    %1610 = vmatpush1.msra.mxu0 %v413
    %1611 = vmatprep.subr.mxu0 0.0
    %1612 = vmatpush1.msra.mxu0 %v416
    %1613 = vmatprep.subr.mxu0 0.0
    %1614 = vmatpush1.msra.mxu0 %v419
    %1615 = vmatprep.subr.mxu0 0.0
    %1616 = vmatpush1.msra.mxu0 %v422
    %1617 = vmatprep.subr.mxu0 0.0
    %1618 = vmatpush1.msra.mxu0 %v425
    %1619 = vmatprep.subr.mxu0 0.0
    %1620 = vmatpush1.msra.mxu0 %v428
    %1621 = vmatprep.subr.mxu0 0.0
    %1622 = vmatpush1.msra.mxu0 %v431
    %1623 = vmatprep.subr.mxu0 0.0
    %1624 = vmatpush1.msra.mxu0 %v434
    %1625 = vmatprep.subr.mxu0 0.0
    %1626 = vmatpush1.msra.mxu0 %v437
    %1627 = vmatprep.subr.mxu0 0.0
    %1628 = vmatpush1.msra.mxu0 %v440
    %1629 = vmatprep.subr.mxu0 0.0
    %1630 = vmatpush1.msra.mxu0 %v443
    %1631 = vmatprep.subr.mxu0 0.0
    %1632 = vmatpush1.msra.mxu0 %v446
    %1633 = vmatprep.subr.mxu0 0.0
    %1634 = vmatpush1.msra.mxu0 %v449
    %1635 = vmatprep.subr.mxu0 0.0
    %1636 = vmatpush1.msra.mxu0 %v452
    %1637 = vmatprep.subr.mxu0 0.0
    %1638 = vmatpush1.msra.mxu0 %v455
    %1639 = vmatprep.subr.mxu0 0.0
    %1640 = vmatpush1.msra.mxu0 0.0
    %1641 = vmatprep.subr.mxu0 0.0
    %1642 = vmatpush1.msra.mxu0 0.0
    %1643 = vmatprep.subr.mxu0 0.0
    %1644 = vmatpush1.msra.mxu0 0.0
    %1645 = vmatprep.subr.mxu0 0.0
    %1646 = vmatpush1.msra.mxu0 0.0
    %1647 = vmatprep.subr.mxu0 0.0
    %1648 = vmatpush1.msra.mxu0 0.0
    %1649 = vmatprep.subr.mxu0 0.0
    %1650 = vmatpush1.msra.mxu0 0.0
    %1651 = vmatprep.subr.mxu0 0.0
    %1652 = vmatpush1.msra.mxu0 0.0
    %1653 = vmatprep.subr.mxu0 0.0
    %1654 = vmatpush1.msra.mxu0 0.0
    %1655 = vmatprep.subr.mxu0 0.0
    %1656 = vmatpush1.msra.mxu0 0.0
    %1657 = vmatprep.subr.mxu0 0.0
    %1658 = vmatpush1.msra.mxu0 0.0
    %1659 = vmatprep.subr.mxu0 0.0
    %1660 = vmatpush1.msra.mxu0 0.0
    %1661 = vmatprep.subr.mxu0 0.0
    %1662 = vmatpush1.msra.mxu0 0.0
    %1663 = vmatprep.subr.mxu0 0.0
    %1664 = vmatpush1.msra.mxu0 0.0
    %1665 = vmatprep.subr.mxu0 0.0
    %1666 = vmatpush1.msra.mxu0 0.0
    %1667 = vmatprep.subr.mxu0 0.0
    %1668 = vmatpush1.msra.mxu0 0.0
    %1669 = vmatprep.subr.mxu0 0.0
    %1670 = vmatpush1.msra.mxu0 0.0
    %1671 = vmatprep.mubr.f32.mxu0 0.0
    %1672 = vmatmul.mubr.f32.gmra.mrb[0].mxu0 %v1229
    %v1673 = vpop.f32.mrb[0].mxu0
    %v1674 = vadd.f32 %v468, %v1673
    %v1675 = vpop.f32.mrb[0].mxu0
    %1676 = vdwg.mxu0
    %v1677 = vadd.f32 %v1533, %v1603
    %v1678 = vxor.u32 %v1677, 2147483648
    %v1679 = vmul.f32 %v1678, 1.442695
    %v1680 = vpow.pop %v1679
    %v1681 = vadd.f32 %v1680, 1.0
    %v1682 = vrcp.pop %v1681
    %v1683 = vmul.f32 1.0, %v1682
    %v1684 = vadd.f32 %v1534, %v1605
    %v1685 = vxor.u32 %v1684, 2147483648
    %v1686 = vmul.f32 %v1685, 1.442695
    %v1687 = vpow.pop %v1686
    %v1688 = vadd.f32 %v1687, 1.0
    %v1689 = vrcp.pop %v1688
    %v1690 = vmul.f32 1.0, %v1689
    %v1691 = vmul.f32 %v1683, %v1674
    %v1692 = vadd.f32 %v1535, %v1691
    %v1693 = vtanh.pop %v1692
    %v1694 = vsub.f32 1.0, %v1690
    %v1695 = vmul.f32 %v1694, %v1693
    %v1696 = vmul.f32 %v1690, %v1229
    %v1697 = vadd.f32 %v1695, %v1696
    %1698 = vmatprep.subr.mxu0 %v635
    %1699 = vmatpush1.msra.mxu0 %v634
    %1700 = vmatprep.subr.mxu0 %v638
    %1701 = vmatpush1.msra.mxu0 %v637
    %1702 = vmatprep.subr.mxu0 %v641
    %1703 = vmatpush1.msra.mxu0 %v640
    %1704 = vmatprep.subr.mxu0 %v644
    %1705 = vmatpush1.msra.mxu0 %v643
    %1706 = vmatprep.subr.mxu0 %v647
    %1707 = vmatpush1.msra.mxu0 %v646
    %1708 = vmatprep.subr.mxu0 %v650
    %1709 = vmatpush1.msra.mxu0 %v649
    %1710 = vmatprep.subr.mxu0 %v653
    %1711 = vmatpush1.msra.mxu0 %v652
    %1712 = vmatprep.subr.mxu0 %v656
    %1713 = vmatpush1.msra.mxu0 %v655
    %1714 = vmatprep.subr.mxu0 %v659
    %1715 = vmatpush1.msra.mxu0 %v658
    %1716 = vmatprep.subr.mxu0 %v662
    %1717 = vmatpush1.msra.mxu0 %v661
    %1718 = vmatprep.subr.mxu0 %v665
    %1719 = vmatpush1.msra.mxu0 %v664
    %1720 = vmatprep.subr.mxu0 %v668
    %1721 = vmatpush1.msra.mxu0 %v667
    %1722 = vmatprep.subr.mxu0 %v671
    %1723 = vmatpush1.msra.mxu0 %v670
    %1724 = vmatprep.subr.mxu0 %v674
    %1725 = vmatpush1.msra.mxu0 %v673
    %1726 = vmatprep.subr.mxu0 %v677
    %1727 = vmatpush1.msra.mxu0 %v676
    %1728 = vmatprep.subr.mxu0 %v680
    %1729 = vmatpush1.msra.mxu0 %v679
    %1730 = vmatprep.subr.mxu0 0.0
    %1731 = vmatpush1.msra.mxu0 0.0
    %1732 = vmatprep.subr.mxu0 0.0
    %1733 = vmatpush1.msra.mxu0 0.0
    %1734 = vmatprep.subr.mxu0 0.0
    %1735 = vmatpush1.msra.mxu0 0.0
    %1736 = vmatprep.subr.mxu0 0.0
    %1737 = vmatpush1.msra.mxu0 0.0
    %1738 = vmatprep.subr.mxu0 0.0
    %1739 = vmatpush1.msra.mxu0 0.0
    %1740 = vmatprep.subr.mxu0 0.0
    %1741 = vmatpush1.msra.mxu0 0.0
    %1742 = vmatprep.subr.mxu0 0.0
    %1743 = vmatpush1.msra.mxu0 0.0
    %1744 = vmatprep.subr.mxu0 0.0
    %1745 = vmatpush1.msra.mxu0 0.0
    %1746 = vmatprep.subr.mxu0 0.0
    %1747 = vmatpush1.msra.mxu0 0.0
    %1748 = vmatprep.subr.mxu0 0.0
    %1749 = vmatpush1.msra.mxu0 0.0
    %1750 = vmatprep.subr.mxu0 0.0
    %1751 = vmatpush1.msra.mxu0 0.0
    %1752 = vmatprep.subr.mxu0 0.0
    %1753 = vmatpush1.msra.mxu0 0.0
    %1754 = vmatprep.subr.mxu0 0.0
    %1755 = vmatpush1.msra.mxu0 0.0
    %1756 = vmatprep.subr.mxu0 0.0
    %1757 = vmatpush1.msra.mxu0 0.0
    %1758 = vmatprep.subr.mxu0 0.0
    %1759 = vmatpush1.msra.mxu0 0.0
    %1760 = vmatprep.subr.mxu0 0.0
    %1761 = vmatpush1.msra.mxu0 0.0
    %1762 = vmatprep.mubr.f32.mxu0 0.0
    %1763 = vmatmul.mubr.f32.gmra.mrb[0].mxu0 %v1697
    %v1764 = vpop.f32.mrb[0].mxu0
    %v1765 = vadd.f32 %v686, %v1764
    %v1766 = vpop.f32.mrb[0].mxu0
    %v1767 = vadd.f32 %v690, %v1766
    %1768 = vdwg.mxu0
    %1769 = vmatprep.subr.mxu0 0.0
    %1770 = vmatpush1.msra.mxu0 %v636
    %1771 = vmatprep.subr.mxu0 0.0
    %1772 = vmatpush1.msra.mxu0 %v639
    %1773 = vmatprep.subr.mxu0 0.0
    %1774 = vmatpush1.msra.mxu0 %v642
    %1775 = vmatprep.subr.mxu0 0.0
    %1776 = vmatpush1.msra.mxu0 %v645
    %1777 = vmatprep.subr.mxu0 0.0
    %1778 = vmatpush1.msra.mxu0 %v648
    %1779 = vmatprep.subr.mxu0 0.0
    %1780 = vmatpush1.msra.mxu0 %v651
    %1781 = vmatprep.subr.mxu0 0.0
    %1782 = vmatpush1.msra.mxu0 %v654
    %1783 = vmatprep.subr.mxu0 0.0
    %1784 = vmatpush1.msra.mxu0 %v657
    %1785 = vmatprep.subr.mxu0 0.0
    %1786 = vmatpush1.msra.mxu0 %v660
    %1787 = vmatprep.subr.mxu0 0.0
    %1788 = vmatpush1.msra.mxu0 %v663
    %1789 = vmatprep.subr.mxu0 0.0
    %1790 = vmatpush1.msra.mxu0 %v666
    %1791 = vmatprep.subr.mxu0 0.0
    %1792 = vmatpush1.msra.mxu0 %v669
    %1793 = vmatprep.subr.mxu0 0.0
    %1794 = vmatpush1.msra.mxu0 %v672
    %1795 = vmatprep.subr.mxu0 0.0
    %1796 = vmatpush1.msra.mxu0 %v675
    %1797 = vmatprep.subr.mxu0 0.0
    %1798 = vmatpush1.msra.mxu0 %v678
    %1799 = vmatprep.subr.mxu0 0.0
    %1800 = vmatpush1.msra.mxu0 %v681
    %1801 = vmatprep.subr.mxu0 0.0
    %1802 = vmatpush1.msra.mxu0 0.0
    %1803 = vmatprep.subr.mxu0 0.0
    %1804 = vmatpush1.msra.mxu0 0.0
    %1805 = vmatprep.subr.mxu0 0.0
    %1806 = vmatpush1.msra.mxu0 0.0
    %1807 = vmatprep.subr.mxu0 0.0
    %1808 = vmatpush1.msra.mxu0 0.0
    %1809 = vmatprep.subr.mxu0 0.0
    %1810 = vmatpush1.msra.mxu0 0.0
    %1811 = vmatprep.subr.mxu0 0.0
    %1812 = vmatpush1.msra.mxu0 0.0
    %1813 = vmatprep.subr.mxu0 0.0
    %1814 = vmatpush1.msra.mxu0 0.0
    %1815 = vmatprep.subr.mxu0 0.0
    %1816 = vmatpush1.msra.mxu0 0.0
    %1817 = vmatprep.subr.mxu0 0.0
    %1818 = vmatpush1.msra.mxu0 0.0
    %1819 = vmatprep.subr.mxu0 0.0
    %1820 = vmatpush1.msra.mxu0 0.0
    %1821 = vmatprep.subr.mxu0 0.0
    %1822 = vmatpush1.msra.mxu0 0.0
    %1823 = vmatprep.subr.mxu0 0.0
    %1824 = vmatpush1.msra.mxu0 0.0
    %1825 = vmatprep.subr.mxu0 0.0
    %1826 = vmatpush1.msra.mxu0 0.0
    %1827 = vmatprep.subr.mxu0 0.0
    %1828 = vmatpush1.msra.mxu0 0.0
    %1829 = vmatprep.subr.mxu0 0.0
    %1830 = vmatpush1.msra.mxu0 0.0
    %1831 = vmatprep.subr.mxu0 0.0
    %1832 = vmatpush1.msra.mxu0 0.0
    %1833 = vmatprep.mubr.f32.mxu0 0.0
    %1834 = vmatmul.mubr.f32.gmra.mrb[0].mxu0 %v1697
    %v1835 = vpop.f32.mrb[0].mxu0
    %v1836 = vadd.f32 %v694, %v1835
    %v1837 = vpop.f32.mrb[0].mxu0
    %1838 = vdwg.mxu0
    %1839 = vmatprep.subr.mxu0 %v840
    %1840 = vmatpush1.msra.mxu0 %v839
    %1841 = vmatprep.subr.mxu0 %v843
    %1842 = vmatpush1.msra.mxu0 %v842
    %1843 = vmatprep.subr.mxu0 %v846
    %1844 = vmatpush1.msra.mxu0 %v845
    %1845 = vmatprep.subr.mxu0 %v849
    %1846 = vmatpush1.msra.mxu0 %v848
    %1847 = vmatprep.subr.mxu0 %v852
    %1848 = vmatpush1.msra.mxu0 %v851
    %1849 = vmatprep.subr.mxu0 %v855
    %1850 = vmatpush1.msra.mxu0 %v854
    %1851 = vmatprep.subr.mxu0 %v858
    %1852 = vmatpush1.msra.mxu0 %v857
    %1853 = vmatprep.subr.mxu0 %v861
    %1854 = vmatpush1.msra.mxu0 %v860
    %1855 = vmatprep.subr.mxu0 %v864
    %1856 = vmatpush1.msra.mxu0 %v863
    %1857 = vmatprep.subr.mxu0 %v867
    %1858 = vmatpush1.msra.mxu0 %v866
    %1859 = vmatprep.subr.mxu0 %v870
    %1860 = vmatpush1.msra.mxu0 %v869
    %1861 = vmatprep.subr.mxu0 %v873
    %1862 = vmatpush1.msra.mxu0 %v872
    %1863 = vmatprep.subr.mxu0 %v876
    %1864 = vmatpush1.msra.mxu0 %v875
    %1865 = vmatprep.subr.mxu0 %v879
    %1866 = vmatpush1.msra.mxu0 %v878
    %1867 = vmatprep.subr.mxu0 %v882
    %1868 = vmatpush1.msra.mxu0 %v881
    %1869 = vmatprep.subr.mxu0 %v885
    %1870 = vmatpush1.msra.mxu0 %v884
    %1871 = vmatprep.subr.mxu0 0.0
    %1872 = vmatpush1.msra.mxu0 0.0
    %1873 = vmatprep.subr.mxu0 0.0
    %1874 = vmatpush1.msra.mxu0 0.0
    %1875 = vmatprep.subr.mxu0 0.0
    %1876 = vmatpush1.msra.mxu0 0.0
    %1877 = vmatprep.subr.mxu0 0.0
    %1878 = vmatpush1.msra.mxu0 0.0
    %1879 = vmatprep.subr.mxu0 0.0
    %1880 = vmatpush1.msra.mxu0 0.0
    %1881 = vmatprep.subr.mxu0 0.0
    %1882 = vmatpush1.msra.mxu0 0.0
    %1883 = vmatprep.subr.mxu0 0.0
    %1884 = vmatpush1.msra.mxu0 0.0
    %1885 = vmatprep.subr.mxu0 0.0
    %1886 = vmatpush1.msra.mxu0 0.0
    %1887 = vmatprep.subr.mxu0 0.0
    %1888 = vmatpush1.msra.mxu0 0.0
    %1889 = vmatprep.subr.mxu0 0.0
    %1890 = vmatpush1.msra.mxu0 0.0
    %1891 = vmatprep.subr.mxu0 0.0
    %1892 = vmatpush1.msra.mxu0 0.0
    %1893 = vmatprep.subr.mxu0 0.0
    %1894 = vmatpush1.msra.mxu0 0.0
    %1895 = vmatprep.subr.mxu0 0.0
    %1896 = vmatpush1.msra.mxu0 0.0
    %1897 = vmatprep.subr.mxu0 0.0
    %1898 = vmatpush1.msra.mxu0 0.0
    %1899 = vmatprep.subr.mxu0 0.0
    %1900 = vmatpush1.msra.mxu0 0.0
    %1901 = vmatprep.subr.mxu0 0.0
    %1902 = vmatpush1.msra.mxu0 0.0
    %1903 = vmatprep.mubr.f32.mxu0 0.0
    %1904 = vmatmul.mubr.f32.gmra.mrb[0].mxu0 %v1532
    %v1905 = vpop.f32.mrb[0].mxu0
    %v1906 = vadd.f32 %v891, %v1905
    %v1907 = vpop.f32.mrb[0].mxu0
    %v1908 = vadd.f32 %v895, %v1907
    %1909 = vdwg.mxu0
    %1910 = vmatprep.subr.mxu0 0.0
    %1911 = vmatpush1.msra.mxu0 %v841
    %1912 = vmatprep.subr.mxu0 0.0
    %1913 = vmatpush1.msra.mxu0 %v844
    %1914 = vmatprep.subr.mxu0 0.0
    %1915 = vmatpush1.msra.mxu0 %v847
    %1916 = vmatprep.subr.mxu0 0.0
    %1917 = vmatpush1.msra.mxu0 %v850
    %1918 = vmatprep.subr.mxu0 0.0
    %1919 = vmatpush1.msra.mxu0 %v853
    %1920 = vmatprep.subr.mxu0 0.0
    %1921 = vmatpush1.msra.mxu0 %v856
    %1922 = vmatprep.subr.mxu0 0.0
    %1923 = vmatpush1.msra.mxu0 %v859
    %1924 = vmatprep.subr.mxu0 0.0
    %1925 = vmatpush1.msra.mxu0 %v862
    %1926 = vmatprep.subr.mxu0 0.0
    %1927 = vmatpush1.msra.mxu0 %v865
    %1928 = vmatprep.subr.mxu0 0.0
    %1929 = vmatpush1.msra.mxu0 %v868
    %1930 = vmatprep.subr.mxu0 0.0
    %1931 = vmatpush1.msra.mxu0 %v871
    %1932 = vmatprep.subr.mxu0 0.0
    %1933 = vmatpush1.msra.mxu0 %v874
    %1934 = vmatprep.subr.mxu0 0.0
    %1935 = vmatpush1.msra.mxu0 %v877
    %1936 = vmatprep.subr.mxu0 0.0
    %1937 = vmatpush1.msra.mxu0 %v880
    %1938 = vmatprep.subr.mxu0 0.0
    %1939 = vmatpush1.msra.mxu0 %v883
    %1940 = vmatprep.subr.mxu0 0.0
    %1941 = vmatpush1.msra.mxu0 %v886
    %1942 = vmatprep.subr.mxu0 0.0
    %1943 = vmatpush1.msra.mxu0 0.0
    %1944 = vmatprep.subr.mxu0 0.0
    %1945 = vmatpush1.msra.mxu0 0.0
    %1946 = vmatprep.subr.mxu0 0.0
    %1947 = vmatpush1.msra.mxu0 0.0
    %1948 = vmatprep.subr.mxu0 0.0
    %1949 = vmatpush1.msra.mxu0 0.0
    %1950 = vmatprep.subr.mxu0 0.0
    %1951 = vmatpush1.msra.mxu0 0.0
    %1952 = vmatprep.subr.mxu0 0.0
    %1953 = vmatpush1.msra.mxu0 0.0
    %1954 = vmatprep.subr.mxu0 0.0
    %1955 = vmatpush1.msra.mxu0 0.0
    %1956 = vmatprep.subr.mxu0 0.0
    %1957 = vmatpush1.msra.mxu0 0.0
    %1958 = vmatprep.subr.mxu0 0.0
    %1959 = vmatpush1.msra.mxu0 0.0
    %1960 = vmatprep.subr.mxu0 0.0
    %1961 = vmatpush1.msra.mxu0 0.0
    %1962 = vmatprep.subr.mxu0 0.0
    %1963 = vmatpush1.msra.mxu0 0.0
    %1964 = vmatprep.subr.mxu0 0.0
    %1965 = vmatpush1.msra.mxu0 0.0
    %1966 = vmatprep.subr.mxu0 0.0
    %1967 = vmatpush1.msra.mxu0 0.0
    %1968 = vmatprep.subr.mxu0 0.0
    %1969 = vmatpush1.msra.mxu0 0.0
    %1970 = vmatprep.subr.mxu0 0.0
    %1971 = vmatpush1.msra.mxu0 0.0
    %1972 = vmatprep.subr.mxu0 0.0
    %1973 = vmatpush1.msra.mxu0 0.0
    %1974 = vmatprep.mubr.f32.mxu0 0.0
    %1975 = vmatmul.mubr.f32.gmra.mrb[0].mxu0 %v1532
    %v1976 = vpop.f32.mrb[0].mxu0
    %v1977 = vadd.f32 %v899, %v1976
    %v1978 = vpop.f32.mrb[0].mxu0
    %1979 = vdwg.mxu0
    %v1980 = vadd.f32 %v1765, %v1906
    %v1981 = vxor.u32 %v1980, 2147483648
    %v1982 = vmul.f32 %v1981, 1.442695
    %v1983 = vpow.pop %v1982
    %v1984 = vadd.f32 %v1983, 1.0
    %v1985 = vrcp.pop %v1984
    %v1986 = vmul.f32 1.0, %v1985
    %v1987 = vadd.f32 %v1767, %v1908
    %v1988 = vxor.u32 %v1987, 2147483648
    %v1989 = vmul.f32 %v1988, 1.442695
    %v1990 = vpow.pop %v1989
    %v1991 = vadd.f32 %v1990, 1.0
    %v1992 = vrcp.pop %v1991
    %v1993 = vmul.f32 1.0, %v1992
    %v1994 = vmul.f32 %v1986, %v1977
    %v1995 = vadd.f32 %v1836, %v1994
    %v1996 = vtanh.pop %v1995
    %v1997 = vsub.f32 1.0, %v1993
    %v1998 = vmul.f32 %v1997, %v1996
    %v1999 = vmul.f32 %v1993, %v1532
    %v2000 = vadd.f32 %v1998, %v1999
    %v2001 = vld [vmem:[#allocation2 + $0x48] sm:$0xff]
    %v2002 = vld [vmem:[#allocation2 + $0x50] sm:$0xff]
    %v2003 = vld [vmem:[#allocation2 + $0x58] sm:$0xff]
    %2004 = vmatprep.subr.mxu0 %v409
    %2005 = vmatpush1.msra.mxu0 %v408
    %2006 = vmatprep.subr.mxu0 %v412
    %2007 = vmatpush1.msra.mxu0 %v411
    %2008 = vmatprep.subr.mxu0 %v415
    %2009 = vmatpush1.msra.mxu0 %v414
    %2010 = vmatprep.subr.mxu0 %v418
    %2011 = vmatpush1.msra.mxu0 %v417
    %2012 = vmatprep.subr.mxu0 %v421
    %2013 = vmatpush1.msra.mxu0 %v420
    %2014 = vmatprep.subr.mxu0 %v424
    %2015 = vmatpush1.msra.mxu0 %v423
    %2016 = vmatprep.subr.mxu0 %v427
    %2017 = vmatpush1.msra.mxu0 %v426
    %2018 = vmatprep.subr.mxu0 %v430
    %2019 = vmatpush1.msra.mxu0 %v429
    %2020 = vmatprep.subr.mxu0 %v433
    %2021 = vmatpush1.msra.mxu0 %v432
    %2022 = vmatprep.subr.mxu0 %v436
    %2023 = vmatpush1.msra.mxu0 %v435
    %2024 = vmatprep.subr.mxu0 %v439
    %2025 = vmatpush1.msra.mxu0 %v438
    %2026 = vmatprep.subr.mxu0 %v442
    %2027 = vmatpush1.msra.mxu0 %v441
    %2028 = vmatprep.subr.mxu0 %v445
    %2029 = vmatpush1.msra.mxu0 %v444
    %2030 = vmatprep.subr.mxu0 %v448
    %2031 = vmatpush1.msra.mxu0 %v447
    %2032 = vmatprep.subr.mxu0 %v451
    %2033 = vmatpush1.msra.mxu0 %v450
    %2034 = vmatprep.subr.mxu0 %v454
    %2035 = vmatpush1.msra.mxu0 %v453
    %2036 = vmatprep.subr.mxu0 0.0
    %2037 = vmatpush1.msra.mxu0 0.0
    %2038 = vmatprep.subr.mxu0 0.0
    %2039 = vmatpush1.msra.mxu0 0.0
    %2040 = vmatprep.subr.mxu0 0.0
    %2041 = vmatpush1.msra.mxu0 0.0
    %2042 = vmatprep.subr.mxu0 0.0
    %2043 = vmatpush1.msra.mxu0 0.0
    %2044 = vmatprep.subr.mxu0 0.0
    %2045 = vmatpush1.msra.mxu0 0.0
    %2046 = vmatprep.subr.mxu0 0.0
    %2047 = vmatpush1.msra.mxu0 0.0
    %2048 = vmatprep.subr.mxu0 0.0
    %2049 = vmatpush1.msra.mxu0 0.0
    %2050 = vmatprep.subr.mxu0 0.0
    %2051 = vmatpush1.msra.mxu0 0.0
    %2052 = vmatprep.subr.mxu0 0.0
    %2053 = vmatpush1.msra.mxu0 0.0
    %2054 = vmatprep.subr.mxu0 0.0
    %2055 = vmatpush1.msra.mxu0 0.0
    %2056 = vmatprep.subr.mxu0 0.0
    %2057 = vmatpush1.msra.mxu0 0.0
    %2058 = vmatprep.subr.mxu0 0.0
    %2059 = vmatpush1.msra.mxu0 0.0
    %2060 = vmatprep.subr.mxu0 0.0
    %2061 = vmatpush1.msra.mxu0 0.0
    %2062 = vmatprep.subr.mxu0 0.0
    %2063 = vmatpush1.msra.mxu0 0.0
    %2064 = vmatprep.subr.mxu0 0.0
    %2065 = vmatpush1.msra.mxu0 0.0
    %2066 = vmatprep.subr.mxu0 0.0
    %2067 = vmatpush1.msra.mxu0 0.0
    %2068 = vmatprep.mubr.f32.mxu0 0.0
    %2069 = vmatmul.mubr.f32.gmra.mrb[0].mxu0 %v1697
    %v2070 = vpop.f32.mrb[0].mxu0
    %v2071 = vadd.f32 %v460, %v2070
    %v2072 = vpop.f32.mrb[0].mxu0
    %v2073 = vadd.f32 %v464, %v2072
    %2074 = vdwg.mxu0
    %2075 = vmatprep.subr.mxu0 0.0
    %2076 = vmatpush1.msra.mxu0 %v410
    %2077 = vmatprep.subr.mxu0 0.0
    %2078 = vmatpush1.msra.mxu0 %v413
    %2079 = vmatprep.subr.mxu0 0.0
    %2080 = vmatpush1.msra.mxu0 %v416
    %2081 = vmatprep.subr.mxu0 0.0
    %2082 = vmatpush1.msra.mxu0 %v419
    %2083 = vmatprep.subr.mxu0 0.0
    %2084 = vmatpush1.msra.mxu0 %v422
    %2085 = vmatprep.subr.mxu0 0.0
    %2086 = vmatpush1.msra.mxu0 %v425
    %2087 = vmatprep.subr.mxu0 0.0
    %2088 = vmatpush1.msra.mxu0 %v428
    %2089 = vmatprep.subr.mxu0 0.0
    %2090 = vmatpush1.msra.mxu0 %v431
    %2091 = vmatprep.subr.mxu0 0.0
    %2092 = vmatpush1.msra.mxu0 %v434
    %2093 = vmatprep.subr.mxu0 0.0
    %2094 = vmatpush1.msra.mxu0 %v437
    %2095 = vmatprep.subr.mxu0 0.0
    %2096 = vmatpush1.msra.mxu0 %v440
    %2097 = vmatprep.subr.mxu0 0.0
    %2098 = vmatpush1.msra.mxu0 %v443
    %2099 = vmatprep.subr.mxu0 0.0
    %2100 = vmatpush1.msra.mxu0 %v446
    %2101 = vmatprep.subr.mxu0 0.0
    %2102 = vmatpush1.msra.mxu0 %v449
    %2103 = vmatprep.subr.mxu0 0.0
    %2104 = vmatpush1.msra.mxu0 %v452
    %2105 = vmatprep.subr.mxu0 0.0
    %2106 = vmatpush1.msra.mxu0 %v455
    %2107 = vmatprep.subr.mxu0 0.0
    %2108 = vmatpush1.msra.mxu0 0.0
    %2109 = vmatprep.subr.mxu0 0.0
    %2110 = vmatpush1.msra.mxu0 0.0
    %2111 = vmatprep.subr.mxu0 0.0
    %2112 = vmatpush1.msra.mxu0 0.0
    %2113 = vmatprep.subr.mxu0 0.0
    %2114 = vmatpush1.msra.mxu0 0.0
    %2115 = vmatprep.subr.mxu0 0.0
    %2116 = vmatpush1.msra.mxu0 0.0
    %2117 = vmatprep.subr.mxu0 0.0
    %2118 = vmatpush1.msra.mxu0 0.0
    %2119 = vmatprep.subr.mxu0 0.0
    %2120 = vmatpush1.msra.mxu0 0.0
    %2121 = vmatprep.subr.mxu0 0.0
    %2122 = vmatpush1.msra.mxu0 0.0
    %2123 = vmatprep.subr.mxu0 0.0
    %2124 = vmatpush1.msra.mxu0 0.0
    %2125 = vmatprep.subr.mxu0 0.0
    %2126 = vmatpush1.msra.mxu0 0.0
    %2127 = vmatprep.subr.mxu0 0.0
    %2128 = vmatpush1.msra.mxu0 0.0
    %2129 = vmatprep.subr.mxu0 0.0
    %2130 = vmatpush1.msra.mxu0 0.0
    %2131 = vmatprep.subr.mxu0 0.0
    %2132 = vmatpush1.msra.mxu0 0.0
    %2133 = vmatprep.subr.mxu0 0.0
    %2134 = vmatpush1.msra.mxu0 0.0
    %2135 = vmatprep.subr.mxu0 0.0
    %2136 = vmatpush1.msra.mxu0 0.0
    %2137 = vmatprep.subr.mxu0 0.0
    %2138 = vmatpush1.msra.mxu0 0.0
    %2139 = vmatprep.mubr.f32.mxu0 0.0
    %2140 = vmatmul.mubr.f32.gmra.mrb[0].mxu0 %v1697
    %v2141 = vpop.f32.mrb[0].mxu0
    %v2142 = vadd.f32 %v468, %v2141
    %v2143 = vpop.f32.mrb[0].mxu0
    %2144 = vdwg.mxu0
    %v2145 = vadd.f32 %v2001, %v2071
    %v2146 = vxor.u32 %v2145, 2147483648
    %v2147 = vmul.f32 %v2146, 1.442695
    %v2148 = vpow.pop %v2147
    %v2149 = vadd.f32 %v2148, 1.0
    %v2150 = vrcp.pop %v2149
    %v2151 = vmul.f32 1.0, %v2150
    %v2152 = vadd.f32 %v2002, %v2073
    %v2153 = vxor.u32 %v2152, 2147483648
    %v2154 = vmul.f32 %v2153, 1.442695
    %v2155 = vpow.pop %v2154
    %v2156 = vadd.f32 %v2155, 1.0
    %v2157 = vrcp.pop %v2156
    %v2158 = vmul.f32 1.0, %v2157
    %v2159 = vmul.f32 %v2151, %v2142
    %v2160 = vadd.f32 %v2003, %v2159
    %v2161 = vtanh.pop %v2160
    %v2162 = vsub.f32 1.0, %v2158
    %v2163 = vmul.f32 %v2162, %v2161
    %v2164 = vmul.f32 %v2158, %v1697
    %v2165 = vadd.f32 %v2163, %v2164
    %2166 = vmatprep.subr.mxu0 %v635
    %2167 = vmatpush1.msra.mxu0 %v634
    %2168 = vmatprep.subr.mxu0 %v638
    %2169 = vmatpush1.msra.mxu0 %v637
    %2170 = vmatprep.subr.mxu0 %v641
    %2171 = vmatpush1.msra.mxu0 %v640
    %2172 = vmatprep.subr.mxu0 %v644
    %2173 = vmatpush1.msra.mxu0 %v643
    %2174 = vmatprep.subr.mxu0 %v647
    %2175 = vmatpush1.msra.mxu0 %v646
    %2176 = vmatprep.subr.mxu0 %v650
    %2177 = vmatpush1.msra.mxu0 %v649
    %2178 = vmatprep.subr.mxu0 %v653
    %2179 = vmatpush1.msra.mxu0 %v652
    %2180 = vmatprep.subr.mxu0 %v656
    %2181 = vmatpush1.msra.mxu0 %v655
    %2182 = vmatprep.subr.mxu0 %v659
    %2183 = vmatpush1.msra.mxu0 %v658
    %2184 = vmatprep.subr.mxu0 %v662
    %2185 = vmatpush1.msra.mxu0 %v661
    %2186 = vmatprep.subr.mxu0 %v665
    %2187 = vmatpush1.msra.mxu0 %v664
    %2188 = vmatprep.subr.mxu0 %v668
    %2189 = vmatpush1.msra.mxu0 %v667
    %2190 = vmatprep.subr.mxu0 %v671
    %2191 = vmatpush1.msra.mxu0 %v670
    %2192 = vmatprep.subr.mxu0 %v674
    %2193 = vmatpush1.msra.mxu0 %v673
    %2194 = vmatprep.subr.mxu0 %v677
    %2195 = vmatpush1.msra.mxu0 %v676
    %2196 = vmatprep.subr.mxu0 %v680
    %2197 = vmatpush1.msra.mxu0 %v679
    %2198 = vmatprep.subr.mxu0 0.0
    %2199 = vmatpush1.msra.mxu0 0.0
    %2200 = vmatprep.subr.mxu0 0.0
    %2201 = vmatpush1.msra.mxu0 0.0
    %2202 = vmatprep.subr.mxu0 0.0
    %2203 = vmatpush1.msra.mxu0 0.0
    %2204 = vmatprep.subr.mxu0 0.0
    %2205 = vmatpush1.msra.mxu0 0.0
    %2206 = vmatprep.subr.mxu0 0.0
    %2207 = vmatpush1.msra.mxu0 0.0
    %2208 = vmatprep.subr.mxu0 0.0
    %2209 = vmatpush1.msra.mxu0 0.0
    %2210 = vmatprep.subr.mxu0 0.0
    %2211 = vmatpush1.msra.mxu0 0.0
    %2212 = vmatprep.subr.mxu0 0.0
    %2213 = vmatpush1.msra.mxu0 0.0
    %2214 = vmatprep.subr.mxu0 0.0
    %2215 = vmatpush1.msra.mxu0 0.0
    %2216 = vmatprep.subr.mxu0 0.0
    %2217 = vmatpush1.msra.mxu0 0.0
    %2218 = vmatprep.subr.mxu0 0.0
    %2219 = vmatpush1.msra.mxu0 0.0
    %2220 = vmatprep.subr.mxu0 0.0
    %2221 = vmatpush1.msra.mxu0 0.0
    %2222 = vmatprep.subr.mxu0 0.0
    %2223 = vmatpush1.msra.mxu0 0.0
    %2224 = vmatprep.subr.mxu0 0.0
    %2225 = vmatpush1.msra.mxu0 0.0
    %2226 = vmatprep.subr.mxu0 0.0
    %2227 = vmatpush1.msra.mxu0 0.0
    %2228 = vmatprep.subr.mxu0 0.0
    %2229 = vmatpush1.msra.mxu0 0.0
    %2230 = vmatprep.mubr.f32.mxu0 0.0
    %2231 = vmatmul.mubr.f32.gmra.mrb[0].mxu0 %v2165
    %v2232 = vpop.f32.mrb[0].mxu0
    %v2233 = vadd.f32 %v686, %v2232
    %v2234 = vpop.f32.mrb[0].mxu0
    %v2235 = vadd.f32 %v690, %v2234
    %2236 = vdwg.mxu0
    %2237 = vmatprep.subr.mxu0 0.0
    %2238 = vmatpush1.msra.mxu0 %v636
    %2239 = vmatprep.subr.mxu0 0.0
    %2240 = vmatpush1.msra.mxu0 %v639
    %2241 = vmatprep.subr.mxu0 0.0
    %2242 = vmatpush1.msra.mxu0 %v642
    %2243 = vmatprep.subr.mxu0 0.0
    %2244 = vmatpush1.msra.mxu0 %v645
    %2245 = vmatprep.subr.mxu0 0.0
    %2246 = vmatpush1.msra.mxu0 %v648
    %2247 = vmatprep.subr.mxu0 0.0
    %2248 = vmatpush1.msra.mxu0 %v651
    %2249 = vmatprep.subr.mxu0 0.0
    %2250 = vmatpush1.msra.mxu0 %v654
    %2251 = vmatprep.subr.mxu0 0.0
    %2252 = vmatpush1.msra.mxu0 %v657
    %2253 = vmatprep.subr.mxu0 0.0
    %2254 = vmatpush1.msra.mxu0 %v660
    %2255 = vmatprep.subr.mxu0 0.0
    %2256 = vmatpush1.msra.mxu0 %v663
    %2257 = vmatprep.subr.mxu0 0.0
    %2258 = vmatpush1.msra.mxu0 %v666
    %2259 = vmatprep.subr.mxu0 0.0
    %2260 = vmatpush1.msra.mxu0 %v669
    %2261 = vmatprep.subr.mxu0 0.0
    %2262 = vmatpush1.msra.mxu0 %v672
    %2263 = vmatprep.subr.mxu0 0.0
    %2264 = vmatpush1.msra.mxu0 %v675
    %2265 = vmatprep.subr.mxu0 0.0
    %2266 = vmatpush1.msra.mxu0 %v678
    %2267 = vmatprep.subr.mxu0 0.0
    %2268 = vmatpush1.msra.mxu0 %v681
    %2269 = vmatprep.subr.mxu0 0.0
    %2270 = vmatpush1.msra.mxu0 0.0
    %2271 = vmatprep.subr.mxu0 0.0
    %2272 = vmatpush1.msra.mxu0 0.0
    %2273 = vmatprep.subr.mxu0 0.0
    %2274 = vmatpush1.msra.mxu0 0.0
    %2275 = vmatprep.subr.mxu0 0.0
    %2276 = vmatpush1.msra.mxu0 0.0
    %2277 = vmatprep.subr.mxu0 0.0
    %2278 = vmatpush1.msra.mxu0 0.0
    %2279 = vmatprep.subr.mxu0 0.0
    %2280 = vmatpush1.msra.mxu0 0.0
    %2281 = vmatprep.subr.mxu0 0.0
    %2282 = vmatpush1.msra.mxu0 0.0
    %2283 = vmatprep.subr.mxu0 0.0
    %2284 = vmatpush1.msra.mxu0 0.0
    %2285 = vmatprep.subr.mxu0 0.0
    %2286 = vmatpush1.msra.mxu0 0.0
    %2287 = vmatprep.subr.mxu0 0.0
    %2288 = vmatpush1.msra.mxu0 0.0
    %2289 = vmatprep.subr.mxu0 0.0
    %2290 = vmatpush1.msra.mxu0 0.0
    %2291 = vmatprep.subr.mxu0 0.0
    %2292 = vmatpush1.msra.mxu0 0.0
    %2293 = vmatprep.subr.mxu0 0.0
    %2294 = vmatpush1.msra.mxu0 0.0
    %2295 = vmatprep.subr.mxu0 0.0
    %2296 = vmatpush1.msra.mxu0 0.0
    %2297 = vmatprep.subr.mxu0 0.0
    %2298 = vmatpush1.msra.mxu0 0.0
    %2299 = vmatprep.subr.mxu0 0.0
    %2300 = vmatpush1.msra.mxu0 0.0
    %2301 = vmatprep.mubr.f32.mxu0 0.0
    %2302 = vmatmul.mubr.f32.gmra.mrb[0].mxu0 %v2165
    %v2303 = vpop.f32.mrb[0].mxu0
    %v2304 = vadd.f32 %v694, %v2303
    %v2305 = vpop.f32.mrb[0].mxu0
    %2306 = vdwg.mxu0
    %2307 = vmatprep.subr.mxu0 %v840
    %2308 = vmatpush1.msra.mxu0 %v839
    %2309 = vmatprep.subr.mxu0 %v843
    %2310 = vmatpush1.msra.mxu0 %v842
    %2311 = vmatprep.subr.mxu0 %v846
    %2312 = vmatpush1.msra.mxu0 %v845
    %2313 = vmatprep.subr.mxu0 %v849
    %2314 = vmatpush1.msra.mxu0 %v848
    %2315 = vmatprep.subr.mxu0 %v852
    %2316 = vmatpush1.msra.mxu0 %v851
    %2317 = vmatprep.subr.mxu0 %v855
    %2318 = vmatpush1.msra.mxu0 %v854
    %2319 = vmatprep.subr.mxu0 %v858
    %2320 = vmatpush1.msra.mxu0 %v857
    %2321 = vmatprep.subr.mxu0 %v861
    %2322 = vmatpush1.msra.mxu0 %v860
    %2323 = vmatprep.subr.mxu0 %v864
    %2324 = vmatpush1.msra.mxu0 %v863
    %2325 = vmatprep.subr.mxu0 %v867
    %2326 = vmatpush1.msra.mxu0 %v866
    %2327 = vmatprep.subr.mxu0 %v870
    %2328 = vmatpush1.msra.mxu0 %v869
    %2329 = vmatprep.subr.mxu0 %v873
    %2330 = vmatpush1.msra.mxu0 %v872
    %2331 = vmatprep.subr.mxu0 %v876
    %2332 = vmatpush1.msra.mxu0 %v875
    %2333 = vmatprep.subr.mxu0 %v879
    %2334 = vmatpush1.msra.mxu0 %v878
    %2335 = vmatprep.subr.mxu0 %v882
    %2336 = vmatpush1.msra.mxu0 %v881
    %2337 = vmatprep.subr.mxu0 %v885
    %2338 = vmatpush1.msra.mxu0 %v884
    %2339 = vmatprep.subr.mxu0 0.0
    %2340 = vmatpush1.msra.mxu0 0.0
    %2341 = vmatprep.subr.mxu0 0.0
    %2342 = vmatpush1.msra.mxu0 0.0
    %2343 = vmatprep.subr.mxu0 0.0
    %2344 = vmatpush1.msra.mxu0 0.0
    %2345 = vmatprep.subr.mxu0 0.0
    %2346 = vmatpush1.msra.mxu0 0.0
    %2347 = vmatprep.subr.mxu0 0.0
    %2348 = vmatpush1.msra.mxu0 0.0
    %2349 = vmatprep.subr.mxu0 0.0
    %2350 = vmatpush1.msra.mxu0 0.0
    %2351 = vmatprep.subr.mxu0 0.0
    %2352 = vmatpush1.msra.mxu0 0.0
    %2353 = vmatprep.subr.mxu0 0.0
    %2354 = vmatpush1.msra.mxu0 0.0
    %2355 = vmatprep.subr.mxu0 0.0
    %2356 = vmatpush1.msra.mxu0 0.0
    %2357 = vmatprep.subr.mxu0 0.0
    %2358 = vmatpush1.msra.mxu0 0.0
    %2359 = vmatprep.subr.mxu0 0.0
    %2360 = vmatpush1.msra.mxu0 0.0
    %2361 = vmatprep.subr.mxu0 0.0
    %2362 = vmatpush1.msra.mxu0 0.0
    %2363 = vmatprep.subr.mxu0 0.0
    %2364 = vmatpush1.msra.mxu0 0.0
    %2365 = vmatprep.subr.mxu0 0.0
    %2366 = vmatpush1.msra.mxu0 0.0
    %2367 = vmatprep.subr.mxu0 0.0
    %2368 = vmatpush1.msra.mxu0 0.0
    %2369 = vmatprep.subr.mxu0 0.0
    %2370 = vmatpush1.msra.mxu0 0.0
    %2371 = vmatprep.mubr.f32.mxu0 0.0
    %2372 = vmatmul.mubr.f32.gmra.mrb[0].mxu0 %v2000
    %v2373 = vpop.f32.mrb[0].mxu0
    %v2374 = vadd.f32 %v891, %v2373
    %v2375 = vpop.f32.mrb[0].mxu0
    %v2376 = vadd.f32 %v895, %v2375
    %2377 = vdwg.mxu0
    %2378 = vmatprep.subr.mxu0 0.0
    %2379 = vmatpush1.msra.mxu0 %v841
    %2380 = vmatprep.subr.mxu0 0.0
    %2381 = vmatpush1.msra.mxu0 %v844
    %2382 = vmatprep.subr.mxu0 0.0
    %2383 = vmatpush1.msra.mxu0 %v847
    %2384 = vmatprep.subr.mxu0 0.0
    %2385 = vmatpush1.msra.mxu0 %v850
    %2386 = vmatprep.subr.mxu0 0.0
    %2387 = vmatpush1.msra.mxu0 %v853
    %2388 = vmatprep.subr.mxu0 0.0
    %2389 = vmatpush1.msra.mxu0 %v856
    %2390 = vmatprep.subr.mxu0 0.0
    %2391 = vmatpush1.msra.mxu0 %v859
    %2392 = vmatprep.subr.mxu0 0.0
    %2393 = vmatpush1.msra.mxu0 %v862
    %2394 = vmatprep.subr.mxu0 0.0
    %2395 = vmatpush1.msra.mxu0 %v865
    %2396 = vmatprep.subr.mxu0 0.0
    %2397 = vmatpush1.msra.mxu0 %v868
    %2398 = vmatprep.subr.mxu0 0.0
    %2399 = vmatpush1.msra.mxu0 %v871
    %2400 = vmatprep.subr.mxu0 0.0
    %2401 = vmatpush1.msra.mxu0 %v874
    %2402 = vmatprep.subr.mxu0 0.0
    %2403 = vmatpush1.msra.mxu0 %v877
    %2404 = vmatprep.subr.mxu0 0.0
    %2405 = vmatpush1.msra.mxu0 %v880
    %2406 = vmatprep.subr.mxu0 0.0
    %2407 = vmatpush1.msra.mxu0 %v883
    %2408 = vmatprep.subr.mxu0 0.0
    %2409 = vmatpush1.msra.mxu0 %v886
    %2410 = vmatprep.subr.mxu0 0.0
    %2411 = vmatpush1.msra.mxu0 0.0
    %2412 = vmatprep.subr.mxu0 0.0
    %2413 = vmatpush1.msra.mxu0 0.0
    %2414 = vmatprep.subr.mxu0 0.0
    %2415 = vmatpush1.msra.mxu0 0.0
    %2416 = vmatprep.subr.mxu0 0.0
    %2417 = vmatpush1.msra.mxu0 0.0
    %2418 = vmatprep.subr.mxu0 0.0
    %2419 = vmatpush1.msra.mxu0 0.0
    %2420 = vmatprep.subr.mxu0 0.0
    %2421 = vmatpush1.msra.mxu0 0.0
    %2422 = vmatprep.subr.mxu0 0.0
    %2423 = vmatpush1.msra.mxu0 0.0
    %2424 = vmatprep.subr.mxu0 0.0
    %2425 = vmatpush1.msra.mxu0 0.0
    %2426 = vmatprep.subr.mxu0 0.0
    %2427 = vmatpush1.msra.mxu0 0.0
    %2428 = vmatprep.subr.mxu0 0.0
    %2429 = vmatpush1.msra.mxu0 0.0
    %2430 = vmatprep.subr.mxu0 0.0
    %2431 = vmatpush1.msra.mxu0 0.0
    %2432 = vmatprep.subr.mxu0 0.0
    %2433 = vmatpush1.msra.mxu0 0.0
    %2434 = vmatprep.subr.mxu0 0.0
    %2435 = vmatpush1.msra.mxu0 0.0
    %2436 = vmatprep.subr.mxu0 0.0
    %2437 = vmatpush1.msra.mxu0 0.0
    %2438 = vmatprep.subr.mxu0 0.0
    %2439 = vmatpush1.msra.mxu0 0.0
    %2440 = vmatprep.subr.mxu0 0.0
    %2441 = vmatpush1.msra.mxu0 0.0
    %2442 = vmatprep.mubr.f32.mxu0 0.0
    %2443 = vmatmul.mubr.f32.gmra.mrb[0].mxu0 %v2000
    %v2444 = vpop.f32.mrb[0].mxu0
    %v2445 = vadd.f32 %v899, %v2444
    %v2446 = vpop.f32.mrb[0].mxu0
    %2447 = vdwg.mxu0
    %v2448 = vadd.f32 %v2233, %v2374
    %v2449 = vxor.u32 %v2448, 2147483648
    %v2450 = vmul.f32 %v2449, 1.442695
    %v2451 = vpow.pop %v2450
    %v2452 = vadd.f32 %v2451, 1.0
    %v2453 = vrcp.pop %v2452
    %v2454 = vmul.f32 1.0, %v2453
    %v2455 = vadd.f32 %v2235, %v2376
    %v2456 = vxor.u32 %v2455, 2147483648
    %v2457 = vmul.f32 %v2456, 1.442695
    %v2458 = vpow.pop %v2457
    %v2459 = vadd.f32 %v2458, 1.0
    %v2460 = vrcp.pop %v2459
    %v2461 = vmul.f32 1.0, %v2460
    %v2462 = vmul.f32 %v2454, %v2445
    %v2463 = vadd.f32 %v2304, %v2462
    %v2464 = vtanh.pop %v2463
    %v2465 = vsub.f32 1.0, %v2461
    %v2466 = vmul.f32 %v2465, %v2464
    %v2467 = vmul.f32 %v2461, %v2000
    %v2468 = vadd.f32 %v2466, %v2467
    %v2469 = vld [vmem:[#allocation2 + $0x60] sm:$0xff]
    %v2470 = vld [vmem:[#allocation2 + $0x68] sm:$0xff]
    %v2471 = vld [vmem:[#allocation2 + $0x70] sm:$0xff]
    %2472 = vmatprep.subr.mxu0 %v409
    %2473 = vmatpush1.msra.mxu0 %v408
    %2474 = vmatprep.subr.mxu0 %v412
    %2475 = vmatpush1.msra.mxu0 %v411
    %2476 = vmatprep.subr.mxu0 %v415
    %2477 = vmatpush1.msra.mxu0 %v414
    %2478 = vmatprep.subr.mxu0 %v418
    %2479 = vmatpush1.msra.mxu0 %v417
    %2480 = vmatprep.subr.mxu0 %v421
    %2481 = vmatpush1.msra.mxu0 %v420
    %2482 = vmatprep.subr.mxu0 %v424
    %2483 = vmatpush1.msra.mxu0 %v423
    %2484 = vmatprep.subr.mxu0 %v427
    %2485 = vmatpush1.msra.mxu0 %v426
    %2486 = vmatprep.subr.mxu0 %v430
    %2487 = vmatpush1.msra.mxu0 %v429
    %2488 = vmatprep.subr.mxu0 %v433
    %2489 = vmatpush1.msra.mxu0 %v432
    %2490 = vmatprep.subr.mxu0 %v436
    %2491 = vmatpush1.msra.mxu0 %v435
    %2492 = vmatprep.subr.mxu0 %v439
    %2493 = vmatpush1.msra.mxu0 %v438
    %2494 = vmatprep.subr.mxu0 %v442
    %2495 = vmatpush1.msra.mxu0 %v441
    %2496 = vmatprep.subr.mxu0 %v445
    %2497 = vmatpush1.msra.mxu0 %v444
    %2498 = vmatprep.subr.mxu0 %v448
    %2499 = vmatpush1.msra.mxu0 %v447
    %2500 = vmatprep.subr.mxu0 %v451
    %2501 = vmatpush1.msra.mxu0 %v450
    %2502 = vmatprep.subr.mxu0 %v454
    %2503 = vmatpush1.msra.mxu0 %v453
    %2504 = vmatprep.subr.mxu0 0.0
    %2505 = vmatpush1.msra.mxu0 0.0
    %2506 = vmatprep.subr.mxu0 0.0
    %2507 = vmatpush1.msra.mxu0 0.0
    %2508 = vmatprep.subr.mxu0 0.0
    %2509 = vmatpush1.msra.mxu0 0.0
    %2510 = vmatprep.subr.mxu0 0.0
    %2511 = vmatpush1.msra.mxu0 0.0
    %2512 = vmatprep.subr.mxu0 0.0
    %2513 = vmatpush1.msra.mxu0 0.0
    %2514 = vmatprep.subr.mxu0 0.0
    %2515 = vmatpush1.msra.mxu0 0.0
    %2516 = vmatprep.subr.mxu0 0.0
    %2517 = vmatpush1.msra.mxu0 0.0
    %2518 = vmatprep.subr.mxu0 0.0
    %2519 = vmatpush1.msra.mxu0 0.0
    %2520 = vmatprep.subr.mxu0 0.0
    %2521 = vmatpush1.msra.mxu0 0.0
    %2522 = vmatprep.subr.mxu0 0.0
    %2523 = vmatpush1.msra.mxu0 0.0
    %2524 = vmatprep.subr.mxu0 0.0
    %2525 = vmatpush1.msra.mxu0 0.0
    %2526 = vmatprep.subr.mxu0 0.0
    %2527 = vmatpush1.msra.mxu0 0.0
    %2528 = vmatprep.subr.mxu0 0.0
    %2529 = vmatpush1.msra.mxu0 0.0
    %2530 = vmatprep.subr.mxu0 0.0
    %2531 = vmatpush1.msra.mxu0 0.0
    %2532 = vmatprep.subr.mxu0 0.0
    %2533 = vmatpush1.msra.mxu0 0.0
    %2534 = vmatprep.subr.mxu0 0.0
    %2535 = vmatpush1.msra.mxu0 0.0
    %2536 = vmatprep.mubr.f32.mxu0 0.0
    %2537 = vmatmul.mubr.f32.gmra.mrb[0].mxu0 %v2165
    %v2538 = vpop.f32.mrb[0].mxu0
    %v2539 = vadd.f32 %v460, %v2538
    %v2540 = vpop.f32.mrb[0].mxu0
    %v2541 = vadd.f32 %v464, %v2540
    %2542 = vdwg.mxu0
    %2543 = vmatprep.subr.mxu0 0.0
    %2544 = vmatpush1.msra.mxu0 %v410
    %2545 = vmatprep.subr.mxu0 0.0
    %2546 = vmatpush1.msra.mxu0 %v413
    %2547 = vmatprep.subr.mxu0 0.0
    %2548 = vmatpush1.msra.mxu0 %v416
    %2549 = vmatprep.subr.mxu0 0.0
    %2550 = vmatpush1.msra.mxu0 %v419
    %2551 = vmatprep.subr.mxu0 0.0
    %2552 = vmatpush1.msra.mxu0 %v422
    %2553 = vmatprep.subr.mxu0 0.0
    %2554 = vmatpush1.msra.mxu0 %v425
    %2555 = vmatprep.subr.mxu0 0.0
    %2556 = vmatpush1.msra.mxu0 %v428
    %2557 = vmatprep.subr.mxu0 0.0
    %2558 = vmatpush1.msra.mxu0 %v431
    %2559 = vmatprep.subr.mxu0 0.0
    %2560 = vmatpush1.msra.mxu0 %v434
    %2561 = vmatprep.subr.mxu0 0.0
    %2562 = vmatpush1.msra.mxu0 %v437
    %2563 = vmatprep.subr.mxu0 0.0
    %2564 = vmatpush1.msra.mxu0 %v440
    %2565 = vmatprep.subr.mxu0 0.0
    %2566 = vmatpush1.msra.mxu0 %v443
    %2567 = vmatprep.subr.mxu0 0.0
    %2568 = vmatpush1.msra.mxu0 %v446
    %2569 = vmatprep.subr.mxu0 0.0
    %2570 = vmatpush1.msra.mxu0 %v449
    %2571 = vmatprep.subr.mxu0 0.0
    %2572 = vmatpush1.msra.mxu0 %v452
    %2573 = vmatprep.subr.mxu0 0.0
    %2574 = vmatpush1.msra.mxu0 %v455
    %2575 = vmatprep.subr.mxu0 0.0
    %2576 = vmatpush1.msra.mxu0 0.0
    %2577 = vmatprep.subr.mxu0 0.0
    %2578 = vmatpush1.msra.mxu0 0.0
    %2579 = vmatprep.subr.mxu0 0.0
    %2580 = vmatpush1.msra.mxu0 0.0
    %2581 = vmatprep.subr.mxu0 0.0
    %2582 = vmatpush1.msra.mxu0 0.0
    %2583 = vmatprep.subr.mxu0 0.0
    %2584 = vmatpush1.msra.mxu0 0.0
    %2585 = vmatprep.subr.mxu0 0.0
    %2586 = vmatpush1.msra.mxu0 0.0
    %2587 = vmatprep.subr.mxu0 0.0
    %2588 = vmatpush1.msra.mxu0 0.0
    %2589 = vmatprep.subr.mxu0 0.0
    %2590 = vmatpush1.msra.mxu0 0.0
    %2591 = vmatprep.subr.mxu0 0.0
    %2592 = vmatpush1.msra.mxu0 0.0
    %2593 = vmatprep.subr.mxu0 0.0
    %2594 = vmatpush1.msra.mxu0 0.0
    %2595 = vmatprep.subr.mxu0 0.0
    %2596 = vmatpush1.msra.mxu0 0.0
    %2597 = vmatprep.subr.mxu0 0.0
    %2598 = vmatpush1.msra.mxu0 0.0
    %2599 = vmatprep.subr.mxu0 0.0
    %2600 = vmatpush1.msra.mxu0 0.0
    %2601 = vmatprep.subr.mxu0 0.0
    %2602 = vmatpush1.msra.mxu0 0.0
    %2603 = vmatprep.subr.mxu0 0.0
    %2604 = vmatpush1.msra.mxu0 0.0
    %2605 = vmatprep.subr.mxu0 0.0
    %2606 = vmatpush1.msra.mxu0 0.0
    %2607 = vmatprep.mubr.f32.mxu0 0.0
    %2608 = vmatmul.mubr.f32.gmra.mrb[0].mxu0 %v2165
    %v2609 = vpop.f32.mrb[0].mxu0
    %v2610 = vadd.f32 %v468, %v2609
    %v2611 = vpop.f32.mrb[0].mxu0
    %2612 = vdwg.mxu0
    %v2613 = vadd.f32 %v2469, %v2539
    %v2614 = vxor.u32 %v2613, 2147483648
    %v2615 = vmul.f32 %v2614, 1.442695
    %v2616 = vpow.pop %v2615
    %v2617 = vadd.f32 %v2616, 1.0
    %v2618 = vrcp.pop %v2617
    %v2619 = vmul.f32 1.0, %v2618
    %v2620 = vadd.f32 %v2470, %v2541
    %v2621 = vxor.u32 %v2620, 2147483648
    %v2622 = vmul.f32 %v2621, 1.442695
    %v2623 = vpow.pop %v2622
    %v2624 = vadd.f32 %v2623, 1.0
    %v2625 = vrcp.pop %v2624
    %v2626 = vmul.f32 1.0, %v2625
    %v2627 = vmul.f32 %v2619, %v2610
    %v2628 = vadd.f32 %v2471, %v2627
    %v2629 = vtanh.pop %v2628
    %v2630 = vsub.f32 1.0, %v2626
    %v2631 = vmul.f32 %v2630, %v2629
    %v2632 = vmul.f32 %v2626, %v2165
    %v2633 = vadd.f32 %v2631, %v2632
    %2634 = vmatprep.subr.mxu0 %v635
    %2635 = vmatpush1.msra.mxu0 %v634
    %2636 = vmatprep.subr.mxu0 %v638
    %2637 = vmatpush1.msra.mxu0 %v637
    %2638 = vmatprep.subr.mxu0 %v641
    %2639 = vmatpush1.msra.mxu0 %v640
    %2640 = vmatprep.subr.mxu0 %v644
    %2641 = vmatpush1.msra.mxu0 %v643
    %2642 = vmatprep.subr.mxu0 %v647
    %2643 = vmatpush1.msra.mxu0 %v646
    %2644 = vmatprep.subr.mxu0 %v650
    %2645 = vmatpush1.msra.mxu0 %v649
    %2646 = vmatprep.subr.mxu0 %v653
    %2647 = vmatpush1.msra.mxu0 %v652
    %2648 = vmatprep.subr.mxu0 %v656
    %2649 = vmatpush1.msra.mxu0 %v655
    %2650 = vmatprep.subr.mxu0 %v659
    %2651 = vmatpush1.msra.mxu0 %v658
    %2652 = vmatprep.subr.mxu0 %v662
    %2653 = vmatpush1.msra.mxu0 %v661
    %2654 = vmatprep.subr.mxu0 %v665
    %2655 = vmatpush1.msra.mxu0 %v664
    %2656 = vmatprep.subr.mxu0 %v668
    %2657 = vmatpush1.msra.mxu0 %v667
    %2658 = vmatprep.subr.mxu0 %v671
    %2659 = vmatpush1.msra.mxu0 %v670
    %2660 = vmatprep.subr.mxu0 %v674
    %2661 = vmatpush1.msra.mxu0 %v673
    %2662 = vmatprep.subr.mxu0 %v677
    %2663 = vmatpush1.msra.mxu0 %v676
    %2664 = vmatprep.subr.mxu0 %v680
    %2665 = vmatpush1.msra.mxu0 %v679
    %2666 = vmatprep.subr.mxu0 0.0
    %2667 = vmatpush1.msra.mxu0 0.0
    %2668 = vmatprep.subr.mxu0 0.0
    %2669 = vmatpush1.msra.mxu0 0.0
    %2670 = vmatprep.subr.mxu0 0.0
    %2671 = vmatpush1.msra.mxu0 0.0
    %2672 = vmatprep.subr.mxu0 0.0
    %2673 = vmatpush1.msra.mxu0 0.0
    %2674 = vmatprep.subr.mxu0 0.0
    %2675 = vmatpush1.msra.mxu0 0.0
    %2676 = vmatprep.subr.mxu0 0.0
    %2677 = vmatpush1.msra.mxu0 0.0
    %2678 = vmatprep.subr.mxu0 0.0
    %2679 = vmatpush1.msra.mxu0 0.0
    %2680 = vmatprep.subr.mxu0 0.0
    %2681 = vmatpush1.msra.mxu0 0.0
    %2682 = vmatprep.subr.mxu0 0.0
    %2683 = vmatpush1.msra.mxu0 0.0
    %2684 = vmatprep.subr.mxu0 0.0
    %2685 = vmatpush1.msra.mxu0 0.0
    %2686 = vmatprep.subr.mxu0 0.0
    %2687 = vmatpush1.msra.mxu0 0.0
    %2688 = vmatprep.subr.mxu0 0.0
    %2689 = vmatpush1.msra.mxu0 0.0
    %2690 = vmatprep.subr.mxu0 0.0
    %2691 = vmatpush1.msra.mxu0 0.0
    %2692 = vmatprep.subr.mxu0 0.0
    %2693 = vmatpush1.msra.mxu0 0.0
    %2694 = vmatprep.subr.mxu0 0.0
    %2695 = vmatpush1.msra.mxu0 0.0
    %2696 = vmatprep.subr.mxu0 0.0
    %2697 = vmatpush1.msra.mxu0 0.0
    %2698 = vmatprep.mubr.f32.mxu0 0.0
    %2699 = vmatmul.mubr.f32.gmra.mrb[0].mxu0 %v2633
    %v2700 = vpop.f32.mrb[0].mxu0
    %v2701 = vadd.f32 %v686, %v2700
    %v2702 = vpop.f32.mrb[0].mxu0
    %v2703 = vadd.f32 %v690, %v2702
    %2704 = vdwg.mxu0
    %2705 = vmatprep.subr.mxu0 0.0
    %2706 = vmatpush1.msra.mxu0 %v636
    %2707 = vmatprep.subr.mxu0 0.0
    %2708 = vmatpush1.msra.mxu0 %v639
    %2709 = vmatprep.subr.mxu0 0.0
    %2710 = vmatpush1.msra.mxu0 %v642
    %2711 = vmatprep.subr.mxu0 0.0
    %2712 = vmatpush1.msra.mxu0 %v645
    %2713 = vmatprep.subr.mxu0 0.0
    %2714 = vmatpush1.msra.mxu0 %v648
    %2715 = vmatprep.subr.mxu0 0.0
    %2716 = vmatpush1.msra.mxu0 %v651
    %2717 = vmatprep.subr.mxu0 0.0
    %2718 = vmatpush1.msra.mxu0 %v654
    %2719 = vmatprep.subr.mxu0 0.0
    %2720 = vmatpush1.msra.mxu0 %v657
    %2721 = vmatprep.subr.mxu0 0.0
    %2722 = vmatpush1.msra.mxu0 %v660
    %2723 = vmatprep.subr.mxu0 0.0
    %2724 = vmatpush1.msra.mxu0 %v663
    %2725 = vmatprep.subr.mxu0 0.0
    %2726 = vmatpush1.msra.mxu0 %v666
    %2727 = vmatprep.subr.mxu0 0.0
    %2728 = vmatpush1.msra.mxu0 %v669
    %2729 = vmatprep.subr.mxu0 0.0
    %2730 = vmatpush1.msra.mxu0 %v672
    %2731 = vmatprep.subr.mxu0 0.0
    %2732 = vmatpush1.msra.mxu0 %v675
    %2733 = vmatprep.subr.mxu0 0.0
    %2734 = vmatpush1.msra.mxu0 %v678
    %2735 = vmatprep.subr.mxu0 0.0
    %2736 = vmatpush1.msra.mxu0 %v681
    %2737 = vmatprep.subr.mxu0 0.0
    %2738 = vmatpush1.msra.mxu0 0.0
    %2739 = vmatprep.subr.mxu0 0.0
    %2740 = vmatpush1.msra.mxu0 0.0
    %2741 = vmatprep.subr.mxu0 0.0
    %2742 = vmatpush1.msra.mxu0 0.0
    %2743 = vmatprep.subr.mxu0 0.0
    %2744 = vmatpush1.msra.mxu0 0.0
    %2745 = vmatprep.subr.mxu0 0.0
    %2746 = vmatpush1.msra.mxu0 0.0
    %2747 = vmatprep.subr.mxu0 0.0
    %2748 = vmatpush1.msra.mxu0 0.0
    %2749 = vmatprep.subr.mxu0 0.0
    %2750 = vmatpush1.msra.mxu0 0.0
    %2751 = vmatprep.subr.mxu0 0.0
    %2752 = vmatpush1.msra.mxu0 0.0
    %2753 = vmatprep.subr.mxu0 0.0
    %2754 = vmatpush1.msra.mxu0 0.0
    %2755 = vmatprep.subr.mxu0 0.0
    %2756 = vmatpush1.msra.mxu0 0.0
    %2757 = vmatprep.subr.mxu0 0.0
    %2758 = vmatpush1.msra.mxu0 0.0
    %2759 = vmatprep.subr.mxu0 0.0
    %2760 = vmatpush1.msra.mxu0 0.0
    %2761 = vmatprep.subr.mxu0 0.0
    %2762 = vmatpush1.msra.mxu0 0.0
    %2763 = vmatprep.subr.mxu0 0.0
    %2764 = vmatpush1.msra.mxu0 0.0
    %2765 = vmatprep.subr.mxu0 0.0
    %2766 = vmatpush1.msra.mxu0 0.0
    %2767 = vmatprep.subr.mxu0 0.0
    %2768 = vmatpush1.msra.mxu0 0.0
    %2769 = vmatprep.mubr.f32.mxu0 0.0
    %2770 = vmatmul.mubr.f32.gmra.mrb[0].mxu0 %v2633
    %v2771 = vpop.f32.mrb[0].mxu0
    %v2772 = vadd.f32 %v694, %v2771
    %v2773 = vpop.f32.mrb[0].mxu0
    %2774 = vdwg.mxu0
    %2775 = vmatprep.subr.mxu0 %v840
    %2776 = vmatpush1.msra.mxu0 %v839
    %2777 = vmatprep.subr.mxu0 %v843
    %2778 = vmatpush1.msra.mxu0 %v842
    %2779 = vmatprep.subr.mxu0 %v846
    %2780 = vmatpush1.msra.mxu0 %v845
    %2781 = vmatprep.subr.mxu0 %v849
    %2782 = vmatpush1.msra.mxu0 %v848
    %2783 = vmatprep.subr.mxu0 %v852
    %2784 = vmatpush1.msra.mxu0 %v851
    %2785 = vmatprep.subr.mxu0 %v855
    %2786 = vmatpush1.msra.mxu0 %v854
    %2787 = vmatprep.subr.mxu0 %v858
    %2788 = vmatpush1.msra.mxu0 %v857
    %2789 = vmatprep.subr.mxu0 %v861
    %2790 = vmatpush1.msra.mxu0 %v860
    %2791 = vmatprep.subr.mxu0 %v864
    %2792 = vmatpush1.msra.mxu0 %v863
    %2793 = vmatprep.subr.mxu0 %v867
    %2794 = vmatpush1.msra.mxu0 %v866
    %2795 = vmatprep.subr.mxu0 %v870
    %2796 = vmatpush1.msra.mxu0 %v869
    %2797 = vmatprep.subr.mxu0 %v873
    %2798 = vmatpush1.msra.mxu0 %v872
    %2799 = vmatprep.subr.mxu0 %v876
    %2800 = vmatpush1.msra.mxu0 %v875
    %2801 = vmatprep.subr.mxu0 %v879
    %2802 = vmatpush1.msra.mxu0 %v878
    %2803 = vmatprep.subr.mxu0 %v882
    %2804 = vmatpush1.msra.mxu0 %v881
    %2805 = vmatprep.subr.mxu0 %v885
    %2806 = vmatpush1.msra.mxu0 %v884
    %2807 = vmatprep.subr.mxu0 0.0
    %2808 = vmatpush1.msra.mxu0 0.0
    %2809 = vmatprep.subr.mxu0 0.0
    %2810 = vmatpush1.msra.mxu0 0.0
    %2811 = vmatprep.subr.mxu0 0.0
    %2812 = vmatpush1.msra.mxu0 0.0
    %2813 = vmatprep.subr.mxu0 0.0
    %2814 = vmatpush1.msra.mxu0 0.0
    %2815 = vmatprep.subr.mxu0 0.0
    %2816 = vmatpush1.msra.mxu0 0.0
    %2817 = vmatprep.subr.mxu0 0.0
    %2818 = vmatpush1.msra.mxu0 0.0
    %2819 = vmatprep.subr.mxu0 0.0
    %2820 = vmatpush1.msra.mxu0 0.0
    %2821 = vmatprep.subr.mxu0 0.0
    %2822 = vmatpush1.msra.mxu0 0.0
    %2823 = vmatprep.subr.mxu0 0.0
    %2824 = vmatpush1.msra.mxu0 0.0
    %2825 = vmatprep.subr.mxu0 0.0
    %2826 = vmatpush1.msra.mxu0 0.0
    %2827 = vmatprep.subr.mxu0 0.0
    %2828 = vmatpush1.msra.mxu0 0.0
    %2829 = vmatprep.subr.mxu0 0.0
    %2830 = vmatpush1.msra.mxu0 0.0
    %2831 = vmatprep.subr.mxu0 0.0
    %2832 = vmatpush1.msra.mxu0 0.0
    %2833 = vmatprep.subr.mxu0 0.0
    %2834 = vmatpush1.msra.mxu0 0.0
    %2835 = vmatprep.subr.mxu0 0.0
    %2836 = vmatpush1.msra.mxu0 0.0
    %2837 = vmatprep.subr.mxu0 0.0
    %2838 = vmatpush1.msra.mxu0 0.0
    %2839 = vmatprep.mubr.f32.mxu0 0.0
    %2840 = vmatmul.mubr.f32.gmra.mrb[0].mxu0 %v2468
    %v2841 = vpop.f32.mrb[0].mxu0
    %v2842 = vadd.f32 %v891, %v2841
    %v2843 = vpop.f32.mrb[0].mxu0
    %v2844 = vadd.f32 %v895, %v2843
    %2845 = vdwg.mxu0
    %2846 = vmatprep.subr.mxu0 0.0
    %2847 = vmatpush1.msra.mxu0 %v841
    %2848 = vmatprep.subr.mxu0 0.0
    %2849 = vmatpush1.msra.mxu0 %v844
    %2850 = vmatprep.subr.mxu0 0.0
    %2851 = vmatpush1.msra.mxu0 %v847
    %2852 = vmatprep.subr.mxu0 0.0
    %2853 = vmatpush1.msra.mxu0 %v850
    %2854 = vmatprep.subr.mxu0 0.0
    %2855 = vmatpush1.msra.mxu0 %v853
    %2856 = vmatprep.subr.mxu0 0.0
    %2857 = vmatpush1.msra.mxu0 %v856
    %2858 = vmatprep.subr.mxu0 0.0
    %2859 = vmatpush1.msra.mxu0 %v859
    %2860 = vmatprep.subr.mxu0 0.0
    %2861 = vmatpush1.msra.mxu0 %v862
    %2862 = vmatprep.subr.mxu0 0.0
    %2863 = vmatpush1.msra.mxu0 %v865
    %2864 = vmatprep.subr.mxu0 0.0
    %2865 = vmatpush1.msra.mxu0 %v868
    %2866 = vmatprep.subr.mxu0 0.0
    %2867 = vmatpush1.msra.mxu0 %v871
    %2868 = vmatprep.subr.mxu0 0.0
    %2869 = vmatpush1.msra.mxu0 %v874
    %2870 = vmatprep.subr.mxu0 0.0
    %2871 = vmatpush1.msra.mxu0 %v877
    %2872 = vmatprep.subr.mxu0 0.0
    %2873 = vmatpush1.msra.mxu0 %v880
    %2874 = vmatprep.subr.mxu0 0.0
    %2875 = vmatpush1.msra.mxu0 %v883
    %2876 = vmatprep.subr.mxu0 0.0
    %2877 = vmatpush1.msra.mxu0 %v886
    %2878 = vmatprep.subr.mxu0 0.0
    %2879 = vmatpush1.msra.mxu0 0.0
    %2880 = vmatprep.subr.mxu0 0.0
    %2881 = vmatpush1.msra.mxu0 0.0
    %2882 = vmatprep.subr.mxu0 0.0
    %2883 = vmatpush1.msra.mxu0 0.0
    %2884 = vmatprep.subr.mxu0 0.0
    %2885 = vmatpush1.msra.mxu0 0.0
    %2886 = vmatprep.subr.mxu0 0.0
    %2887 = vmatpush1.msra.mxu0 0.0
    %2888 = vmatprep.subr.mxu0 0.0
    %2889 = vmatpush1.msra.mxu0 0.0
    %2890 = vmatprep.subr.mxu0 0.0
    %2891 = vmatpush1.msra.mxu0 0.0
    %2892 = vmatprep.subr.mxu0 0.0
    %2893 = vmatpush1.msra.mxu0 0.0
    %2894 = vmatprep.subr.mxu0 0.0
    %2895 = vmatpush1.msra.mxu0 0.0
    %2896 = vmatprep.subr.mxu0 0.0
    %2897 = vmatpush1.msra.mxu0 0.0
    %2898 = vmatprep.subr.mxu0 0.0
    %2899 = vmatpush1.msra.mxu0 0.0
    %2900 = vmatprep.subr.mxu0 0.0
    %2901 = vmatpush1.msra.mxu0 0.0
    %2902 = vmatprep.subr.mxu0 0.0
    %2903 = vmatpush1.msra.mxu0 0.0
    %2904 = vmatprep.subr.mxu0 0.0
    %2905 = vmatpush1.msra.mxu0 0.0
    %2906 = vmatprep.subr.mxu0 0.0
    %2907 = vmatpush1.msra.mxu0 0.0
    %2908 = vmatprep.subr.mxu0 0.0
    %2909 = vmatpush1.msra.mxu0 0.0
    %2910 = vmatprep.mubr.f32.mxu0 0.0
    %2911 = vmatmul.mubr.f32.gmra.mrb[0].mxu0 %v2468
    %v2912 = vpop.f32.mrb[0].mxu0
    %v2913 = vadd.f32 %v899, %v2912
    %v2914 = vpop.f32.mrb[0].mxu0
    %2915 = vdwg.mxu0
    %v2916 = vadd.f32 %v2701, %v2842
    %v2917 = vxor.u32 %v2916, 2147483648
    %v2918 = vmul.f32 %v2917, 1.442695
    %v2919 = vpow.pop %v2918
    %v2920 = vadd.f32 %v2919, 1.0
    %v2921 = vrcp.pop %v2920
    %v2922 = vmul.f32 1.0, %v2921
    %v2923 = vadd.f32 %v2703, %v2844
    %v2924 = vxor.u32 %v2923, 2147483648
    %v2925 = vmul.f32 %v2924, 1.442695
    %v2926 = vpow.pop %v2925
    %v2927 = vadd.f32 %v2926, 1.0
    %v2928 = vrcp.pop %v2927
    %v2929 = vmul.f32 1.0, %v2928
    %v2930 = vmul.f32 %v2922, %v2913
    %v2931 = vadd.f32 %v2772, %v2930
    %v2932 = vtanh.pop %v2931
    %v2933 = vsub.f32 1.0, %v2929
    %v2934 = vmul.f32 %v2933, %v2932
    %v2935 = vmul.f32 %v2929, %v2468
    %v2936 = vadd.f32 %v2934, %v2935
    %v2937 = vld [vmem:[#allocation2 + $0x78] sm:$0xff]
    %v2938 = vld [vmem:[#allocation2 + $0x80] sm:$0xff]
    %v2939 = vld [vmem:[#allocation2 + $0x88] sm:$0xff]
    %2940 = vmatprep.subr.mxu0 %v409
    %2941 = vmatpush1.msra.mxu0 %v408
    %2942 = vmatprep.subr.mxu0 %v412
    %2943 = vmatpush1.msra.mxu0 %v411
    %2944 = vmatprep.subr.mxu0 %v415
    %2945 = vmatpush1.msra.mxu0 %v414
    %2946 = vmatprep.subr.mxu0 %v418
    %2947 = vmatpush1.msra.mxu0 %v417
    %2948 = vmatprep.subr.mxu0 %v421
    %2949 = vmatpush1.msra.mxu0 %v420
    %2950 = vmatprep.subr.mxu0 %v424
    %2951 = vmatpush1.msra.mxu0 %v423
    %2952 = vmatprep.subr.mxu0 %v427
    %2953 = vmatpush1.msra.mxu0 %v426
    %2954 = vmatprep.subr.mxu0 %v430
    %2955 = vmatpush1.msra.mxu0 %v429
    %2956 = vmatprep.subr.mxu0 %v433
    %2957 = vmatpush1.msra.mxu0 %v432
    %2958 = vmatprep.subr.mxu0 %v436
    %2959 = vmatpush1.msra.mxu0 %v435
    %2960 = vmatprep.subr.mxu0 %v439
    %2961 = vmatpush1.msra.mxu0 %v438
    %2962 = vmatprep.subr.mxu0 %v442
    %2963 = vmatpush1.msra.mxu0 %v441
    %2964 = vmatprep.subr.mxu0 %v445
    %2965 = vmatpush1.msra.mxu0 %v444
    %2966 = vmatprep.subr.mxu0 %v448
    %2967 = vmatpush1.msra.mxu0 %v447
    %2968 = vmatprep.subr.mxu0 %v451
    %2969 = vmatpush1.msra.mxu0 %v450
    %2970 = vmatprep.subr.mxu0 %v454
    %2971 = vmatpush1.msra.mxu0 %v453
    %2972 = vmatprep.subr.mxu0 0.0
    %2973 = vmatpush1.msra.mxu0 0.0
    %2974 = vmatprep.subr.mxu0 0.0
    %2975 = vmatpush1.msra.mxu0 0.0
    %2976 = vmatprep.subr.mxu0 0.0
    %2977 = vmatpush1.msra.mxu0 0.0
    %2978 = vmatprep.subr.mxu0 0.0
    %2979 = vmatpush1.msra.mxu0 0.0
    %2980 = vmatprep.subr.mxu0 0.0
    %2981 = vmatpush1.msra.mxu0 0.0
    %2982 = vmatprep.subr.mxu0 0.0
    %2983 = vmatpush1.msra.mxu0 0.0
    %2984 = vmatprep.subr.mxu0 0.0
    %2985 = vmatpush1.msra.mxu0 0.0
    %2986 = vmatprep.subr.mxu0 0.0
    %2987 = vmatpush1.msra.mxu0 0.0
    %2988 = vmatprep.subr.mxu0 0.0
    %2989 = vmatpush1.msra.mxu0 0.0
    %2990 = vmatprep.subr.mxu0 0.0
    %2991 = vmatpush1.msra.mxu0 0.0
    %2992 = vmatprep.subr.mxu0 0.0
    %2993 = vmatpush1.msra.mxu0 0.0
    %2994 = vmatprep.subr.mxu0 0.0
    %2995 = vmatpush1.msra.mxu0 0.0
    %2996 = vmatprep.subr.mxu0 0.0
    %2997 = vmatpush1.msra.mxu0 0.0
    %2998 = vmatprep.subr.mxu0 0.0
    %2999 = vmatpush1.msra.mxu0 0.0
    %3000 = vmatprep.subr.mxu0 0.0
    %3001 = vmatpush1.msra.mxu0 0.0
    %3002 = vmatprep.subr.mxu0 0.0
    %3003 = vmatpush1.msra.mxu0 0.0
    %3004 = vmatprep.mubr.f32.mxu0 0.0
    %3005 = vmatmul.mubr.f32.gmra.mrb[0].mxu0 %v2633
    %v3006 = vpop.f32.mrb[0].mxu0
    %v3007 = vadd.f32 %v460, %v3006
    %v3008 = vpop.f32.mrb[0].mxu0
    %v3009 = vadd.f32 %v464, %v3008
    %3010 = vdwg.mxu0
    %3011 = vmatprep.subr.mxu0 0.0
    %3012 = vmatpush1.msra.mxu0 %v410
    %3013 = vmatprep.subr.mxu0 0.0
    %3014 = vmatpush1.msra.mxu0 %v413
    %3015 = vmatprep.subr.mxu0 0.0
    %3016 = vmatpush1.msra.mxu0 %v416
    %3017 = vmatprep.subr.mxu0 0.0
    %3018 = vmatpush1.msra.mxu0 %v419
    %3019 = vmatprep.subr.mxu0 0.0
    %3020 = vmatpush1.msra.mxu0 %v422
    %3021 = vmatprep.subr.mxu0 0.0
    %3022 = vmatpush1.msra.mxu0 %v425
    %3023 = vmatprep.subr.mxu0 0.0
    %3024 = vmatpush1.msra.mxu0 %v428
    %3025 = vmatprep.subr.mxu0 0.0
    %3026 = vmatpush1.msra.mxu0 %v431
    %3027 = vmatprep.subr.mxu0 0.0
    %3028 = vmatpush1.msra.mxu0 %v434
    %3029 = vmatprep.subr.mxu0 0.0
    %3030 = vmatpush1.msra.mxu0 %v437
    %3031 = vmatprep.subr.mxu0 0.0
    %3032 = vmatpush1.msra.mxu0 %v440
    %3033 = vmatprep.subr.mxu0 0.0
    %3034 = vmatpush1.msra.mxu0 %v443
    %3035 = vmatprep.subr.mxu0 0.0
    %3036 = vmatpush1.msra.mxu0 %v446
    %3037 = vmatprep.subr.mxu0 0.0
    %3038 = vmatpush1.msra.mxu0 %v449
    %3039 = vmatprep.subr.mxu0 0.0
    %3040 = vmatpush1.msra.mxu0 %v452
    %3041 = vmatprep.subr.mxu0 0.0
    %3042 = vmatpush1.msra.mxu0 %v455
    %3043 = vmatprep.subr.mxu0 0.0
    %3044 = vmatpush1.msra.mxu0 0.0
    %3045 = vmatprep.subr.mxu0 0.0
    %3046 = vmatpush1.msra.mxu0 0.0
    %3047 = vmatprep.subr.mxu0 0.0
    %3048 = vmatpush1.msra.mxu0 0.0
    %3049 = vmatprep.subr.mxu0 0.0
    %3050 = vmatpush1.msra.mxu0 0.0
    %3051 = vmatprep.subr.mxu0 0.0
    %3052 = vmatpush1.msra.mxu0 0.0
    %3053 = vmatprep.subr.mxu0 0.0
    %3054 = vmatpush1.msra.mxu0 0.0
    %3055 = vmatprep.subr.mxu0 0.0
    %3056 = vmatpush1.msra.mxu0 0.0
    %3057 = vmatprep.subr.mxu0 0.0
    %3058 = vmatpush1.msra.mxu0 0.0
    %3059 = vmatprep.subr.mxu0 0.0
    %3060 = vmatpush1.msra.mxu0 0.0
    %3061 = vmatprep.subr.mxu0 0.0
    %3062 = vmatpush1.msra.mxu0 0.0
    %3063 = vmatprep.subr.mxu0 0.0
    %3064 = vmatpush1.msra.mxu0 0.0
    %3065 = vmatprep.subr.mxu0 0.0
    %3066 = vmatpush1.msra.mxu0 0.0
    %3067 = vmatprep.subr.mxu0 0.0
    %3068 = vmatpush1.msra.mxu0 0.0
    %3069 = vmatprep.subr.mxu0 0.0
    %3070 = vmatpush1.msra.mxu0 0.0
    %3071 = vmatprep.subr.mxu0 0.0
    %3072 = vmatpush1.msra.mxu0 0.0
    %3073 = vmatprep.subr.mxu0 0.0
    %3074 = vmatpush1.msra.mxu0 0.0
    %3075 = vmatprep.mubr.f32.mxu0 0.0
    %3076 = vmatmul.mubr.f32.gmra.mrb[0].mxu0 %v2633
    %v3077 = vpop.f32.mrb[0].mxu0
    %v3078 = vadd.f32 %v468, %v3077
    %v3079 = vpop.f32.mrb[0].mxu0
    %3080 = vdwg.mxu0
    %v3081 = vadd.f32 %v2937, %v3007
    %v3082 = vxor.u32 %v3081, 2147483648
    %v3083 = vmul.f32 %v3082, 1.442695
    %v3084 = vpow.pop %v3083
    %v3085 = vadd.f32 %v3084, 1.0
    %v3086 = vrcp.pop %v3085
    %v3087 = vmul.f32 1.0, %v3086
    %v3088 = vadd.f32 %v2938, %v3009
    %v3089 = vxor.u32 %v3088, 2147483648
    %v3090 = vmul.f32 %v3089, 1.442695
    %v3091 = vpow.pop %v3090
    %v3092 = vadd.f32 %v3091, 1.0
    %v3093 = vrcp.pop %v3092
    %v3094 = vmul.f32 1.0, %v3093
    %v3095 = vmul.f32 %v3087, %v3078
    %v3096 = vadd.f32 %v2939, %v3095
    %v3097 = vtanh.pop %v3096
    %v3098 = vsub.f32 1.0, %v3094
    %v3099 = vmul.f32 %v3098, %v3097
    %v3100 = vmul.f32 %v3094, %v2633
    %v3101 = vadd.f32 %v3099, %v3100
    %3102 = vmatprep.subr.mxu0 %v635
    %3103 = vmatpush1.msra.mxu0 %v634
    %3104 = vmatprep.subr.mxu0 %v638
    %3105 = vmatpush1.msra.mxu0 %v637
    %3106 = vmatprep.subr.mxu0 %v641
    %3107 = vmatpush1.msra.mxu0 %v640
    %3108 = vmatprep.subr.mxu0 %v644
    %3109 = vmatpush1.msra.mxu0 %v643
    %3110 = vmatprep.subr.mxu0 %v647
    %3111 = vmatpush1.msra.mxu0 %v646
    %3112 = vmatprep.subr.mxu0 %v650
    %3113 = vmatpush1.msra.mxu0 %v649
    %3114 = vmatprep.subr.mxu0 %v653
    %3115 = vmatpush1.msra.mxu0 %v652
    %3116 = vmatprep.subr.mxu0 %v656
    %3117 = vmatpush1.msra.mxu0 %v655
    %3118 = vmatprep.subr.mxu0 %v659
    %3119 = vmatpush1.msra.mxu0 %v658
    %3120 = vmatprep.subr.mxu0 %v662
    %3121 = vmatpush1.msra.mxu0 %v661
    %3122 = vmatprep.subr.mxu0 %v665
    %3123 = vmatpush1.msra.mxu0 %v664
    %3124 = vmatprep.subr.mxu0 %v668
    %3125 = vmatpush1.msra.mxu0 %v667
    %3126 = vmatprep.subr.mxu0 %v671
    %3127 = vmatpush1.msra.mxu0 %v670
    %3128 = vmatprep.subr.mxu0 %v674
    %3129 = vmatpush1.msra.mxu0 %v673
    %3130 = vmatprep.subr.mxu0 %v677
    %3131 = vmatpush1.msra.mxu0 %v676
    %3132 = vmatprep.subr.mxu0 %v680
    %3133 = vmatpush1.msra.mxu0 %v679
    %3134 = vmatprep.subr.mxu0 0.0
    %3135 = vmatpush1.msra.mxu0 0.0
    %3136 = vmatprep.subr.mxu0 0.0
    %3137 = vmatpush1.msra.mxu0 0.0
    %3138 = vmatprep.subr.mxu0 0.0
    %3139 = vmatpush1.msra.mxu0 0.0
    %3140 = vmatprep.subr.mxu0 0.0
    %3141 = vmatpush1.msra.mxu0 0.0
    %3142 = vmatprep.subr.mxu0 0.0
    %3143 = vmatpush1.msra.mxu0 0.0
    %3144 = vmatprep.subr.mxu0 0.0
    %3145 = vmatpush1.msra.mxu0 0.0
    %3146 = vmatprep.subr.mxu0 0.0
    %3147 = vmatpush1.msra.mxu0 0.0
    %3148 = vmatprep.subr.mxu0 0.0
    %3149 = vmatpush1.msra.mxu0 0.0
    %3150 = vmatprep.subr.mxu0 0.0
    %3151 = vmatpush1.msra.mxu0 0.0
    %3152 = vmatprep.subr.mxu0 0.0
    %3153 = vmatpush1.msra.mxu0 0.0
    %3154 = vmatprep.subr.mxu0 0.0
    %3155 = vmatpush1.msra.mxu0 0.0
    %3156 = vmatprep.subr.mxu0 0.0
    %3157 = vmatpush1.msra.mxu0 0.0
    %3158 = vmatprep.subr.mxu0 0.0
    %3159 = vmatpush1.msra.mxu0 0.0
    %3160 = vmatprep.subr.mxu0 0.0
    %3161 = vmatpush1.msra.mxu0 0.0
    %3162 = vmatprep.subr.mxu0 0.0
    %3163 = vmatpush1.msra.mxu0 0.0
    %3164 = vmatprep.subr.mxu0 0.0
    %3165 = vmatpush1.msra.mxu0 0.0
    %3166 = vmatprep.mubr.f32.mxu0 0.0
    %3167 = vmatmul.mubr.f32.gmra.mrb[0].mxu0 %v3101
    %v3168 = vpop.f32.mrb[0].mxu0
    %v3169 = vadd.f32 %v686, %v3168
    %v3170 = vpop.f32.mrb[0].mxu0
    %v3171 = vadd.f32 %v690, %v3170
    %3172 = vdwg.mxu0
    %3173 = vmatprep.subr.mxu0 0.0
    %3174 = vmatpush1.msra.mxu0 %v636
    %3175 = vmatprep.subr.mxu0 0.0
    %3176 = vmatpush1.msra.mxu0 %v639
    %3177 = vmatprep.subr.mxu0 0.0
    %3178 = vmatpush1.msra.mxu0 %v642
    %3179 = vmatprep.subr.mxu0 0.0
    %3180 = vmatpush1.msra.mxu0 %v645
    %3181 = vmatprep.subr.mxu0 0.0
    %3182 = vmatpush1.msra.mxu0 %v648
    %3183 = vmatprep.subr.mxu0 0.0
    %3184 = vmatpush1.msra.mxu0 %v651
    %3185 = vmatprep.subr.mxu0 0.0
    %3186 = vmatpush1.msra.mxu0 %v654
    %3187 = vmatprep.subr.mxu0 0.0
    %3188 = vmatpush1.msra.mxu0 %v657
    %3189 = vmatprep.subr.mxu0 0.0
    %3190 = vmatpush1.msra.mxu0 %v660
    %3191 = vmatprep.subr.mxu0 0.0
    %3192 = vmatpush1.msra.mxu0 %v663
    %3193 = vmatprep.subr.mxu0 0.0
    %3194 = vmatpush1.msra.mxu0 %v666
    %3195 = vmatprep.subr.mxu0 0.0
    %3196 = vmatpush1.msra.mxu0 %v669
    %3197 = vmatprep.subr.mxu0 0.0
    %3198 = vmatpush1.msra.mxu0 %v672
    %3199 = vmatprep.subr.mxu0 0.0
    %3200 = vmatpush1.msra.mxu0 %v675
    %3201 = vmatprep.subr.mxu0 0.0
    %3202 = vmatpush1.msra.mxu0 %v678
    %3203 = vmatprep.subr.mxu0 0.0
    %3204 = vmatpush1.msra.mxu0 %v681
    %3205 = vmatprep.subr.mxu0 0.0
    %3206 = vmatpush1.msra.mxu0 0.0
    %3207 = vmatprep.subr.mxu0 0.0
    %3208 = vmatpush1.msra.mxu0 0.0
    %3209 = vmatprep.subr.mxu0 0.0
    %3210 = vmatpush1.msra.mxu0 0.0
    %3211 = vmatprep.subr.mxu0 0.0
    %3212 = vmatpush1.msra.mxu0 0.0
    %3213 = vmatprep.subr.mxu0 0.0
    %3214 = vmatpush1.msra.mxu0 0.0
    %3215 = vmatprep.subr.mxu0 0.0
    %3216 = vmatpush1.msra.mxu0 0.0
    %3217 = vmatprep.subr.mxu0 0.0
    %3218 = vmatpush1.msra.mxu0 0.0
    %3219 = vmatprep.subr.mxu0 0.0
    %3220 = vmatpush1.msra.mxu0 0.0
    %3221 = vmatprep.subr.mxu0 0.0
    %3222 = vmatpush1.msra.mxu0 0.0
    %3223 = vmatprep.subr.mxu0 0.0
    %3224 = vmatpush1.msra.mxu0 0.0
    %3225 = vmatprep.subr.mxu0 0.0
    %3226 = vmatpush1.msra.mxu0 0.0
    %3227 = vmatprep.subr.mxu0 0.0
    %3228 = vmatpush1.msra.mxu0 0.0
    %3229 = vmatprep.subr.mxu0 0.0
    %3230 = vmatpush1.msra.mxu0 0.0
    %3231 = vmatprep.subr.mxu0 0.0
    %3232 = vmatpush1.msra.mxu0 0.0
    %3233 = vmatprep.subr.mxu0 0.0
    %3234 = vmatpush1.msra.mxu0 0.0
    %3235 = vmatprep.subr.mxu0 0.0
    %3236 = vmatpush1.msra.mxu0 0.0
    %3237 = vmatprep.mubr.f32.mxu0 0.0
    %3238 = vmatmul.mubr.f32.gmra.mrb[0].mxu0 %v3101
    %v3239 = vpop.f32.mrb[0].mxu0
    %v3240 = vadd.f32 %v694, %v3239
    %v3241 = vpop.f32.mrb[0].mxu0
    %3242 = vdwg.mxu0
    %3243 = vmatprep.subr.mxu0 %v840
    %3244 = vmatpush1.msra.mxu0 %v839
    %3245 = vmatprep.subr.mxu0 %v843
    %3246 = vmatpush1.msra.mxu0 %v842
    %3247 = vmatprep.subr.mxu0 %v846
    %3248 = vmatpush1.msra.mxu0 %v845
    %3249 = vmatprep.subr.mxu0 %v849
    %3250 = vmatpush1.msra.mxu0 %v848
    %3251 = vmatprep.subr.mxu0 %v852
    %3252 = vmatpush1.msra.mxu0 %v851
    %3253 = vmatprep.subr.mxu0 %v855
    %3254 = vmatpush1.msra.mxu0 %v854
    %3255 = vmatprep.subr.mxu0 %v858
    %3256 = vmatpush1.msra.mxu0 %v857
    %3257 = vmatprep.subr.mxu0 %v861
    %3258 = vmatpush1.msra.mxu0 %v860
    %3259 = vmatprep.subr.mxu0 %v864
    %3260 = vmatpush1.msra.mxu0 %v863
    %3261 = vmatprep.subr.mxu0 %v867
    %3262 = vmatpush1.msra.mxu0 %v866
    %3263 = vmatprep.subr.mxu0 %v870
    %3264 = vmatpush1.msra.mxu0 %v869
    %3265 = vmatprep.subr.mxu0 %v873
    %3266 = vmatpush1.msra.mxu0 %v872
    %3267 = vmatprep.subr.mxu0 %v876
    %3268 = vmatpush1.msra.mxu0 %v875
    %3269 = vmatprep.subr.mxu0 %v879
    %3270 = vmatpush1.msra.mxu0 %v878
    %3271 = vmatprep.subr.mxu0 %v882
    %3272 = vmatpush1.msra.mxu0 %v881
    %3273 = vmatprep.subr.mxu0 %v885
    %3274 = vmatpush1.msra.mxu0 %v884
    %3275 = vmatprep.subr.mxu0 0.0
    %3276 = vmatpush1.msra.mxu0 0.0
    %3277 = vmatprep.subr.mxu0 0.0
    %3278 = vmatpush1.msra.mxu0 0.0
    %3279 = vmatprep.subr.mxu0 0.0
    %3280 = vmatpush1.msra.mxu0 0.0
    %3281 = vmatprep.subr.mxu0 0.0
    %3282 = vmatpush1.msra.mxu0 0.0
    %3283 = vmatprep.subr.mxu0 0.0
    %3284 = vmatpush1.msra.mxu0 0.0
    %3285 = vmatprep.subr.mxu0 0.0
    %3286 = vmatpush1.msra.mxu0 0.0
    %3287 = vmatprep.subr.mxu0 0.0
    %3288 = vmatpush1.msra.mxu0 0.0
    %3289 = vmatprep.subr.mxu0 0.0
    %3290 = vmatpush1.msra.mxu0 0.0
    %3291 = vmatprep.subr.mxu0 0.0
    %3292 = vmatpush1.msra.mxu0 0.0
    %3293 = vmatprep.subr.mxu0 0.0
    %3294 = vmatpush1.msra.mxu0 0.0
    %3295 = vmatprep.subr.mxu0 0.0
    %3296 = vmatpush1.msra.mxu0 0.0
    %3297 = vmatprep.subr.mxu0 0.0
    %3298 = vmatpush1.msra.mxu0 0.0
    %3299 = vmatprep.subr.mxu0 0.0
    %3300 = vmatpush1.msra.mxu0 0.0
    %3301 = vmatprep.subr.mxu0 0.0
    %3302 = vmatpush1.msra.mxu0 0.0
    %3303 = vmatprep.subr.mxu0 0.0
    %3304 = vmatpush1.msra.mxu0 0.0
    %3305 = vmatprep.subr.mxu0 0.0
    %3306 = vmatpush1.msra.mxu0 0.0
    %3307 = vmatprep.mubr.f32.mxu0 0.0
    %3308 = vmatmul.mubr.f32.gmra.mrb[0].mxu0 %v2936
    %v3309 = vpop.f32.mrb[0].mxu0
    %v3310 = vadd.f32 %v891, %v3309
    %v3311 = vpop.f32.mrb[0].mxu0
    %v3312 = vadd.f32 %v895, %v3311
    %3313 = vdwg.mxu0
    %3314 = vmatprep.subr.mxu0 0.0
    %3315 = vmatpush1.msra.mxu0 %v841
    %3316 = vmatprep.subr.mxu0 0.0
    %3317 = vmatpush1.msra.mxu0 %v844
    %3318 = vmatprep.subr.mxu0 0.0
    %3319 = vmatpush1.msra.mxu0 %v847
    %3320 = vmatprep.subr.mxu0 0.0
    %3321 = vmatpush1.msra.mxu0 %v850
    %3322 = vmatprep.subr.mxu0 0.0
    %3323 = vmatpush1.msra.mxu0 %v853
    %3324 = vmatprep.subr.mxu0 0.0
    %3325 = vmatpush1.msra.mxu0 %v856
    %3326 = vmatprep.subr.mxu0 0.0
    %3327 = vmatpush1.msra.mxu0 %v859
    %3328 = vmatprep.subr.mxu0 0.0
    %3329 = vmatpush1.msra.mxu0 %v862
    %3330 = vmatprep.subr.mxu0 0.0
    %3331 = vmatpush1.msra.mxu0 %v865
    %3332 = vmatprep.subr.mxu0 0.0
    %3333 = vmatpush1.msra.mxu0 %v868
    %3334 = vmatprep.subr.mxu0 0.0
    %3335 = vmatpush1.msra.mxu0 %v871
    %3336 = vmatprep.subr.mxu0 0.0
    %3337 = vmatpush1.msra.mxu0 %v874
    %3338 = vmatprep.subr.mxu0 0.0
    %3339 = vmatpush1.msra.mxu0 %v877
    %3340 = vmatprep.subr.mxu0 0.0
    %3341 = vmatpush1.msra.mxu0 %v880
    %3342 = vmatprep.subr.mxu0 0.0
    %3343 = vmatpush1.msra.mxu0 %v883
    %3344 = vmatprep.subr.mxu0 0.0
    %3345 = vmatpush1.msra.mxu0 %v886
    %3346 = vmatprep.subr.mxu0 0.0
    %3347 = vmatpush1.msra.mxu0 0.0
    %3348 = vmatprep.subr.mxu0 0.0
    %3349 = vmatpush1.msra.mxu0 0.0
    %3350 = vmatprep.subr.mxu0 0.0
    %3351 = vmatpush1.msra.mxu0 0.0
    %3352 = vmatprep.subr.mxu0 0.0
    %3353 = vmatpush1.msra.mxu0 0.0
    %3354 = vmatprep.subr.mxu0 0.0
    %3355 = vmatpush1.msra.mxu0 0.0
    %3356 = vmatprep.subr.mxu0 0.0
    %3357 = vmatpush1.msra.mxu0 0.0
    %3358 = vmatprep.subr.mxu0 0.0
    %3359 = vmatpush1.msra.mxu0 0.0
    %3360 = vmatprep.subr.mxu0 0.0
    %3361 = vmatpush1.msra.mxu0 0.0
    %3362 = vmatprep.subr.mxu0 0.0
    %3363 = vmatpush1.msra.mxu0 0.0
    %3364 = vmatprep.subr.mxu0 0.0
    %3365 = vmatpush1.msra.mxu0 0.0
    %3366 = vmatprep.subr.mxu0 0.0
    %3367 = vmatpush1.msra.mxu0 0.0
    %3368 = vmatprep.subr.mxu0 0.0
    %3369 = vmatpush1.msra.mxu0 0.0
    %3370 = vmatprep.subr.mxu0 0.0
    %3371 = vmatpush1.msra.mxu0 0.0
    %3372 = vmatprep.subr.mxu0 0.0
    %3373 = vmatpush1.msra.mxu0 0.0
    %3374 = vmatprep.subr.mxu0 0.0
    %3375 = vmatpush1.msra.mxu0 0.0
    %3376 = vmatprep.subr.mxu0 0.0
    %3377 = vmatpush1.msra.mxu0 0.0
    %3378 = vmatprep.mubr.f32.mxu0 0.0
    %3379 = vmatmul.mubr.f32.gmra.mrb[0].mxu0 %v2936
    %v3380 = vpop.f32.mrb[0].mxu0
    %v3381 = vadd.f32 %v899, %v3380
    %v3382 = vpop.f32.mrb[0].mxu0
    %3383 = vdwg.mxu0
    %v3384 = vadd.f32 %v3169, %v3310
    %v3385 = vxor.u32 %v3384, 2147483648
    %v3386 = vmul.f32 %v3385, 1.442695
    %v3387 = vpow.pop %v3386
    %v3388 = vadd.f32 %v3387, 1.0
    %v3389 = vrcp.pop %v3388
    %v3390 = vmul.f32 1.0, %v3389
    %v3391 = vadd.f32 %v3171, %v3312
    %v3392 = vxor.u32 %v3391, 2147483648
    %v3393 = vmul.f32 %v3392, 1.442695
    %v3394 = vpow.pop %v3393
    %v3395 = vadd.f32 %v3394, 1.0
    %v3396 = vrcp.pop %v3395
    %v3397 = vmul.f32 1.0, %v3396
    %v3398 = vmul.f32 %v3390, %v3381
    %v3399 = vadd.f32 %v3240, %v3398
    %v3400 = vtanh.pop %v3399
    %v3401 = vsub.f32 1.0, %v3397
    %v3402 = vmul.f32 %v3401, %v3400
    %v3403 = vmul.f32 %v3397, %v2936
    %v3404 = vadd.f32 %v3402, %v3403
    %v3405 = vld [vmem:[#allocation2 + $0x90] sm:$0xff]
    %v3406 = vld [vmem:[#allocation2 + $0x98] sm:$0xff]
    %v3407 = vld [vmem:[#allocation2 + $0xa0] sm:$0xff]
    %3408 = vmatprep.subr.mxu0 %v409
    %3409 = vmatpush1.msra.mxu0 %v408
    %3410 = vmatprep.subr.mxu0 %v412
    %3411 = vmatpush1.msra.mxu0 %v411
    %3412 = vmatprep.subr.mxu0 %v415
    %3413 = vmatpush1.msra.mxu0 %v414
    %3414 = vmatprep.subr.mxu0 %v418
    %3415 = vmatpush1.msra.mxu0 %v417
    %3416 = vmatprep.subr.mxu0 %v421
    %3417 = vmatpush1.msra.mxu0 %v420
    %3418 = vmatprep.subr.mxu0 %v424
    %3419 = vmatpush1.msra.mxu0 %v423
    %3420 = vmatprep.subr.mxu0 %v427
    %3421 = vmatpush1.msra.mxu0 %v426
    %3422 = vmatprep.subr.mxu0 %v430
    %3423 = vmatpush1.msra.mxu0 %v429
    %3424 = vmatprep.subr.mxu0 %v433
    %3425 = vmatpush1.msra.mxu0 %v432
    %3426 = vmatprep.subr.mxu0 %v436
    %3427 = vmatpush1.msra.mxu0 %v435
    %3428 = vmatprep.subr.mxu0 %v439
    %3429 = vmatpush1.msra.mxu0 %v438
    %3430 = vmatprep.subr.mxu0 %v442
    %3431 = vmatpush1.msra.mxu0 %v441
    %3432 = vmatprep.subr.mxu0 %v445
    %3433 = vmatpush1.msra.mxu0 %v444
    %3434 = vmatprep.subr.mxu0 %v448
    %3435 = vmatpush1.msra.mxu0 %v447
    %3436 = vmatprep.subr.mxu0 %v451
    %3437 = vmatpush1.msra.mxu0 %v450
    %3438 = vmatprep.subr.mxu0 %v454
    %3439 = vmatpush1.msra.mxu0 %v453
    %3440 = vmatprep.subr.mxu0 0.0
    %3441 = vmatpush1.msra.mxu0 0.0
    %3442 = vmatprep.subr.mxu0 0.0
    %3443 = vmatpush1.msra.mxu0 0.0
    %3444 = vmatprep.subr.mxu0 0.0
    %3445 = vmatpush1.msra.mxu0 0.0
    %3446 = vmatprep.subr.mxu0 0.0
    %3447 = vmatpush1.msra.mxu0 0.0
    %3448 = vmatprep.subr.mxu0 0.0
    %3449 = vmatpush1.msra.mxu0 0.0
    %3450 = vmatprep.subr.mxu0 0.0
    %3451 = vmatpush1.msra.mxu0 0.0
    %3452 = vmatprep.subr.mxu0 0.0
    %3453 = vmatpush1.msra.mxu0 0.0
    %3454 = vmatprep.subr.mxu0 0.0
    %3455 = vmatpush1.msra.mxu0 0.0
    %3456 = vmatprep.subr.mxu0 0.0
    %3457 = vmatpush1.msra.mxu0 0.0
    %3458 = vmatprep.subr.mxu0 0.0
    %3459 = vmatpush1.msra.mxu0 0.0
    %3460 = vmatprep.subr.mxu0 0.0
    %3461 = vmatpush1.msra.mxu0 0.0
    %3462 = vmatprep.subr.mxu0 0.0
    %3463 = vmatpush1.msra.mxu0 0.0
    %3464 = vmatprep.subr.mxu0 0.0
    %3465 = vmatpush1.msra.mxu0 0.0
    %3466 = vmatprep.subr.mxu0 0.0
    %3467 = vmatpush1.msra.mxu0 0.0
    %3468 = vmatprep.subr.mxu0 0.0
    %3469 = vmatpush1.msra.mxu0 0.0
    %3470 = vmatprep.subr.mxu0 0.0
    %3471 = vmatpush1.msra.mxu0 0.0
    %3472 = vmatprep.mubr.f32.mxu0 0.0
    %3473 = vmatmul.mubr.f32.gmra.mrb[0].mxu0 %v3101
    %v3474 = vpop.f32.mrb[0].mxu0
    %v3475 = vadd.f32 %v460, %v3474
    %v3476 = vpop.f32.mrb[0].mxu0
    %v3477 = vadd.f32 %v464, %v3476
    %3478 = vdwg.mxu0
    %3479 = vmatprep.subr.mxu0 0.0
    %3480 = vmatpush1.msra.mxu0 %v410
    %3481 = vmatprep.subr.mxu0 0.0
    %3482 = vmatpush1.msra.mxu0 %v413
    %3483 = vmatprep.subr.mxu0 0.0
    %3484 = vmatpush1.msra.mxu0 %v416
    %3485 = vmatprep.subr.mxu0 0.0
    %3486 = vmatpush1.msra.mxu0 %v419
    %3487 = vmatprep.subr.mxu0 0.0
    %3488 = vmatpush1.msra.mxu0 %v422
    %3489 = vmatprep.subr.mxu0 0.0
    %3490 = vmatpush1.msra.mxu0 %v425
    %3491 = vmatprep.subr.mxu0 0.0
    %3492 = vmatpush1.msra.mxu0 %v428
    %3493 = vmatprep.subr.mxu0 0.0
    %3494 = vmatpush1.msra.mxu0 %v431
    %3495 = vmatprep.subr.mxu0 0.0
    %3496 = vmatpush1.msra.mxu0 %v434
    %3497 = vmatprep.subr.mxu0 0.0
    %3498 = vmatpush1.msra.mxu0 %v437
    %3499 = vmatprep.subr.mxu0 0.0
    %3500 = vmatpush1.msra.mxu0 %v440
    %3501 = vmatprep.subr.mxu0 0.0
    %3502 = vmatpush1.msra.mxu0 %v443
    %3503 = vmatprep.subr.mxu0 0.0
    %3504 = vmatpush1.msra.mxu0 %v446
    %3505 = vmatprep.subr.mxu0 0.0
    %3506 = vmatpush1.msra.mxu0 %v449
    %3507 = vmatprep.subr.mxu0 0.0
    %3508 = vmatpush1.msra.mxu0 %v452
    %3509 = vmatprep.subr.mxu0 0.0
    %3510 = vmatpush1.msra.mxu0 %v455
    %3511 = vmatprep.subr.mxu0 0.0
    %3512 = vmatpush1.msra.mxu0 0.0
    %3513 = vmatprep.subr.mxu0 0.0
    %3514 = vmatpush1.msra.mxu0 0.0
    %3515 = vmatprep.subr.mxu0 0.0
    %3516 = vmatpush1.msra.mxu0 0.0
    %3517 = vmatprep.subr.mxu0 0.0
    %3518 = vmatpush1.msra.mxu0 0.0
    %3519 = vmatprep.subr.mxu0 0.0
    %3520 = vmatpush1.msra.mxu0 0.0
    %3521 = vmatprep.subr.mxu0 0.0
    %3522 = vmatpush1.msra.mxu0 0.0
    %3523 = vmatprep.subr.mxu0 0.0
    %3524 = vmatpush1.msra.mxu0 0.0
    %3525 = vmatprep.subr.mxu0 0.0
    %3526 = vmatpush1.msra.mxu0 0.0
    %3527 = vmatprep.subr.mxu0 0.0
    %3528 = vmatpush1.msra.mxu0 0.0
    %3529 = vmatprep.subr.mxu0 0.0
    %3530 = vmatpush1.msra.mxu0 0.0
    %3531 = vmatprep.subr.mxu0 0.0
    %3532 = vmatpush1.msra.mxu0 0.0
    %3533 = vmatprep.subr.mxu0 0.0
    %3534 = vmatpush1.msra.mxu0 0.0
    %3535 = vmatprep.subr.mxu0 0.0
    %3536 = vmatpush1.msra.mxu0 0.0
    %3537 = vmatprep.subr.mxu0 0.0
    %3538 = vmatpush1.msra.mxu0 0.0
    %3539 = vmatprep.subr.mxu0 0.0
    %3540 = vmatpush1.msra.mxu0 0.0
    %3541 = vmatprep.subr.mxu0 0.0
    %3542 = vmatpush1.msra.mxu0 0.0
    %3543 = vmatprep.mubr.f32.mxu0 0.0
    %3544 = vmatmul.mubr.f32.gmra.mrb[0].mxu0 %v3101
    %v3545 = vpop.f32.mrb[0].mxu0
    %v3546 = vadd.f32 %v468, %v3545
    %v3547 = vpop.f32.mrb[0].mxu0
    %3548 = vdwg.mxu0
    %v3549 = vadd.f32 %v3405, %v3475
    %v3550 = vxor.u32 %v3549, 2147483648
    %v3551 = vmul.f32 %v3550, 1.442695
    %v3552 = vpow.pop %v3551
    %v3553 = vadd.f32 %v3552, 1.0
    %v3554 = vrcp.pop %v3553
    %v3555 = vmul.f32 1.0, %v3554
    %v3556 = vadd.f32 %v3406, %v3477
    %v3557 = vxor.u32 %v3556, 2147483648
    %v3558 = vmul.f32 %v3557, 1.442695
    %v3559 = vpow.pop %v3558
    %v3560 = vadd.f32 %v3559, 1.0
    %v3561 = vrcp.pop %v3560
    %v3562 = vmul.f32 1.0, %v3561
    %v3563 = vmul.f32 %v3555, %v3546
    %v3564 = vadd.f32 %v3407, %v3563
    %v3565 = vtanh.pop %v3564
    %v3566 = vsub.f32 1.0, %v3562
    %v3567 = vmul.f32 %v3566, %v3565
    %v3568 = vmul.f32 %v3562, %v3101
    %v3569 = vadd.f32 %v3567, %v3568
    %3570 = vmatprep.subr.mxu0 %v635
    %3571 = vmatpush1.msra.mxu0 %v634
    %3572 = vmatprep.subr.mxu0 %v638
    %3573 = vmatpush1.msra.mxu0 %v637
    %3574 = vmatprep.subr.mxu0 %v641
    %3575 = vmatpush1.msra.mxu0 %v640
    %3576 = vmatprep.subr.mxu0 %v644
    %3577 = vmatpush1.msra.mxu0 %v643
    %3578 = vmatprep.subr.mxu0 %v647
    %3579 = vmatpush1.msra.mxu0 %v646
    %3580 = vmatprep.subr.mxu0 %v650
    %3581 = vmatpush1.msra.mxu0 %v649
    %3582 = vmatprep.subr.mxu0 %v653
    %3583 = vmatpush1.msra.mxu0 %v652
    %3584 = vmatprep.subr.mxu0 %v656
    %3585 = vmatpush1.msra.mxu0 %v655
    %3586 = vmatprep.subr.mxu0 %v659
    %3587 = vmatpush1.msra.mxu0 %v658
    %3588 = vmatprep.subr.mxu0 %v662
    %3589 = vmatpush1.msra.mxu0 %v661
    %3590 = vmatprep.subr.mxu0 %v665
    %3591 = vmatpush1.msra.mxu0 %v664
    %3592 = vmatprep.subr.mxu0 %v668
    %3593 = vmatpush1.msra.mxu0 %v667
    %3594 = vmatprep.subr.mxu0 %v671
    %3595 = vmatpush1.msra.mxu0 %v670
    %3596 = vmatprep.subr.mxu0 %v674
    %3597 = vmatpush1.msra.mxu0 %v673
    %3598 = vmatprep.subr.mxu0 %v677
    %3599 = vmatpush1.msra.mxu0 %v676
    %3600 = vmatprep.subr.mxu0 %v680
    %3601 = vmatpush1.msra.mxu0 %v679
    %3602 = vmatprep.subr.mxu0 0.0
    %3603 = vmatpush1.msra.mxu0 0.0
    %3604 = vmatprep.subr.mxu0 0.0
    %3605 = vmatpush1.msra.mxu0 0.0
    %3606 = vmatprep.subr.mxu0 0.0
    %3607 = vmatpush1.msra.mxu0 0.0
    %3608 = vmatprep.subr.mxu0 0.0
    %3609 = vmatpush1.msra.mxu0 0.0
    %3610 = vmatprep.subr.mxu0 0.0
    %3611 = vmatpush1.msra.mxu0 0.0
    %3612 = vmatprep.subr.mxu0 0.0
    %3613 = vmatpush1.msra.mxu0 0.0
    %3614 = vmatprep.subr.mxu0 0.0
    %3615 = vmatpush1.msra.mxu0 0.0
    %3616 = vmatprep.subr.mxu0 0.0
    %3617 = vmatpush1.msra.mxu0 0.0
    %3618 = vmatprep.subr.mxu0 0.0
    %3619 = vmatpush1.msra.mxu0 0.0
    %3620 = vmatprep.subr.mxu0 0.0
    %3621 = vmatpush1.msra.mxu0 0.0
    %3622 = vmatprep.subr.mxu0 0.0
    %3623 = vmatpush1.msra.mxu0 0.0
    %3624 = vmatprep.subr.mxu0 0.0
    %3625 = vmatpush1.msra.mxu0 0.0
    %3626 = vmatprep.subr.mxu0 0.0
    %3627 = vmatpush1.msra.mxu0 0.0
    %3628 = vmatprep.subr.mxu0 0.0
    %3629 = vmatpush1.msra.mxu0 0.0
    %3630 = vmatprep.subr.mxu0 0.0
    %3631 = vmatpush1.msra.mxu0 0.0
    %3632 = vmatprep.subr.mxu0 0.0
    %3633 = vmatpush1.msra.mxu0 0.0
    %3634 = vmatprep.mubr.f32.mxu0 0.0
    %3635 = vmatmul.mubr.f32.gmra.mrb[0].mxu0 %v3569
    %v3636 = vpop.f32.mrb[0].mxu0
    %v3637 = vadd.f32 %v686, %v3636
    %v3638 = vpop.f32.mrb[0].mxu0
    %v3639 = vadd.f32 %v690, %v3638
    %3640 = vdwg.mxu0
    %3641 = vmatprep.subr.mxu0 0.0
    %3642 = vmatpush1.msra.mxu0 %v636
    %3643 = vmatprep.subr.mxu0 0.0
    %3644 = vmatpush1.msra.mxu0 %v639
    %3645 = vmatprep.subr.mxu0 0.0
    %3646 = vmatpush1.msra.mxu0 %v642
    %3647 = vmatprep.subr.mxu0 0.0
    %3648 = vmatpush1.msra.mxu0 %v645
    %3649 = vmatprep.subr.mxu0 0.0
    %3650 = vmatpush1.msra.mxu0 %v648
    %3651 = vmatprep.subr.mxu0 0.0
    %3652 = vmatpush1.msra.mxu0 %v651
    %3653 = vmatprep.subr.mxu0 0.0
    %3654 = vmatpush1.msra.mxu0 %v654
    %3655 = vmatprep.subr.mxu0 0.0
    %3656 = vmatpush1.msra.mxu0 %v657
    %3657 = vmatprep.subr.mxu0 0.0
    %3658 = vmatpush1.msra.mxu0 %v660
    %3659 = vmatprep.subr.mxu0 0.0
    %3660 = vmatpush1.msra.mxu0 %v663
    %3661 = vmatprep.subr.mxu0 0.0
    %3662 = vmatpush1.msra.mxu0 %v666
    %3663 = vmatprep.subr.mxu0 0.0
    %3664 = vmatpush1.msra.mxu0 %v669
    %3665 = vmatprep.subr.mxu0 0.0
    %3666 = vmatpush1.msra.mxu0 %v672
    %3667 = vmatprep.subr.mxu0 0.0
    %3668 = vmatpush1.msra.mxu0 %v675
    %3669 = vmatprep.subr.mxu0 0.0
    %3670 = vmatpush1.msra.mxu0 %v678
    %3671 = vmatprep.subr.mxu0 0.0
    %3672 = vmatpush1.msra.mxu0 %v681
    %3673 = vmatprep.subr.mxu0 0.0
    %3674 = vmatpush1.msra.mxu0 0.0
    %3675 = vmatprep.subr.mxu0 0.0
    %3676 = vmatpush1.msra.mxu0 0.0
    %3677 = vmatprep.subr.mxu0 0.0
    %3678 = vmatpush1.msra.mxu0 0.0
    %3679 = vmatprep.subr.mxu0 0.0
    %3680 = vmatpush1.msra.mxu0 0.0
    %3681 = vmatprep.subr.mxu0 0.0
    %3682 = vmatpush1.msra.mxu0 0.0
    %3683 = vmatprep.subr.mxu0 0.0
    %3684 = vmatpush1.msra.mxu0 0.0
    %3685 = vmatprep.subr.mxu0 0.0
    %3686 = vmatpush1.msra.mxu0 0.0
    %3687 = vmatprep.subr.mxu0 0.0
    %3688 = vmatpush1.msra.mxu0 0.0
    %3689 = vmatprep.subr.mxu0 0.0
    %3690 = vmatpush1.msra.mxu0 0.0
    %3691 = vmatprep.subr.mxu0 0.0
    %3692 = vmatpush1.msra.mxu0 0.0
    %3693 = vmatprep.subr.mxu0 0.0
    %3694 = vmatpush1.msra.mxu0 0.0
    %3695 = vmatprep.subr.mxu0 0.0
    %3696 = vmatpush1.msra.mxu0 0.0
    %3697 = vmatprep.subr.mxu0 0.0
    %3698 = vmatpush1.msra.mxu0 0.0
    %3699 = vmatprep.subr.mxu0 0.0
    %3700 = vmatpush1.msra.mxu0 0.0
    %3701 = vmatprep.subr.mxu0 0.0
    %3702 = vmatpush1.msra.mxu0 0.0
    %3703 = vmatprep.subr.mxu0 0.0
    %3704 = vmatpush1.msra.mxu0 0.0
    %3705 = vmatprep.mubr.f32.mxu0 0.0
    %3706 = vmatmul.mubr.f32.gmra.mrb[0].mxu0 %v3569
    %v3707 = vpop.f32.mrb[0].mxu0
    %v3708 = vadd.f32 %v694, %v3707
    %v3709 = vpop.f32.mrb[0].mxu0
    %3710 = vdwg.mxu0
    %3711 = vmatprep.subr.mxu0 %v840
    %3712 = vmatpush1.msra.mxu0 %v839
    %3713 = vmatprep.subr.mxu0 %v843
    %3714 = vmatpush1.msra.mxu0 %v842
    %3715 = vmatprep.subr.mxu0 %v846
    %3716 = vmatpush1.msra.mxu0 %v845
    %3717 = vmatprep.subr.mxu0 %v849
    %3718 = vmatpush1.msra.mxu0 %v848
    %3719 = vmatprep.subr.mxu0 %v852
    %3720 = vmatpush1.msra.mxu0 %v851
    %3721 = vmatprep.subr.mxu0 %v855
    %3722 = vmatpush1.msra.mxu0 %v854
    %3723 = vmatprep.subr.mxu0 %v858
    %3724 = vmatpush1.msra.mxu0 %v857
    %3725 = vmatprep.subr.mxu0 %v861
    %3726 = vmatpush1.msra.mxu0 %v860
    %3727 = vmatprep.subr.mxu0 %v864
    %3728 = vmatpush1.msra.mxu0 %v863
    %3729 = vmatprep.subr.mxu0 %v867
    %3730 = vmatpush1.msra.mxu0 %v866
    %3731 = vmatprep.subr.mxu0 %v870
    %3732 = vmatpush1.msra.mxu0 %v869
    %3733 = vmatprep.subr.mxu0 %v873
    %3734 = vmatpush1.msra.mxu0 %v872
    %3735 = vmatprep.subr.mxu0 %v876
    %3736 = vmatpush1.msra.mxu0 %v875
    %3737 = vmatprep.subr.mxu0 %v879
    %3738 = vmatpush1.msra.mxu0 %v878
    %3739 = vmatprep.subr.mxu0 %v882
    %3740 = vmatpush1.msra.mxu0 %v881
    %3741 = vmatprep.subr.mxu0 %v885
    %3742 = vmatpush1.msra.mxu0 %v884
    %3743 = vmatprep.subr.mxu0 0.0
    %3744 = vmatpush1.msra.mxu0 0.0
    %3745 = vmatprep.subr.mxu0 0.0
    %3746 = vmatpush1.msra.mxu0 0.0
    %3747 = vmatprep.subr.mxu0 0.0
    %3748 = vmatpush1.msra.mxu0 0.0
    %3749 = vmatprep.subr.mxu0 0.0
    %3750 = vmatpush1.msra.mxu0 0.0
    %3751 = vmatprep.subr.mxu0 0.0
    %3752 = vmatpush1.msra.mxu0 0.0
    %3753 = vmatprep.subr.mxu0 0.0
    %3754 = vmatpush1.msra.mxu0 0.0
    %3755 = vmatprep.subr.mxu0 0.0
    %3756 = vmatpush1.msra.mxu0 0.0
    %3757 = vmatprep.subr.mxu0 0.0
    %3758 = vmatpush1.msra.mxu0 0.0
    %3759 = vmatprep.subr.mxu0 0.0
    %3760 = vmatpush1.msra.mxu0 0.0
    %3761 = vmatprep.subr.mxu0 0.0
    %3762 = vmatpush1.msra.mxu0 0.0
    %3763 = vmatprep.subr.mxu0 0.0
    %3764 = vmatpush1.msra.mxu0 0.0
    %3765 = vmatprep.subr.mxu0 0.0
    %3766 = vmatpush1.msra.mxu0 0.0
    %3767 = vmatprep.subr.mxu0 0.0
    %3768 = vmatpush1.msra.mxu0 0.0
    %3769 = vmatprep.subr.mxu0 0.0
    %3770 = vmatpush1.msra.mxu0 0.0
    %3771 = vmatprep.subr.mxu0 0.0
    %3772 = vmatpush1.msra.mxu0 0.0
    %3773 = vmatprep.subr.mxu0 0.0
    %3774 = vmatpush1.msra.mxu0 0.0
    %3775 = vmatprep.mubr.f32.mxu0 0.0
    %3776 = vmatmul.mubr.f32.gmra.mrb[0].mxu0 %v3404
    %v3777 = vpop.f32.mrb[0].mxu0
    %v3778 = vadd.f32 %v891, %v3777
    %v3779 = vpop.f32.mrb[0].mxu0
    %v3780 = vadd.f32 %v895, %v3779
    %3781 = vdwg.mxu0
    %3782 = vmatprep.subr.mxu0 0.0
    %3783 = vmatpush1.msra.mxu0 %v841
    %3784 = vmatprep.subr.mxu0 0.0
    %3785 = vmatpush1.msra.mxu0 %v844
    %3786 = vmatprep.subr.mxu0 0.0
    %3787 = vmatpush1.msra.mxu0 %v847
    %3788 = vmatprep.subr.mxu0 0.0
    %3789 = vmatpush1.msra.mxu0 %v850
    %3790 = vmatprep.subr.mxu0 0.0
    %3791 = vmatpush1.msra.mxu0 %v853
    %3792 = vmatprep.subr.mxu0 0.0
    %3793 = vmatpush1.msra.mxu0 %v856
    %3794 = vmatprep.subr.mxu0 0.0
    %3795 = vmatpush1.msra.mxu0 %v859
    %3796 = vmatprep.subr.mxu0 0.0
    %3797 = vmatpush1.msra.mxu0 %v862
    %3798 = vmatprep.subr.mxu0 0.0
    %3799 = vmatpush1.msra.mxu0 %v865
    %3800 = vmatprep.subr.mxu0 0.0
    %3801 = vmatpush1.msra.mxu0 %v868
    %3802 = vmatprep.subr.mxu0 0.0
    %3803 = vmatpush1.msra.mxu0 %v871
    %3804 = vmatprep.subr.mxu0 0.0
    %3805 = vmatpush1.msra.mxu0 %v874
    %3806 = vmatprep.subr.mxu0 0.0
    %3807 = vmatpush1.msra.mxu0 %v877
    %3808 = vmatprep.subr.mxu0 0.0
    %3809 = vmatpush1.msra.mxu0 %v880
    %3810 = vmatprep.subr.mxu0 0.0
    %3811 = vmatpush1.msra.mxu0 %v883
    %3812 = vmatprep.subr.mxu0 0.0
    %3813 = vmatpush1.msra.mxu0 %v886
    %3814 = vmatprep.subr.mxu0 0.0
    %3815 = vmatpush1.msra.mxu0 0.0
    %3816 = vmatprep.subr.mxu0 0.0
    %3817 = vmatpush1.msra.mxu0 0.0
    %3818 = vmatprep.subr.mxu0 0.0
    %3819 = vmatpush1.msra.mxu0 0.0
    %3820 = vmatprep.subr.mxu0 0.0
    %3821 = vmatpush1.msra.mxu0 0.0
    %3822 = vmatprep.subr.mxu0 0.0
    %3823 = vmatpush1.msra.mxu0 0.0
    %3824 = vmatprep.subr.mxu0 0.0
    %3825 = vmatpush1.msra.mxu0 0.0
    %3826 = vmatprep.subr.mxu0 0.0
    %3827 = vmatpush1.msra.mxu0 0.0
    %3828 = vmatprep.subr.mxu0 0.0
    %3829 = vmatpush1.msra.mxu0 0.0
    %3830 = vmatprep.subr.mxu0 0.0
    %3831 = vmatpush1.msra.mxu0 0.0
    %3832 = vmatprep.subr.mxu0 0.0
    %3833 = vmatpush1.msra.mxu0 0.0
    %3834 = vmatprep.subr.mxu0 0.0
    %3835 = vmatpush1.msra.mxu0 0.0
    %3836 = vmatprep.subr.mxu0 0.0
    %3837 = vmatpush1.msra.mxu0 0.0
    %3838 = vmatprep.subr.mxu0 0.0
    %3839 = vmatpush1.msra.mxu0 0.0
    %3840 = vmatprep.subr.mxu0 0.0
    %3841 = vmatpush1.msra.mxu0 0.0
    %3842 = vmatprep.subr.mxu0 0.0
    %3843 = vmatpush1.msra.mxu0 0.0
    %3844 = vmatprep.subr.mxu0 0.0
    %3845 = vmatpush1.msra.mxu0 0.0
    %3846 = vmatprep.mubr.f32.mxu0 0.0
    %3847 = vmatmul.mubr.f32.gmra.mrb[0].mxu0 %v3404
    %v3848 = vpop.f32.mrb[0].mxu0
    %v3849 = vadd.f32 %v899, %v3848
    %v3850 = vpop.f32.mrb[0].mxu0
    %3851 = vdwg.mxu0
    %v3852 = vadd.f32 %v3637, %v3778
    %v3853 = vxor.u32 %v3852, 2147483648
    %v3854 = vmul.f32 %v3853, 1.442695
    %v3855 = vpow.pop %v3854
    %v3856 = vadd.f32 %v3855, 1.0
    %v3857 = vrcp.pop %v3856
    %v3858 = vmul.f32 1.0, %v3857
    %v3859 = vadd.f32 %v3639, %v3780
    %v3860 = vxor.u32 %v3859, 2147483648
    %v3861 = vmul.f32 %v3860, 1.442695
    %v3862 = vpow.pop %v3861
    %v3863 = vadd.f32 %v3862, 1.0
    %v3864 = vrcp.pop %v3863
    %v3865 = vmul.f32 1.0, %v3864
    %v3866 = vmul.f32 %v3858, %v3849
    %v3867 = vadd.f32 %v3708, %v3866
    %v3868 = vtanh.pop %v3867
    %v3869 = vsub.f32 1.0, %v3865
    %v3870 = vmul.f32 %v3869, %v3868
    %v3871 = vmul.f32 %v3865, %v3404
    %v3872 = vadd.f32 %v3870, %v3871
    %v3873 = vld [vmem:[#allocation2 + $0xa8] sm:$0xff]
    %v3874 = vld [vmem:[#allocation2 + $0xb0] sm:$0xff]
    %v3875 = vld [vmem:[#allocation2 + $0xb8] sm:$0xff]
    %3876 = vmatprep.subr.mxu0 %v409
    %3877 = vmatpush1.msra.mxu0 %v408
    %3878 = vmatprep.subr.mxu0 %v412
    %3879 = vmatpush1.msra.mxu0 %v411
    %3880 = vmatprep.subr.mxu0 %v415
    %3881 = vmatpush1.msra.mxu0 %v414
    %3882 = vmatprep.subr.mxu0 %v418
    %3883 = vmatpush1.msra.mxu0 %v417
    %3884 = vmatprep.subr.mxu0 %v421
    %3885 = vmatpush1.msra.mxu0 %v420
    %3886 = vmatprep.subr.mxu0 %v424
    %3887 = vmatpush1.msra.mxu0 %v423
    %3888 = vmatprep.subr.mxu0 %v427
    %3889 = vmatpush1.msra.mxu0 %v426
    %3890 = vmatprep.subr.mxu0 %v430
    %3891 = vmatpush1.msra.mxu0 %v429
    %3892 = vmatprep.subr.mxu0 %v433
    %3893 = vmatpush1.msra.mxu0 %v432
    %3894 = vmatprep.subr.mxu0 %v436
    %3895 = vmatpush1.msra.mxu0 %v435
    %3896 = vmatprep.subr.mxu0 %v439
    %3897 = vmatpush1.msra.mxu0 %v438
    %3898 = vmatprep.subr.mxu0 %v442
    %3899 = vmatpush1.msra.mxu0 %v441
    %3900 = vmatprep.subr.mxu0 %v445
    %3901 = vmatpush1.msra.mxu0 %v444
    %3902 = vmatprep.subr.mxu0 %v448
    %3903 = vmatpush1.msra.mxu0 %v447
    %3904 = vmatprep.subr.mxu0 %v451
    %3905 = vmatpush1.msra.mxu0 %v450
    %3906 = vmatprep.subr.mxu0 %v454
    %3907 = vmatpush1.msra.mxu0 %v453
    %3908 = vmatprep.subr.mxu0 0.0
    %3909 = vmatpush1.msra.mxu0 0.0
    %3910 = vmatprep.subr.mxu0 0.0
    %3911 = vmatpush1.msra.mxu0 0.0
    %3912 = vmatprep.subr.mxu0 0.0
    %3913 = vmatpush1.msra.mxu0 0.0
    %3914 = vmatprep.subr.mxu0 0.0
    %3915 = vmatpush1.msra.mxu0 0.0
    %3916 = vmatprep.subr.mxu0 0.0
    %3917 = vmatpush1.msra.mxu0 0.0
    %3918 = vmatprep.subr.mxu0 0.0
    %3919 = vmatpush1.msra.mxu0 0.0
    %3920 = vmatprep.subr.mxu0 0.0
    %3921 = vmatpush1.msra.mxu0 0.0
    %3922 = vmatprep.subr.mxu0 0.0
    %3923 = vmatpush1.msra.mxu0 0.0
    %3924 = vmatprep.subr.mxu0 0.0
    %3925 = vmatpush1.msra.mxu0 0.0
    %3926 = vmatprep.subr.mxu0 0.0
    %3927 = vmatpush1.msra.mxu0 0.0
    %3928 = vmatprep.subr.mxu0 0.0
    %3929 = vmatpush1.msra.mxu0 0.0
    %3930 = vmatprep.subr.mxu0 0.0
    %3931 = vmatpush1.msra.mxu0 0.0
    %3932 = vmatprep.subr.mxu0 0.0
    %3933 = vmatpush1.msra.mxu0 0.0
    %3934 = vmatprep.subr.mxu0 0.0
    %3935 = vmatpush1.msra.mxu0 0.0
    %3936 = vmatprep.subr.mxu0 0.0
    %3937 = vmatpush1.msra.mxu0 0.0
    %3938 = vmatprep.subr.mxu0 0.0
    %3939 = vmatpush1.msra.mxu0 0.0
    %3940 = vmatprep.mubr.f32.mxu0 0.0
    %3941 = vmatmul.mubr.f32.gmra.mrb[0].mxu0 %v3569
    %v3942 = vpop.f32.mrb[0].mxu0
    %v3943 = vadd.f32 %v460, %v3942
    %v3944 = vpop.f32.mrb[0].mxu0
    %v3945 = vadd.f32 %v464, %v3944
    %3946 = vdwg.mxu0
    %3947 = vmatprep.subr.mxu0 0.0
    %3948 = vmatpush1.msra.mxu0 %v410
    %3949 = vmatprep.subr.mxu0 0.0
    %3950 = vmatpush1.msra.mxu0 %v413
    %3951 = vmatprep.subr.mxu0 0.0
    %3952 = vmatpush1.msra.mxu0 %v416
    %3953 = vmatprep.subr.mxu0 0.0
    %3954 = vmatpush1.msra.mxu0 %v419
    %3955 = vmatprep.subr.mxu0 0.0
    %3956 = vmatpush1.msra.mxu0 %v422
    %3957 = vmatprep.subr.mxu0 0.0
    %3958 = vmatpush1.msra.mxu0 %v425
    %3959 = vmatprep.subr.mxu0 0.0
    %3960 = vmatpush1.msra.mxu0 %v428
    %3961 = vmatprep.subr.mxu0 0.0
    %3962 = vmatpush1.msra.mxu0 %v431
    %3963 = vmatprep.subr.mxu0 0.0
    %3964 = vmatpush1.msra.mxu0 %v434
    %3965 = vmatprep.subr.mxu0 0.0
    %3966 = vmatpush1.msra.mxu0 %v437
    %3967 = vmatprep.subr.mxu0 0.0
    %3968 = vmatpush1.msra.mxu0 %v440
    %3969 = vmatprep.subr.mxu0 0.0
    %3970 = vmatpush1.msra.mxu0 %v443
    %3971 = vmatprep.subr.mxu0 0.0
    %3972 = vmatpush1.msra.mxu0 %v446
    %3973 = vmatprep.subr.mxu0 0.0
    %3974 = vmatpush1.msra.mxu0 %v449
    %3975 = vmatprep.subr.mxu0 0.0
    %3976 = vmatpush1.msra.mxu0 %v452
    %3977 = vmatprep.subr.mxu0 0.0
    %3978 = vmatpush1.msra.mxu0 %v455
    %3979 = vmatprep.subr.mxu0 0.0
    %3980 = vmatpush1.msra.mxu0 0.0
    %3981 = vmatprep.subr.mxu0 0.0
    %3982 = vmatpush1.msra.mxu0 0.0
    %3983 = vmatprep.subr.mxu0 0.0
    %3984 = vmatpush1.msra.mxu0 0.0
    %3985 = vmatprep.subr.mxu0 0.0
    %3986 = vmatpush1.msra.mxu0 0.0
    %3987 = vmatprep.subr.mxu0 0.0
    %3988 = vmatpush1.msra.mxu0 0.0
    %3989 = vmatprep.subr.mxu0 0.0
    %3990 = vmatpush1.msra.mxu0 0.0
    %3991 = vmatprep.subr.mxu0 0.0
    %3992 = vmatpush1.msra.mxu0 0.0
    %3993 = vmatprep.subr.mxu0 0.0
    %3994 = vmatpush1.msra.mxu0 0.0
    %3995 = vmatprep.subr.mxu0 0.0
    %3996 = vmatpush1.msra.mxu0 0.0
    %3997 = vmatprep.subr.mxu0 0.0
    %3998 = vmatpush1.msra.mxu0 0.0
    %3999 = vmatprep.subr.mxu0 0.0
    %4000 = vmatpush1.msra.mxu0 0.0
    %4001 = vmatprep.subr.mxu0 0.0
    %4002 = vmatpush1.msra.mxu0 0.0
    %4003 = vmatprep.subr.mxu0 0.0
    %4004 = vmatpush1.msra.mxu0 0.0
    %4005 = vmatprep.subr.mxu0 0.0
    %4006 = vmatpush1.msra.mxu0 0.0
    %4007 = vmatprep.subr.mxu0 0.0
    %4008 = vmatpush1.msra.mxu0 0.0
    %4009 = vmatprep.subr.mxu0 0.0
    %4010 = vmatpush1.msra.mxu0 0.0
    %4011 = vmatprep.mubr.f32.mxu0 0.0
    %4012 = vmatmul.mubr.f32.gmra.mrb[0].mxu0 %v3569
    %v4013 = vpop.f32.mrb[0].mxu0
    %v4014 = vadd.f32 %v468, %v4013
    %v4015 = vpop.f32.mrb[0].mxu0
    %4016 = vdwg.mxu0
    %v4017 = vadd.f32 %v3873, %v3943
    %v4018 = vxor.u32 %v4017, 2147483648
    %v4019 = vmul.f32 %v4018, 1.442695
    %v4020 = vpow.pop %v4019
    %v4021 = vadd.f32 %v4020, 1.0
    %v4022 = vrcp.pop %v4021
    %v4023 = vmul.f32 1.0, %v4022
    %v4024 = vadd.f32 %v3874, %v3945
    %v4025 = vxor.u32 %v4024, 2147483648
    %v4026 = vmul.f32 %v4025, 1.442695
    %v4027 = vpow.pop %v4026
    %v4028 = vadd.f32 %v4027, 1.0
    %v4029 = vrcp.pop %v4028
    %v4030 = vmul.f32 1.0, %v4029
    %v4031 = vmul.f32 %v4023, %v4014
    %v4032 = vadd.f32 %v3875, %v4031
    %v4033 = vtanh.pop %v4032
    %v4034 = vsub.f32 1.0, %v4030
    %v4035 = vmul.f32 %v4034, %v4033
    %v4036 = vmul.f32 %v4030, %v3569
    %v4037 = vadd.f32 %v4035, %v4036
    %4038 = vmatprep.subr.mxu0 %v635
    %4039 = vmatpush1.msra.mxu0 %v634
    %4040 = vmatprep.subr.mxu0 %v638
    %4041 = vmatpush1.msra.mxu0 %v637
    %4042 = vmatprep.subr.mxu0 %v641
    %4043 = vmatpush1.msra.mxu0 %v640
    %4044 = vmatprep.subr.mxu0 %v644
    %4045 = vmatpush1.msra.mxu0 %v643
    %4046 = vmatprep.subr.mxu0 %v647
    %4047 = vmatpush1.msra.mxu0 %v646
    %4048 = vmatprep.subr.mxu0 %v650
    %4049 = vmatpush1.msra.mxu0 %v649
    %4050 = vmatprep.subr.mxu0 %v653
    %4051 = vmatpush1.msra.mxu0 %v652
    %4052 = vmatprep.subr.mxu0 %v656
    %4053 = vmatpush1.msra.mxu0 %v655
    %4054 = vmatprep.subr.mxu0 %v659
    %4055 = vmatpush1.msra.mxu0 %v658
    %4056 = vmatprep.subr.mxu0 %v662
    %4057 = vmatpush1.msra.mxu0 %v661
    %4058 = vmatprep.subr.mxu0 %v665
    %4059 = vmatpush1.msra.mxu0 %v664
    %4060 = vmatprep.subr.mxu0 %v668
    %4061 = vmatpush1.msra.mxu0 %v667
    %4062 = vmatprep.subr.mxu0 %v671
    %4063 = vmatpush1.msra.mxu0 %v670
    %4064 = vmatprep.subr.mxu0 %v674
    %4065 = vmatpush1.msra.mxu0 %v673
    %4066 = vmatprep.subr.mxu0 %v677
    %4067 = vmatpush1.msra.mxu0 %v676
    %4068 = vmatprep.subr.mxu0 %v680
    %4069 = vmatpush1.msra.mxu0 %v679
    %4070 = vmatprep.subr.mxu0 0.0
    %4071 = vmatpush1.msra.mxu0 0.0
    %4072 = vmatprep.subr.mxu0 0.0
    %4073 = vmatpush1.msra.mxu0 0.0
    %4074 = vmatprep.subr.mxu0 0.0
    %4075 = vmatpush1.msra.mxu0 0.0
    %4076 = vmatprep.subr.mxu0 0.0
    %4077 = vmatpush1.msra.mxu0 0.0
    %4078 = vmatprep.subr.mxu0 0.0
    %4079 = vmatpush1.msra.mxu0 0.0
    %4080 = vmatprep.subr.mxu0 0.0
    %4081 = vmatpush1.msra.mxu0 0.0
    %4082 = vmatprep.subr.mxu0 0.0
    %4083 = vmatpush1.msra.mxu0 0.0
    %4084 = vmatprep.subr.mxu0 0.0
    %4085 = vmatpush1.msra.mxu0 0.0
    %4086 = vmatprep.subr.mxu0 0.0
    %4087 = vmatpush1.msra.mxu0 0.0
    %4088 = vmatprep.subr.mxu0 0.0
    %4089 = vmatpush1.msra.mxu0 0.0
    %4090 = vmatprep.subr.mxu0 0.0
    %4091 = vmatpush1.msra.mxu0 0.0
    %4092 = vmatprep.subr.mxu0 0.0
    %4093 = vmatpush1.msra.mxu0 0.0
    %4094 = vmatprep.subr.mxu0 0.0
    %4095 = vmatpush1.msra.mxu0 0.0
    %4096 = vmatprep.subr.mxu0 0.0
    %4097 = vmatpush1.msra.mxu0 0.0
    %4098 = vmatprep.subr.mxu0 0.0
    %4099 = vmatpush1.msra.mxu0 0.0
    %4100 = vmatprep.subr.mxu0 0.0
    %4101 = vmatpush1.msra.mxu0 0.0
    %4102 = vmatprep.mubr.f32.mxu0 0.0
    %4103 = vmatmul.mubr.f32.gmra.mrb[0].mxu0 %v4037
    %v4104 = vpop.f32.mrb[0].mxu0
    %v4105 = vadd.f32 %v686, %v4104
    %v4106 = vpop.f32.mrb[0].mxu0
    %v4107 = vadd.f32 %v690, %v4106
    %4108 = vdwg.mxu0
    %4109 = vmatprep.subr.mxu0 0.0
    %4110 = vmatpush1.msra.mxu0 %v636
    %4111 = vmatprep.subr.mxu0 0.0
    %4112 = vmatpush1.msra.mxu0 %v639
    %4113 = vmatprep.subr.mxu0 0.0
    %4114 = vmatpush1.msra.mxu0 %v642
    %4115 = vmatprep.subr.mxu0 0.0
    %4116 = vmatpush1.msra.mxu0 %v645
    %4117 = vmatprep.subr.mxu0 0.0
    %4118 = vmatpush1.msra.mxu0 %v648
    %4119 = vmatprep.subr.mxu0 0.0
    %4120 = vmatpush1.msra.mxu0 %v651
    %4121 = vmatprep.subr.mxu0 0.0
    %4122 = vmatpush1.msra.mxu0 %v654
    %4123 = vmatprep.subr.mxu0 0.0
    %4124 = vmatpush1.msra.mxu0 %v657
    %4125 = vmatprep.subr.mxu0 0.0
    %4126 = vmatpush1.msra.mxu0 %v660
    %4127 = vmatprep.subr.mxu0 0.0
    %4128 = vmatpush1.msra.mxu0 %v663
    %4129 = vmatprep.subr.mxu0 0.0
    %4130 = vmatpush1.msra.mxu0 %v666
    %4131 = vmatprep.subr.mxu0 0.0
    %4132 = vmatpush1.msra.mxu0 %v669
    %4133 = vmatprep.subr.mxu0 0.0
    %4134 = vmatpush1.msra.mxu0 %v672
    %4135 = vmatprep.subr.mxu0 0.0
    %4136 = vmatpush1.msra.mxu0 %v675
    %4137 = vmatprep.subr.mxu0 0.0
    %4138 = vmatpush1.msra.mxu0 %v678
    %4139 = vmatprep.subr.mxu0 0.0
    %4140 = vmatpush1.msra.mxu0 %v681
    %4141 = vmatprep.subr.mxu0 0.0
    %4142 = vmatpush1.msra.mxu0 0.0
    %4143 = vmatprep.subr.mxu0 0.0
    %4144 = vmatpush1.msra.mxu0 0.0
    %4145 = vmatprep.subr.mxu0 0.0
    %4146 = vmatpush1.msra.mxu0 0.0
    %4147 = vmatprep.subr.mxu0 0.0
    %4148 = vmatpush1.msra.mxu0 0.0
    %4149 = vmatprep.subr.mxu0 0.0
    %4150 = vmatpush1.msra.mxu0 0.0
    %4151 = vmatprep.subr.mxu0 0.0
    %4152 = vmatpush1.msra.mxu0 0.0
    %4153 = vmatprep.subr.mxu0 0.0
    %4154 = vmatpush1.msra.mxu0 0.0
    %4155 = vmatprep.subr.mxu0 0.0
    %4156 = vmatpush1.msra.mxu0 0.0
    %4157 = vmatprep.subr.mxu0 0.0
    %4158 = vmatpush1.msra.mxu0 0.0
    %4159 = vmatprep.subr.mxu0 0.0
    %4160 = vmatpush1.msra.mxu0 0.0
    %4161 = vmatprep.subr.mxu0 0.0
    %4162 = vmatpush1.msra.mxu0 0.0
    %4163 = vmatprep.subr.mxu0 0.0
    %4164 = vmatpush1.msra.mxu0 0.0
    %4165 = vmatprep.subr.mxu0 0.0
    %4166 = vmatpush1.msra.mxu0 0.0
    %4167 = vmatprep.subr.mxu0 0.0
    %4168 = vmatpush1.msra.mxu0 0.0
    %4169 = vmatprep.subr.mxu0 0.0
    %4170 = vmatpush1.msra.mxu0 0.0
    %4171 = vmatprep.subr.mxu0 0.0
    %4172 = vmatpush1.msra.mxu0 0.0
    %4173 = vmatprep.mubr.f32.mxu0 0.0
    %4174 = vmatmul.mubr.f32.gmra.mrb[0].mxu0 %v4037
    %v4175 = vpop.f32.mrb[0].mxu0
    %v4176 = vadd.f32 %v694, %v4175
    %v4177 = vpop.f32.mrb[0].mxu0
    %4178 = vdwg.mxu0
    %4179 = vmatprep.subr.mxu0 %v840
    %4180 = vmatpush1.msra.mxu0 %v839
    %4181 = vmatprep.subr.mxu0 %v843
    %4182 = vmatpush1.msra.mxu0 %v842
    %4183 = vmatprep.subr.mxu0 %v846
    %4184 = vmatpush1.msra.mxu0 %v845
    %4185 = vmatprep.subr.mxu0 %v849
    %4186 = vmatpush1.msra.mxu0 %v848
    %4187 = vmatprep.subr.mxu0 %v852
    %4188 = vmatpush1.msra.mxu0 %v851
    %4189 = vmatprep.subr.mxu0 %v855
    %4190 = vmatpush1.msra.mxu0 %v854
    %4191 = vmatprep.subr.mxu0 %v858
    %4192 = vmatpush1.msra.mxu0 %v857
    %4193 = vmatprep.subr.mxu0 %v861
    %4194 = vmatpush1.msra.mxu0 %v860
    %4195 = vmatprep.subr.mxu0 %v864
    %4196 = vmatpush1.msra.mxu0 %v863
    %4197 = vmatprep.subr.mxu0 %v867
    %4198 = vmatpush1.msra.mxu0 %v866
    %4199 = vmatprep.subr.mxu0 %v870
    %4200 = vmatpush1.msra.mxu0 %v869
    %4201 = vmatprep.subr.mxu0 %v873
    %4202 = vmatpush1.msra.mxu0 %v872
    %4203 = vmatprep.subr.mxu0 %v876
    %4204 = vmatpush1.msra.mxu0 %v875
    %4205 = vmatprep.subr.mxu0 %v879
    %4206 = vmatpush1.msra.mxu0 %v878
    %4207 = vmatprep.subr.mxu0 %v882
    %4208 = vmatpush1.msra.mxu0 %v881
    %4209 = vmatprep.subr.mxu0 %v885
    %4210 = vmatpush1.msra.mxu0 %v884
    %4211 = vmatprep.subr.mxu0 0.0
    %4212 = vmatpush1.msra.mxu0 0.0
    %4213 = vmatprep.subr.mxu0 0.0
    %4214 = vmatpush1.msra.mxu0 0.0
    %4215 = vmatprep.subr.mxu0 0.0
    %4216 = vmatpush1.msra.mxu0 0.0
    %4217 = vmatprep.subr.mxu0 0.0
    %4218 = vmatpush1.msra.mxu0 0.0
    %4219 = vmatprep.subr.mxu0 0.0
    %4220 = vmatpush1.msra.mxu0 0.0
    %4221 = vmatprep.subr.mxu0 0.0
    %4222 = vmatpush1.msra.mxu0 0.0
    %4223 = vmatprep.subr.mxu0 0.0
    %4224 = vmatpush1.msra.mxu0 0.0
    %4225 = vmatprep.subr.mxu0 0.0
    %4226 = vmatpush1.msra.mxu0 0.0
    %4227 = vmatprep.subr.mxu0 0.0
    %4228 = vmatpush1.msra.mxu0 0.0
    %4229 = vmatprep.subr.mxu0 0.0
    %4230 = vmatpush1.msra.mxu0 0.0
    %4231 = vmatprep.subr.mxu0 0.0
    %4232 = vmatpush1.msra.mxu0 0.0
    %4233 = vmatprep.subr.mxu0 0.0
    %4234 = vmatpush1.msra.mxu0 0.0
    %4235 = vmatprep.subr.mxu0 0.0
    %4236 = vmatpush1.msra.mxu0 0.0
    %4237 = vmatprep.subr.mxu0 0.0
    %4238 = vmatpush1.msra.mxu0 0.0
    %4239 = vmatprep.subr.mxu0 0.0
    %4240 = vmatpush1.msra.mxu0 0.0
    %4241 = vmatprep.subr.mxu0 0.0
    %4242 = vmatpush1.msra.mxu0 0.0
    %4243 = vmatprep.mubr.f32.mxu0 0.0
    %4244 = vmatmul.mubr.f32.gmra.mrb[0].mxu0 %v3872
    %v4245 = vpop.f32.mrb[0].mxu0
    %v4246 = vadd.f32 %v891, %v4245
    %v4247 = vpop.f32.mrb[0].mxu0
    %v4248 = vadd.f32 %v895, %v4247
    %4249 = vdwg.mxu0
    %4250 = vmatprep.subr.mxu0 0.0
    %4251 = vmatpush1.msra.mxu0 %v841
    %4252 = vmatprep.subr.mxu0 0.0
    %4253 = vmatpush1.msra.mxu0 %v844
    %4254 = vmatprep.subr.mxu0 0.0
    %4255 = vmatpush1.msra.mxu0 %v847
    %4256 = vmatprep.subr.mxu0 0.0
    %4257 = vmatpush1.msra.mxu0 %v850
    %4258 = vmatprep.subr.mxu0 0.0
    %4259 = vmatpush1.msra.mxu0 %v853
    %4260 = vmatprep.subr.mxu0 0.0
    %4261 = vmatpush1.msra.mxu0 %v856
    %4262 = vmatprep.subr.mxu0 0.0
    %4263 = vmatpush1.msra.mxu0 %v859
    %4264 = vmatprep.subr.mxu0 0.0
    %4265 = vmatpush1.msra.mxu0 %v862
    %4266 = vmatprep.subr.mxu0 0.0
    %4267 = vmatpush1.msra.mxu0 %v865
    %4268 = vmatprep.subr.mxu0 0.0
    %4269 = vmatpush1.msra.mxu0 %v868
    %4270 = vmatprep.subr.mxu0 0.0
    %4271 = vmatpush1.msra.mxu0 %v871
    %4272 = vmatprep.subr.mxu0 0.0
    %4273 = vmatpush1.msra.mxu0 %v874
    %4274 = vmatprep.subr.mxu0 0.0
    %4275 = vmatpush1.msra.mxu0 %v877
    %4276 = vmatprep.subr.mxu0 0.0
    %4277 = vmatpush1.msra.mxu0 %v880
    %4278 = vmatprep.subr.mxu0 0.0
    %4279 = vmatpush1.msra.mxu0 %v883
    %4280 = vmatprep.subr.mxu0 0.0
    %4281 = vmatpush1.msra.mxu0 %v886
    %4282 = vmatprep.subr.mxu0 0.0
    %4283 = vmatpush1.msra.mxu0 0.0
    %4284 = vmatprep.subr.mxu0 0.0
    %4285 = vmatpush1.msra.mxu0 0.0
    %4286 = vmatprep.subr.mxu0 0.0
    %4287 = vmatpush1.msra.mxu0 0.0
    %4288 = vmatprep.subr.mxu0 0.0
    %4289 = vmatpush1.msra.mxu0 0.0
    %4290 = vmatprep.subr.mxu0 0.0
    %4291 = vmatpush1.msra.mxu0 0.0
    %4292 = vmatprep.subr.mxu0 0.0
    %4293 = vmatpush1.msra.mxu0 0.0
    %4294 = vmatprep.subr.mxu0 0.0
    %4295 = vmatpush1.msra.mxu0 0.0
    %4296 = vmatprep.subr.mxu0 0.0
    %4297 = vmatpush1.msra.mxu0 0.0
    %4298 = vmatprep.subr.mxu0 0.0
    %4299 = vmatpush1.msra.mxu0 0.0
    %4300 = vmatprep.subr.mxu0 0.0
    %4301 = vmatpush1.msra.mxu0 0.0
    %4302 = vmatprep.subr.mxu0 0.0
    %4303 = vmatpush1.msra.mxu0 0.0
    %4304 = vmatprep.subr.mxu0 0.0
    %4305 = vmatpush1.msra.mxu0 0.0
    %4306 = vmatprep.subr.mxu0 0.0
    %4307 = vmatpush1.msra.mxu0 0.0
    %4308 = vmatprep.subr.mxu0 0.0
    %4309 = vmatpush1.msra.mxu0 0.0
    %4310 = vmatprep.subr.mxu0 0.0
    %4311 = vmatpush1.msra.mxu0 0.0
    %4312 = vmatprep.subr.mxu0 0.0
    %4313 = vmatpush1.msra.mxu0 0.0
    %4314 = vmatprep.mubr.f32.mxu0 0.0
    %4315 = vmatmul.mubr.f32.gmra.mrb[0].mxu0 %v3872
    %v4316 = vpop.f32.mrb[0].mxu0
    %v4317 = vadd.f32 %v899, %v4316
    %v4318 = vpop.f32.mrb[0].mxu0
    %4319 = vdwg.mxu0
    %v4320 = vadd.f32 %v4105, %v4246
    %v4321 = vxor.u32 %v4320, 2147483648
    %v4322 = vmul.f32 %v4321, 1.442695
    %v4323 = vpow.pop %v4322
    %v4324 = vadd.f32 %v4323, 1.0
    %v4325 = vrcp.pop %v4324
    %v4326 = vmul.f32 1.0, %v4325
    %v4327 = vadd.f32 %v4107, %v4248
    %v4328 = vxor.u32 %v4327, 2147483648
    %v4329 = vmul.f32 %v4328, 1.442695
    %v4330 = vpow.pop %v4329
    %v4331 = vadd.f32 %v4330, 1.0
    %v4332 = vrcp.pop %v4331
    %v4333 = vmul.f32 1.0, %v4332
    %v4334 = vmul.f32 %v4326, %v4317
    %v4335 = vadd.f32 %v4176, %v4334
    %v4336 = vtanh.pop %v4335
    %v4337 = vsub.f32 1.0, %v4333
    %v4338 = vmul.f32 %v4337, %v4336
    %v4339 = vmul.f32 %v4333, %v3872
    %v4340 = vadd.f32 %v4338, %v4339
    %4341 = vst [vmem:[#allocation3] sm:$0xff] %v4037
    %4342 = vst [vmem:[#allocation4] sm:$0xff] %v4340
    %4343 = vst [vmem:[#allocation14] sm:$0xff] %v4037
    %s4344 = scalar_lea.vmem [#allocation14], 8
    %4345 = vst [vmem:[%s4344] sm:$0xff] %v4340
    // Predicated region
    $region62: #{tpu_custom_call.1} parent=1 // pred_check
      _
    $region63: #{tpu_custom_call.1} parent=1 // pred_check_branch
      %4347 = sbr.rel (0) target = $region65
    $region64: #{tpu_custom_call.1} parent=1 // pred_region
      %s4349 = ssub.s32 256, 256
      %4350 = vsyncadd [#allocation7], %s4349
      %s4351 = sshll.u32 [#allocation14], 4
      %s4352 = int_to_ptr.vmem [resolvable:$true] %s4351
      %4357 = dma.vmem_to_hbm [thread:$0]  %s4352, 256, %s9, [#allocation7], 128, 128, 8
    $region65: #{tpu_custom_call.1} parent=1 // pred_fallthru
      _
    // Predicated region
    $region66: #{tpu_custom_call.1} parent=1 // pred_check
      _
    $region67: #{tpu_custom_call.1} parent=1 // pred_check_branch
      %4359 = sbr.rel (0) target = $region69
    $region68: #{tpu_custom_call.1} parent=1 // pred_region
      %4360 = dma.done [#allocation7], 256
    $region69: #{tpu_custom_call.1} parent=1 // pred_fallthru
      _
    %4361 = vsyncpa [#allocation6], 1
    %4362 = vsyncpa [#allocation9], 1
    %4363 = vsyncpa [#allocation12], 1
    %4364 = vsyncpa [#allocation7], 1

</llo_original>
